<compile_context>
chip_gen: v6e
topology: v6e:2x2x1
jax: 0.10.0
libtpu: 0.0.40
codegen_flags: <defaults>
</compile_context>

<pallas_src>
import functools
import math

import jax
import jax.numpy as jnp
from jax.experimental import pallas as pl
from jax.experimental.pallas import tpu as pltpu

# ---------------- synthetic BERT config ----------------
VOCAB = 100
TYPE_VOCAB = 2
MAX_POS = 32
HIDDEN = 128
HEADS = 2
HEAD_DIM = HIDDEN // HEADS
INTER = 256
LAYERS = 2
LN_EPS = 1e-12

# packed small-param layout: rows [emb_ln_g, emb_ln_b, pool_b] then per layer
# [bo, ln1_g, ln1_b, bo2, ln2_g, ln2_b]
NV = 3 + 6 * LAYERS


def _layernorm(x, g, b):
    mean = jnp.mean(x, axis=-1, keepdims=True)
    cent = x - mean
    var = jnp.mean(cent * cent, axis=-1, keepdims=True)
    inv = jax.lax.rsqrt(var + LN_EPS)
    return cent * inv * g + b


def _gelu_tanh(x):
    # TODO(synk): HF BERT uses erf-based gelu; tanh approximation used here.
    return 0.5 * x * (1.0 + jnp.tanh(0.7978845608028654 * (x + 0.044715 * x * x * x)))


# ---------------- fused per-batch forward kernel ----------------
def _text_bone_kernel(
    emb_ref,       # [1, S, H]  summed word+pos+type embeddings for this batch row (f32)
    addmask_ref,   # [1, 1, S]  additive attention mask (0 or -1e9) (f32)
    drop_ref,      # [1, 1, H]  dropout multiplier (0.0 or 1/(1-p)=2.0) (f32)
    vecs_ref,      # [NV, H]    packed LN gammas/betas + biases (f32)
    wqkv_ref,      # [L, H, 3H] fused QKV weight, q-cols pre-scaled by 1/sqrt(d) (bf16)
    bqkv_ref,      # [L, 1, 3H] (f32)
    wo_ref,        # [L, H, H]  (bf16)
    wi_ref,        # [L, H, I]  (bf16)
    bi_ref,        # [L, 1, I]  (f32)
    wo2_ref,       # [L, I, H]  (bf16)
    pw_ref,        # [H, H]     pooler weight (bf16)
    o_ref,         # [1, 1, H]  (f32)
    *, seq, layers,
):
    S = seq
    emb_g = vecs_ref[0:1, :]
    emb_b = vecs_ref[1:2, :]
    pool_b = vecs_ref[2:3, :]

    # embeddings LayerNorm
    h = _layernorm(emb_ref[0], emb_g, emb_b)          # [S, H] f32
    add_mask = addmask_ref[...]                       # [1, 1, S]

    for l in range(layers):                           # static unroll (L=2)
        base = 3 + 6 * l
        bo = vecs_ref[base + 0:base + 1, :]
        ln1_g = vecs_ref[base + 1:base + 2, :]
        ln1_b = vecs_ref[base + 2:base + 3, :]
        bo2 = vecs_ref[base + 3:base + 4, :]
        ln2_g = vecs_ref[base + 4:base + 5, :]
        ln2_b = vecs_ref[base + 5:base + 6, :]

        # fused QKV projection: one [S,H] @ [H,3H] bf16 matmul, f32 accumulate
        qkv = jnp.dot(h.astype(jnp.bfloat16), wqkv_ref[l],
                      preferred_element_type=jnp.float32) + bqkv_ref[l]      # [S, 3H]

        # head-batched attention (no concatenates; one transpose in, one out)
        q = jnp.swapaxes(qkv[:, 0 * HIDDEN:1 * HIDDEN].reshape(S, HEADS, HEAD_DIM),
                         0, 1).astype(jnp.bfloat16)                          # [Hd, S, D]
        k = jnp.swapaxes(qkv[:, 1 * HIDDEN:2 * HIDDEN].reshape(S, HEADS, HEAD_DIM),
                         0, 1).astype(jnp.bfloat16)
        v = jnp.swapaxes(qkv[:, 2 * HIDDEN:3 * HIDDEN].reshape(S, HEADS, HEAD_DIM),
                         0, 1).astype(jnp.bfloat16)

        s = jnp.einsum('hqd,hkd->hqk', q, k,
                       preferred_element_type=jnp.float32)                   # [Hd, S, S]
        s = s + add_mask
        s = s - jnp.max(s, axis=-1, keepdims=True)
        p = jnp.exp(s)
        p = p * pl.reciprocal(jnp.sum(p, axis=-1, keepdims=True), approx=True)

        ctx = jnp.einsum('hqk,hkd->hqd', p.astype(jnp.bfloat16), v,
                         preferred_element_type=jnp.float32)                 # [Hd, S, D]
        ctx = jnp.swapaxes(ctx, 0, 1).reshape(S, HIDDEN)                     # [S, H]

        # attention output projection fused with add & LayerNorm epilogue
        attn_out = jnp.dot(ctx.astype(jnp.bfloat16), wo_ref[l],
                           preferred_element_type=jnp.float32) + bo
        h = _layernorm(attn_out + h, ln1_g, ln1_b)

        # FFN (GELU) fused with add & LayerNorm epilogue
        inter = jnp.dot(h.astype(jnp.bfloat16), wi_ref[l],
                        preferred_element_type=jnp.float32) + bi_ref[l]
        inter = _gelu_tanh(inter)
        ffn = jnp.dot(inter.astype(jnp.bfloat16), wo2_ref[l],
                      preferred_element_type=jnp.float32) + bo2
        h = _layernorm(ffn + h, ln2_g, ln2_b)

    # pooler on the [CLS] (row 0) token, fused with Dropout(0.5) multiplier
    cls = h[0:1, :].astype(jnp.bfloat16)                                     # [1, H]
    pooled = jnp.tanh(jnp.dot(cls, pw_ref[...],
                              preferred_element_type=jnp.float32) + pool_b)
    o_ref[0] = (pooled * drop_ref[0]).astype(o_ref.dtype)


# ---------------- parameter init (deterministic, synthetic) ----------------
def init_params(key):
    keys = iter(jax.random.split(key, 64))

    def w(shape, scale=0.02):
        return scale * jax.random.normal(next(keys), shape, jnp.float32)

    att_scale = 1.0 / math.sqrt(HEAD_DIM)

    wqkv, wo, wi, wo2 = [], [], [], []
    for _ in range(LAYERS):
        wq, wk, wv = w((HIDDEN, HIDDEN)), w((HIDDEN, HIDDEN)), w((HIDDEN, HIDDEN))
        # fold 1/sqrt(head_dim) into the q-columns at build time (free at runtime)
        wqkv.append(jnp.concatenate([wq * att_scale, wk, wv], axis=1))
        wo.append(w((HIDDEN, HIDDEN)))
        wi.append(w((HIDDEN, INTER)))
        wo2.append(w((INTER, HIDDEN)))
    wqkv = jnp.stack(wqkv, axis=0)
    wo = jnp.stack(wo, axis=0)
    wi = jnp.stack(wi, axis=0)
    wo2 = jnp.stack(wo2, axis=0)

    bqkv = jnp.zeros((LAYERS, 1, 3 * HIDDEN), jnp.float32)
    bqkv = bqkv.at[:, :, :HIDDEN].multiply(att_scale)   # keep the scale fold consistent

    ones = jnp.ones((1, HIDDEN), jnp.float32)
    zeros = jnp.zeros((1, HIDDEN), jnp.float32)
    rows = [ones, zeros, zeros]                          # emb_ln_g, emb_ln_b, pool_b
    for _ in range(LAYERS):
        rows += [zeros, ones, zeros, zeros, ones, zeros]  # bo, ln1_g, ln1_b, bo2, ln2_g, ln2_b
    vecs_h = jnp.concatenate(rows, axis=0)               # [NV, H]
    assert vecs_h.shape == (NV, HIDDEN)

    return {
        "word_emb": w((VOCAB, HIDDEN)),
        "pos_emb": w((MAX_POS, HIDDEN)),
        "type_emb": w((TYPE_VOCAB, HIDDEN)),
        "vecs_h": vecs_h,
        "wqkv": wqkv.astype(jnp.bfloat16),
        "bqkv": bqkv,
        "wo": wo.astype(jnp.bfloat16),
        "wi": wi.astype(jnp.bfloat16),
        "bi": jnp.zeros((LAYERS, 1, INTER), jnp.float32),
        "wo2": wo2.astype(jnp.bfloat16),
        "pool_w": w((HIDDEN, HIDDEN)).astype(jnp.bfloat16),
    }


# ---------------- forward (Text_bone.forward) ----------------
def text_bone_forward(params, ids, mask, token_type_ids, dropout_key):
    B, S = ids.shape
    # embedding gathers stay as XLA glue; everything else runs in one fused kernel.
    # TODO(synk): embedding gathers could move in-kernel via scalar-prefetched ids.
    we = jnp.take(params["word_emb"], ids, axis=0)                    # [B,S,H]
    pe = params["pos_emb"][:S][None, :, :]                            # [1,S,H]
    te = jnp.take(params["type_emb"], token_type_ids, axis=0)         # [B,S,H]
    emb = (we + pe + te).astype(jnp.float32)                          # [B,S,H]

    # additive attention mask as in HF BERT
    add_mask = ((1.0 - mask.astype(jnp.float32)) * -1e9)[:, None, :]  # [B,1,S]

    # training-mode Dropout(p=0.5): precomputed keep-mask * 1/(1-p)
    # TODO(synk): could be generated on-chip with pltpu.prng_seed/prng_random_bits;
    # kept host-side so the mask is reproducible and the kernel stays PRNG-free.
    drop_mult = (jax.random.bernoulli(dropout_key, 0.5, (B, 1, HIDDEN))
                 .astype(jnp.float32) * 2.0)

    kernel = functools.partial(_text_bone_kernel, seq=S, layers=LAYERS)
    # TODO(synk): internal BertModel dropouts (p=0.1) omitted (eval-mode encoder).
    out = pl.pallas_call(
        kernel,
        out_shape=jax.ShapeDtypeStruct((B, 1, HIDDEN), jnp.float32),
        grid_spec=pltpu.PrefetchScalarGridSpec(
            num_scalar_prefetch=0,
            grid=(B,),
            in_specs=[
                pl.BlockSpec((1, S, HIDDEN), lambda b: (b, 0, 0)),              # emb
                pl.BlockSpec((1, 1, S), lambda b: (b, 0, 0)),                   # add_mask
                pl.BlockSpec((1, 1, HIDDEN), lambda b: (b, 0, 0)),              # dropout mult
                pl.BlockSpec((NV, HIDDEN), lambda b: (0, 0)),                   # packed vecs
                pl.BlockSpec((LAYERS, HIDDEN, 3 * HIDDEN), lambda b: (0, 0, 0)),  # wqkv
                pl.BlockSpec((LAYERS, 1, 3 * HIDDEN), lambda b: (0, 0, 0)),       # bqkv
                pl.BlockSpec((LAYERS, HIDDEN, HIDDEN), lambda b: (0, 0, 0)),      # wo
                pl.BlockSpec((LAYERS, HIDDEN, INTER), lambda b: (0, 0, 0)),       # wi
                pl.BlockSpec((LAYERS, 1, INTER), lambda b: (0, 0, 0)),            # bi
                pl.BlockSpec((LAYERS, INTER, HIDDEN), lambda b: (0, 0, 0)),       # wo2
                pl.BlockSpec((HIDDEN, HIDDEN), lambda b: (0, 0)),                 # pool_w
            ],
            out_specs=pl.BlockSpec((1, 1, HIDDEN), lambda b: (b, 0, 0)),
        ),
        compiler_params=pltpu.CompilerParams(dimension_semantics=("parallel",)),
    )(emb, add_mask, drop_mult, params["vecs_h"],
      params["wqkv"], params["bqkv"], params["wo"],
      params["wi"], params["bi"], params["wo2"], params["pool_w"])
    return out[:, 0, :]


if __name__ == "__main__":
    key = jax.random.PRNGKey(0)
    pkey, ikey, dkey = jax.random.split(key, 3)
    params = init_params(pkey)

    B, S = 2, 8
    ids = jax.random.randint(ikey, (B, S), 0, VOCAB, dtype=jnp.int32)
    mask = jnp.array([[1, 1, 1, 1, 1, 1, 1, 1],
                      [1, 1, 1, 1, 1, 0, 0, 0]], dtype=jnp.int32)
    token_type_ids = jnp.zeros((B, S), jnp.int32)

    out = text_bone_forward(params, ids, mask, token_type_ids, dkey)
    out = jax.block_until_ready(out)
    assert out.shape == (B, HIDDEN) and out.dtype == jnp.float32
    assert bool(jnp.all(jnp.isfinite(out)))
    print("KERNEL_OK")
</pallas_src>

<mosaic_0001>
module attributes {stable_mosaic.version = 11 : i64} {
  func.func @_text_bone_kernel(%arg0: i32, %arg1: memref<1x8x128xf32, #tpu.memory_space<vmem>>, %arg2: memref<1x1x8xf32, #tpu.memory_space<vmem>>, %arg3: memref<1x1x128xf32, #tpu.memory_space<vmem>>, %arg4: memref<15x128xf32, #tpu.memory_space<vmem>>, %arg5: memref<2x128x384xbf16, #tpu.memory_space<vmem>>, %arg6: memref<2x1x384xf32, #tpu.memory_space<vmem>>, %arg7: memref<2x128x128xbf16, #tpu.memory_space<vmem>>, %arg8: memref<2x128x256xbf16, #tpu.memory_space<vmem>>, %arg9: memref<2x1x256xf32, #tpu.memory_space<vmem>>, %arg10: memref<2x256x128xbf16, #tpu.memory_space<vmem>>, %arg11: memref<128x128xbf16, #tpu.memory_space<vmem>>, %arg12: memref<1x1x128xf32, #tpu.memory_space<vmem>>) attributes {dimension_semantics = [#tpu.dimension_semantics<parallel>], iteration_bounds = array<i64: 2>, scalar_prefetch = 0 : i64, scratch_operands = 0 : i64, tpu.core_type = #tpu.core_type<tc>, window_params = [{transform_indices = @transform_0, window_bounds = array<i64: 1, 8, 128>}, {transform_indices = @transform_1, window_bounds = array<i64: 1, 1, 8>}, {transform_indices = @transform_2, window_bounds = array<i64: 1, 1, 128>}, {pipeline_mode = #tpu.pipeline_mode<synchronous>, transform_indices = @transform_3, window_bounds = array<i64: 15, 128>}, {pipeline_mode = #tpu.pipeline_mode<synchronous>, transform_indices = @transform_4, window_bounds = array<i64: 2, 128, 384>}, {pipeline_mode = #tpu.pipeline_mode<synchronous>, transform_indices = @transform_5, window_bounds = array<i64: 2, 1, 384>}, {pipeline_mode = #tpu.pipeline_mode<synchronous>, transform_indices = @transform_6, window_bounds = array<i64: 2, 128, 128>}, {pipeline_mode = #tpu.pipeline_mode<synchronous>, transform_indices = @transform_7, window_bounds = array<i64: 2, 128, 256>}, {pipeline_mode = #tpu.pipeline_mode<synchronous>, transform_indices = @transform_8, window_bounds = array<i64: 2, 1, 256>}, {pipeline_mode = #tpu.pipeline_mode<synchronous>, transform_indices = @transform_9, window_bounds = array<i64: 2, 256, 128>}, {pipeline_mode = #tpu.pipeline_mode<synchronous>, transform_indices = @transform_10, window_bounds = array<i64: 128, 128>}, {transform_indices = @transform_11, window_bounds = array<i64: 1, 1, 128>}]} {
    %c0 = arith.constant 0 : index
    %c0_0 = arith.constant 0 : index
    %0 = vector.load %arg4[%c0, %c0_0] : memref<15x128xf32, #tpu.memory_space<vmem>>, vector<1x128xf32>
    %c1 = arith.constant 1 : index
    %c0_1 = arith.constant 0 : index
    %1 = vector.load %arg4[%c1, %c0_1] : memref<15x128xf32, #tpu.memory_space<vmem>>, vector<1x128xf32>
    %c2 = arith.constant 2 : index
    %c0_2 = arith.constant 0 : index
    %2 = vector.load %arg4[%c2, %c0_2] : memref<15x128xf32, #tpu.memory_space<vmem>>, vector<1x128xf32>
    %c0_3 = arith.constant 0 : index
    %c0_4 = arith.constant 0 : index
    %c0_5 = arith.constant 0 : index
    %3 = vector.load %arg1[%c0_3, %c0_4, %c0_5] : memref<1x8x128xf32, #tpu.memory_space<vmem>>, vector<1x8x128xf32>
    %4 = vector.shape_cast %3 : vector<1x8x128xf32> to vector<8x128xf32>
    %cst = arith.constant dense<0.000000e+00> : vector<8xf32>
    %5 = vector.multi_reduction <add>, %4, %cst [1] : vector<8x128xf32> to vector<8xf32>
    %6 = vector.shape_cast %5 : vector<8xf32> to vector<8x1xf32>
    %cst_6 = arith.constant 1.280000e+02 : f32
    %7 = vector.broadcast %cst_6 : f32 to vector<8x1xf32>
    %8 = arith.divf %6, %7 : vector<8x1xf32>
    %9 = vector.broadcast %8 : vector<8x1xf32> to vector<8x128xf32>
    %10 = arith.subf %4, %9 : vector<8x128xf32>
    %11 = arith.mulf %10, %10 : vector<8x128xf32>
    %cst_7 = arith.constant dense<0.000000e+00> : vector<8xf32>
    %12 = vector.multi_reduction <add>, %11, %cst_7 [1] : vector<8x128xf32> to vector<8xf32>
    %13 = vector.shape_cast %12 : vector<8xf32> to vector<8x1xf32>
    %cst_8 = arith.constant 1.280000e+02 : f32
    %14 = vector.broadcast %cst_8 : f32 to vector<8x1xf32>
    %15 = arith.divf %13, %14 : vector<8x1xf32>
    %cst_9 = arith.constant 9.99999996E-13 : f32
    %16 = vector.broadcast %cst_9 : f32 to vector<8x1xf32>
    %17 = arith.addf %15, %16 : vector<8x1xf32>
    %18 = math.rsqrt %17 : vector<8x1xf32>
    %19 = vector.broadcast %18 : vector<8x1xf32> to vector<8x128xf32>
    %20 = arith.mulf %10, %19 : vector<8x128xf32>
    %21 = vector.broadcast %0 : vector<1x128xf32> to vector<8x128xf32>
    %22 = arith.mulf %20, %21 : vector<8x128xf32>
    %23 = vector.broadcast %1 : vector<1x128xf32> to vector<8x128xf32>
    %24 = arith.addf %22, %23 : vector<8x128xf32>
    %c0_10 = arith.constant 0 : index
    %c0_11 = arith.constant 0 : index
    %c0_12 = arith.constant 0 : index
    %25 = vector.load %arg2[%c0_10, %c0_11, %c0_12] : memref<1x1x8xf32, #tpu.memory_space<vmem>>, vector<1x1x8xf32>
    %c3 = arith.constant 3 : index
    %c0_13 = arith.constant 0 : index
    %26 = vector.load %arg4[%c3, %c0_13] : memref<15x128xf32, #tpu.memory_space<vmem>>, vector<1x128xf32>
    %c4 = arith.constant 4 : index
    %c0_14 = arith.constant 0 : index
    %27 = vector.load %arg4[%c4, %c0_14] : memref<15x128xf32, #tpu.memory_space<vmem>>, vector<1x128xf32>
    %c5 = arith.constant 5 : index
    %c0_15 = arith.constant 0 : index
    %28 = vector.load %arg4[%c5, %c0_15] : memref<15x128xf32, #tpu.memory_space<vmem>>, vector<1x128xf32>
    %c6 = arith.constant 6 : index
    %c0_16 = arith.constant 0 : index
    %29 = vector.load %arg4[%c6, %c0_16] : memref<15x128xf32, #tpu.memory_space<vmem>>, vector<1x128xf32>
    %c7 = arith.constant 7 : index
    %c0_17 = arith.constant 0 : index
    %30 = vector.load %arg4[%c7, %c0_17] : memref<15x128xf32, #tpu.memory_space<vmem>>, vector<1x128xf32>
    %c8 = arith.constant 8 : index
    %c0_18 = arith.constant 0 : index
    %31 = vector.load %arg4[%c8, %c0_18] : memref<15x128xf32, #tpu.memory_space<vmem>>, vector<1x128xf32>
    %32 = arith.truncf %24 : vector<8x128xf32> to vector<8x128xbf16>
    %c0_19 = arith.constant 0 : index
    %c0_20 = arith.constant 0 : index
    %c0_21 = arith.constant 0 : index
    %33 = vector.load %arg5[%c0_19, %c0_20, %c0_21] : memref<2x128x384xbf16, #tpu.memory_space<vmem>>, vector<1x128x384xbf16>
    %34 = vector.shape_cast %33 : vector<1x128x384xbf16> to vector<128x384xbf16>
    %cst_22 = arith.constant dense<0.000000e+00> : vector<8x384xf32>
    %35 = tpu.matmul %32, %34, %cst_22 {dimension_numbers = #tpu.dot_dimension_numbers<[1], [0], [0], [1], [0, 0, 1, 1], [], []>} : vector<8x128xbf16>, vector<128x384xbf16>, vector<8x384xf32> -> vector<8x384xf32>
    %c0_23 = arith.constant 0 : index
    %c0_24 = arith.constant 0 : index
    %c0_25 = arith.constant 0 : index
    %36 = vector.load %arg6[%c0_23, %c0_24, %c0_25] : memref<2x1x384xf32, #tpu.memory_space<vmem>>, vector<1x1x384xf32>
    %37 = vector.shape_cast %36 : vector<1x1x384xf32> to vector<1x384xf32>
    %38 = vector.broadcast %37 : vector<1x384xf32> to vector<8x384xf32>
    %39 = arith.addf %35, %38 : vector<8x384xf32>
    %40 = vector.extract_strided_slice %39 {offsets = [0, 0], sizes = [8, 128], strides = [1, 1]} : vector<8x384xf32> to vector<8x128xf32>
    %41 = vector.shape_cast %40 : vector<8x128xf32> to vector<8x2x64xf32>
    %42 = tpu.transpose %41, [1, 0, 2] : vector<8x2x64xf32> -> vector<2x8x64xf32>
    %43 = arith.truncf %42 : vector<2x8x64xf32> to vector<2x8x64xbf16>
    %44 = vector.extract_strided_slice %39 {offsets = [0, 128], sizes = [8, 128], strides = [1, 1]} : vector<8x384xf32> to vector<8x128xf32>
    %45 = vector.shape_cast %44 : vector<8x128xf32> to vector<8x2x64xf32>
    %46 = tpu.transpose %45, [1, 0, 2] : vector<8x2x64xf32> -> vector<2x8x64xf32>
    %47 = arith.truncf %46 : vector<2x8x64xf32> to vector<2x8x64xbf16>
    %48 = vector.extract_strided_slice %39 {offsets = [0, 256], sizes = [8, 128], strides = [1, 1]} : vector<8x384xf32> to vector<8x128xf32>
    %49 = vector.shape_cast %48 : vector<8x128xf32> to vector<8x2x64xf32>
    %50 = tpu.transpose %49, [1, 0, 2] : vector<8x2x64xf32> -> vector<2x8x64xf32>
    %51 = arith.truncf %50 : vector<2x8x64xf32> to vector<2x8x64xbf16>
    "tpu.trace_start"() <{level = 10 : i32, message = "hqd,hkd->hqk"}> : () -> ()
    %cst_26 = arith.constant dense<0.000000e+00> : vector<2x8x8xf32>
    %52 = tpu.matmul %43, %47, %cst_26 {dimension_numbers = #tpu.dot_dimension_numbers<[2], [2], [1], [1], [0, 0, 0, 1, 1, 1], [0], [0]>} : vector<2x8x64xbf16>, vector<2x8x64xbf16>, vector<2x8x8xf32> -> vector<2x8x8xf32>
    "tpu.trace_stop"() : () -> ()
    %53 = vector.broadcast %25 : vector<1x1x8xf32> to vector<2x8x8xf32>
    %54 = arith.addf %52, %53 : vector<2x8x8xf32>
    %cst_27 = arith.constant dense<0xFF800000> : vector<2x8xf32>
    %55 = vector.multi_reduction <maximumf>, %54, %cst_27 [2] : vector<2x8x8xf32> to vector<2x8xf32>
    %56 = vector.shape_cast %55 : vector<2x8xf32> to vector<2x8x1xf32>
    %57 = vector.broadcast %56 : vector<2x8x1xf32> to vector<2x8x8xf32>
    %58 = arith.subf %54, %57 : vector<2x8x8xf32>
    %59 = math.exp %58 : vector<2x8x8xf32>
    %cst_28 = arith.constant dense<0.000000e+00> : vector<2x8xf32>
    %60 = vector.multi_reduction <add>, %59, %cst_28 [2] : vector<2x8x8xf32> to vector<2x8xf32>
    %61 = vector.shape_cast %60 : vector<2x8xf32> to vector<2x8x1xf32>
    %62 = tpu.reciprocal %61 {approx = true} : vector<2x8x1xf32> -> vector<2x8x1xf32>
    %63 = vector.broadcast %62 : vector<2x8x1xf32> to vector<2x8x8xf32>
    %64 = arith.mulf %59, %63 : vector<2x8x8xf32>
    %65 = arith.truncf %64 : vector<2x8x8xf32> to vector<2x8x8xbf16>
    "tpu.trace_start"() <{level = 10 : i32, message = "hqk,hkd->hqd"}> : () -> ()
    %cst_29 = arith.constant dense<0.000000e+00> : vector<2x8x64xf32>
    %66 = tpu.matmul %65, %51, %cst_29 {dimension_numbers = #tpu.dot_dimension_numbers<[2], [1], [1], [2], [0, 0, 0, 1, 1, 2], [0], [0]>} : vector<2x8x8xbf16>, vector<2x8x64xbf16>, vector<2x8x64xf32> -> vector<2x8x64xf32>
    "tpu.trace_stop"() : () -> ()
    %67 = tpu.transpose %66, [1, 0, 2] : vector<2x8x64xf32> -> vector<8x2x64xf32>
    %68 = vector.shape_cast %67 : vector<8x2x64xf32> to vector<8x128xf32>
    %69 = arith.truncf %68 : vector<8x128xf32> to vector<8x128xbf16>
    %c0_30 = arith.constant 0 : index
    %c0_31 = arith.constant 0 : index
    %c0_32 = arith.constant 0 : index
    %70 = vector.load %arg7[%c0_30, %c0_31, %c0_32] : memref<2x128x128xbf16, #tpu.memory_space<vmem>>, vector<1x128x128xbf16>
    %71 = vector.shape_cast %70 : vector<1x128x128xbf16> to vector<128x128xbf16>
    %cst_33 = arith.constant dense<0.000000e+00> : vector<8x128xf32>
    %72 = tpu.matmul %69, %71, %cst_33 {dimension_numbers = #tpu.dot_dimension_numbers<[1], [0], [0], [1], [0, 0, 1, 1], [], []>} : vector<8x128xbf16>, vector<128x128xbf16>, vector<8x128xf32> -> vector<8x128xf32>
    %73 = vector.broadcast %26 : vector<1x128xf32> to vector<8x128xf32>
    %74 = arith.addf %72, %73 : vector<8x128xf32>
    %75 = arith.addf %74, %24 : vector<8x128xf32>
    %cst_34 = arith.constant dense<0.000000e+00> : vector<8xf32>
    %76 = vector.multi_reduction <add>, %75, %cst_34 [1] : vector<8x128xf32> to vector<8xf32>
    %77 = vector.shape_cast %76 : vector<8xf32> to vector<8x1xf32>
    %cst_35 = arith.constant 1.280000e+02 : f32
    %78 = vector.broadcast %cst_35 : f32 to vector<8x1xf32>
    %79 = arith.divf %77, %78 : vector<8x1xf32>
    %80 = vector.broadcast %79 : vector<8x1xf32> to vector<8x128xf32>
    %81 = arith.subf %75, %80 : vector<8x128xf32>
    %82 = arith.mulf %81, %81 : vector<8x128xf32>
    %cst_36 = arith.constant dense<0.000000e+00> : vector<8xf32>
    %83 = vector.multi_reduction <add>, %82, %cst_36 [1] : vector<8x128xf32> to vector<8xf32>
    %84 = vector.shape_cast %83 : vector<8xf32> to vector<8x1xf32>
    %cst_37 = arith.constant 1.280000e+02 : f32
    %85 = vector.broadcast %cst_37 : f32 to vector<8x1xf32>
    %86 = arith.divf %84, %85 : vector<8x1xf32>
    %cst_38 = arith.constant 9.99999996E-13 : f32
    %87 = vector.broadcast %cst_38 : f32 to vector<8x1xf32>
    %88 = arith.addf %86, %87 : vector<8x1xf32>
    %89 = math.rsqrt %88 : vector<8x1xf32>
    %90 = vector.broadcast %89 : vector<8x1xf32> to vector<8x128xf32>
    %91 = arith.mulf %81, %90 : vector<8x128xf32>
    %92 = vector.broadcast %27 : vector<1x128xf32> to vector<8x128xf32>
    %93 = arith.mulf %91, %92 : vector<8x128xf32>
    %94 = vector.broadcast %28 : vector<1x128xf32> to vector<8x128xf32>
    %95 = arith.addf %93, %94 : vector<8x128xf32>
    %96 = arith.truncf %95 : vector<8x128xf32> to vector<8x128xbf16>
    %c0_39 = arith.constant 0 : index
    %c0_40 = arith.constant 0 : index
    %c0_41 = arith.constant 0 : index
    %97 = vector.load %arg8[%c0_39, %c0_40, %c0_41] : memref<2x128x256xbf16, #tpu.memory_space<vmem>>, vector<1x128x256xbf16>
    %98 = vector.shape_cast %97 : vector<1x128x256xbf16> to vector<128x256xbf16>
    %cst_42 = arith.constant dense<0.000000e+00> : vector<8x256xf32>
    %99 = tpu.matmul %96, %98, %cst_42 {dimension_numbers = #tpu.dot_dimension_numbers<[1], [0], [0], [1], [0, 0, 1, 1], [], []>} : vector<8x128xbf16>, vector<128x256xbf16>, vector<8x256xf32> -> vector<8x256xf32>
    %c0_43 = arith.constant 0 : index
    %c0_44 = arith.constant 0 : index
    %c0_45 = arith.constant 0 : index
    %100 = vector.load %arg9[%c0_43, %c0_44, %c0_45] : memref<2x1x256xf32, #tpu.memory_space<vmem>>, vector<1x1x256xf32>
    %101 = vector.shape_cast %100 : vector<1x1x256xf32> to vector<1x256xf32>
    %102 = vector.broadcast %101 : vector<1x256xf32> to vector<8x256xf32>
    %103 = arith.addf %99, %102 : vector<8x256xf32>
    %cst_46 = arith.constant 5.000000e-01 : f32
    %104 = vector.broadcast %cst_46 : f32 to vector<8x256xf32>
    %105 = arith.mulf %104, %103 : vector<8x256xf32>
    %cst_47 = arith.constant 4.471500e-02 : f32
    %106 = vector.broadcast %cst_47 : f32 to vector<8x256xf32>
    %107 = arith.mulf %106, %103 : vector<8x256xf32>
    %108 = arith.mulf %107, %103 : vector<8x256xf32>
    %109 = arith.mulf %108, %103 : vector<8x256xf32>
    %110 = arith.addf %103, %109 : vector<8x256xf32>
    %cst_48 = arith.constant 0.797884583 : f32
    %111 = vector.broadcast %cst_48 : f32 to vector<8x256xf32>
    %112 = arith.mulf %111, %110 : vector<8x256xf32>
    %113 = math.tanh %112 : vector<8x256xf32>
    %cst_49 = arith.constant 1.000000e+00 : f32
    %114 = vector.broadcast %cst_49 : f32 to vector<8x256xf32>
    %115 = arith.addf %114, %113 : vector<8x256xf32>
    %116 = arith.mulf %105, %115 : vector<8x256xf32>
    %117 = arith.truncf %116 : vector<8x256xf32> to vector<8x256xbf16>
    %c0_50 = arith.constant 0 : index
    %c0_51 = arith.constant 0 : index
    %c0_52 = arith.constant 0 : index
    %118 = vector.load %arg10[%c0_50, %c0_51, %c0_52] : memref<2x256x128xbf16, #tpu.memory_space<vmem>>, vector<1x256x128xbf16>
    %119 = vector.shape_cast %118 : vector<1x256x128xbf16> to vector<256x128xbf16>
    %cst_53 = arith.constant dense<0.000000e+00> : vector<8x128xf32>
    %120 = tpu.matmul %117, %119, %cst_53 {dimension_numbers = #tpu.dot_dimension_numbers<[1], [0], [0], [1], [0, 0, 1, 1], [], []>} : vector<8x256xbf16>, vector<256x128xbf16>, vector<8x128xf32> -> vector<8x128xf32>
    %121 = vector.broadcast %29 : vector<1x128xf32> to vector<8x128xf32>
    %122 = arith.addf %120, %121 : vector<8x128xf32>
    %123 = arith.addf %122, %95 : vector<8x128xf32>
    %cst_54 = arith.constant dense<0.000000e+00> : vector<8xf32>
    %124 = vector.multi_reduction <add>, %123, %cst_54 [1] : vector<8x128xf32> to vector<8xf32>
    %125 = vector.shape_cast %124 : vector<8xf32> to vector<8x1xf32>
    %cst_55 = arith.constant 1.280000e+02 : f32
    %126 = vector.broadcast %cst_55 : f32 to vector<8x1xf32>
    %127 = arith.divf %125, %126 : vector<8x1xf32>
    %128 = vector.broadcast %127 : vector<8x1xf32> to vector<8x128xf32>
    %129 = arith.subf %123, %128 : vector<8x128xf32>
    %130 = arith.mulf %129, %129 : vector<8x128xf32>
    %cst_56 = arith.constant dense<0.000000e+00> : vector<8xf32>
    %131 = vector.multi_reduction <add>, %130, %cst_56 [1] : vector<8x128xf32> to vector<8xf32>
    %132 = vector.shape_cast %131 : vector<8xf32> to vector<8x1xf32>
    %cst_57 = arith.constant 1.280000e+02 : f32
    %133 = vector.broadcast %cst_57 : f32 to vector<8x1xf32>
    %134 = arith.divf %132, %133 : vector<8x1xf32>
    %cst_58 = arith.constant 9.99999996E-13 : f32
    %135 = vector.broadcast %cst_58 : f32 to vector<8x1xf32>
    %136 = arith.addf %134, %135 : vector<8x1xf32>
    %137 = math.rsqrt %136 : vector<8x1xf32>
    %138 = vector.broadcast %137 : vector<8x1xf32> to vector<8x128xf32>
    %139 = arith.mulf %129, %138 : vector<8x128xf32>
    %140 = vector.broadcast %30 : vector<1x128xf32> to vector<8x128xf32>
    %141 = arith.mulf %139, %140 : vector<8x128xf32>
    %142 = vector.broadcast %31 : vector<1x128xf32> to vector<8x128xf32>
    %143 = arith.addf %141, %142 : vector<8x128xf32>
    %c9 = arith.constant 9 : index
    %c0_59 = arith.constant 0 : index
    %144 = vector.load %arg4[%c9, %c0_59] : memref<15x128xf32, #tpu.memory_space<vmem>>, vector<1x128xf32>
    %c10 = arith.constant 10 : index
    %c0_60 = arith.constant 0 : index
    %145 = vector.load %arg4[%c10, %c0_60] : memref<15x128xf32, #tpu.memory_space<vmem>>, vector<1x128xf32>
    %c11 = arith.constant 11 : index
    %c0_61 = arith.constant 0 : index
    %146 = vector.load %arg4[%c11, %c0_61] : memref<15x128xf32, #tpu.memory_space<vmem>>, vector<1x128xf32>
    %c12 = arith.constant 12 : index
    %c0_62 = arith.constant 0 : index
    %147 = vector.load %arg4[%c12, %c0_62] : memref<15x128xf32, #tpu.memory_space<vmem>>, vector<1x128xf32>
    %c13 = arith.constant 13 : index
    %c0_63 = arith.constant 0 : index
    %148 = vector.load %arg4[%c13, %c0_63] : memref<15x128xf32, #tpu.memory_space<vmem>>, vector<1x128xf32>
    %c14 = arith.constant 14 : index
    %c0_64 = arith.constant 0 : index
    %149 = vector.load %arg4[%c14, %c0_64] : memref<15x128xf32, #tpu.memory_space<vmem>>, vector<1x128xf32>
    %150 = arith.truncf %143 : vector<8x128xf32> to vector<8x128xbf16>
    %c1_65 = arith.constant 1 : index
    %c0_66 = arith.constant 0 : index
    %c0_67 = arith.constant 0 : index
    %151 = vector.load %arg5[%c1_65, %c0_66, %c0_67] : memref<2x128x384xbf16, #tpu.memory_space<vmem>>, vector<1x128x384xbf16>
    %152 = vector.shape_cast %151 : vector<1x128x384xbf16> to vector<128x384xbf16>
    %cst_68 = arith.constant dense<0.000000e+00> : vector<8x384xf32>
    %153 = tpu.matmul %150, %152, %cst_68 {dimension_numbers = #tpu.dot_dimension_numbers<[1], [0], [0], [1], [0, 0, 1, 1], [], []>} : vector<8x128xbf16>, vector<128x384xbf16>, vector<8x384xf32> -> vector<8x384xf32>
    %c1_69 = arith.constant 1 : index
    %c0_70 = arith.constant 0 : index
    %c0_71 = arith.constant 0 : index
    %154 = vector.load %arg6[%c1_69, %c0_70, %c0_71] : memref<2x1x384xf32, #tpu.memory_space<vmem>>, vector<1x1x384xf32>
    %155 = vector.shape_cast %154 : vector<1x1x384xf32> to vector<1x384xf32>
    %156 = vector.broadcast %155 : vector<1x384xf32> to vector<8x384xf32>
    %157 = arith.addf %153, %156 : vector<8x384xf32>
    %158 = vector.extract_strided_slice %157 {offsets = [0, 0], sizes = [8, 128], strides = [1, 1]} : vector<8x384xf32> to vector<8x128xf32>
    %159 = vector.shape_cast %158 : vector<8x128xf32> to vector<8x2x64xf32>
    %160 = tpu.transpose %159, [1, 0, 2] : vector<8x2x64xf32> -> vector<2x8x64xf32>
    %161 = arith.truncf %160 : vector<2x8x64xf32> to vector<2x8x64xbf16>
    %162 = vector.extract_strided_slice %157 {offsets = [0, 128], sizes = [8, 128], strides = [1, 1]} : vector<8x384xf32> to vector<8x128xf32>
    %163 = vector.shape_cast %162 : vector<8x128xf32> to vector<8x2x64xf32>
    %164 = tpu.transpose %163, [1, 0, 2] : vector<8x2x64xf32> -> vector<2x8x64xf32>
    %165 = arith.truncf %164 : vector<2x8x64xf32> to vector<2x8x64xbf16>
    %166 = vector.extract_strided_slice %157 {offsets = [0, 256], sizes = [8, 128], strides = [1, 1]} : vector<8x384xf32> to vector<8x128xf32>
    %167 = vector.shape_cast %166 : vector<8x128xf32> to vector<8x2x64xf32>
    %168 = tpu.transpose %167, [1, 0, 2] : vector<8x2x64xf32> -> vector<2x8x64xf32>
    %169 = arith.truncf %168 : vector<2x8x64xf32> to vector<2x8x64xbf16>
    "tpu.trace_start"() <{level = 10 : i32, message = "hqd,hkd->hqk"}> : () -> ()
    %cst_72 = arith.constant dense<0.000000e+00> : vector<2x8x8xf32>
    %170 = tpu.matmul %161, %165, %cst_72 {dimension_numbers = #tpu.dot_dimension_numbers<[2], [2], [1], [1], [0, 0, 0, 1, 1, 1], [0], [0]>} : vector<2x8x64xbf16>, vector<2x8x64xbf16>, vector<2x8x8xf32> -> vector<2x8x8xf32>
    "tpu.trace_stop"() : () -> ()
    %171 = vector.broadcast %25 : vector<1x1x8xf32> to vector<2x8x8xf32>
    %172 = arith.addf %170, %171 : vector<2x8x8xf32>
    %cst_73 = arith.constant dense<0xFF800000> : vector<2x8xf32>
    %173 = vector.multi_reduction <maximumf>, %172, %cst_73 [2] : vector<2x8x8xf32> to vector<2x8xf32>
    %174 = vector.shape_cast %173 : vector<2x8xf32> to vector<2x8x1xf32>
    %175 = vector.broadcast %174 : vector<2x8x1xf32> to vector<2x8x8xf32>
    %176 = arith.subf %172, %175 : vector<2x8x8xf32>
    %177 = math.exp %176 : vector<2x8x8xf32>
    %cst_74 = arith.constant dense<0.000000e+00> : vector<2x8xf32>
    %178 = vector.multi_reduction <add>, %177, %cst_74 [2] : vector<2x8x8xf32> to vector<2x8xf32>
    %179 = vector.shape_cast %178 : vector<2x8xf32> to vector<2x8x1xf32>
    %180 = tpu.reciprocal %179 {approx = true} : vector<2x8x1xf32> -> vector<2x8x1xf32>
    %181 = vector.broadcast %180 : vector<2x8x1xf32> to vector<2x8x8xf32>
    %182 = arith.mulf %177, %181 : vector<2x8x8xf32>
    %183 = arith.truncf %182 : vector<2x8x8xf32> to vector<2x8x8xbf16>
    "tpu.trace_start"() <{level = 10 : i32, message = "hqk,hkd->hqd"}> : () -> ()
    %cst_75 = arith.constant dense<0.000000e+00> : vector<2x8x64xf32>
    %184 = tpu.matmul %183, %169, %cst_75 {dimension_numbers = #tpu.dot_dimension_numbers<[2], [1], [1], [2], [0, 0, 0, 1, 1, 2], [0], [0]>} : vector<2x8x8xbf16>, vector<2x8x64xbf16>, vector<2x8x64xf32> -> vector<2x8x64xf32>
    "tpu.trace_stop"() : () -> ()
    %185 = tpu.transpose %184, [1, 0, 2] : vector<2x8x64xf32> -> vector<8x2x64xf32>
    %186 = vector.shape_cast %185 : vector<8x2x64xf32> to vector<8x128xf32>
    %187 = arith.truncf %186 : vector<8x128xf32> to vector<8x128xbf16>
    %c1_76 = arith.constant 1 : index
    %c0_77 = arith.constant 0 : index
    %c0_78 = arith.constant 0 : index
    %188 = vector.load %arg7[%c1_76, %c0_77, %c0_78] : memref<2x128x128xbf16, #tpu.memory_space<vmem>>, vector<1x128x128xbf16>
    %189 = vector.shape_cast %188 : vector<1x128x128xbf16> to vector<128x128xbf16>
    %cst_79 = arith.constant dense<0.000000e+00> : vector<8x128xf32>
    %190 = tpu.matmul %187, %189, %cst_79 {dimension_numbers = #tpu.dot_dimension_numbers<[1], [0], [0], [1], [0, 0, 1, 1], [], []>} : vector<8x128xbf16>, vector<128x128xbf16>, vector<8x128xf32> -> vector<8x128xf32>
    %191 = vector.broadcast %144 : vector<1x128xf32> to vector<8x128xf32>
    %192 = arith.addf %190, %191 : vector<8x128xf32>
    %193 = arith.addf %192, %143 : vector<8x128xf32>
    %cst_80 = arith.constant dense<0.000000e+00> : vector<8xf32>
    %194 = vector.multi_reduction <add>, %193, %cst_80 [1] : vector<8x128xf32> to vector<8xf32>
    %195 = vector.shape_cast %194 : vector<8xf32> to vector<8x1xf32>
    %cst_81 = arith.constant 1.280000e+02 : f32
    %196 = vector.broadcast %cst_81 : f32 to vector<8x1xf32>
    %197 = arith.divf %195, %196 : vector<8x1xf32>
    %198 = vector.broadcast %197 : vector<8x1xf32> to vector<8x128xf32>
    %199 = arith.subf %193, %198 : vector<8x128xf32>
    %200 = arith.mulf %199, %199 : vector<8x128xf32>
    %cst_82 = arith.constant dense<0.000000e+00> : vector<8xf32>
    %201 = vector.multi_reduction <add>, %200, %cst_82 [1] : vector<8x128xf32> to vector<8xf32>
    %202 = vector.shape_cast %201 : vector<8xf32> to vector<8x1xf32>
    %cst_83 = arith.constant 1.280000e+02 : f32
    %203 = vector.broadcast %cst_83 : f32 to vector<8x1xf32>
    %204 = arith.divf %202, %203 : vector<8x1xf32>
    %cst_84 = arith.constant 9.99999996E-13 : f32
    %205 = vector.broadcast %cst_84 : f32 to vector<8x1xf32>
    %206 = arith.addf %204, %205 : vector<8x1xf32>
    %207 = math.rsqrt %206 : vector<8x1xf32>
    %208 = vector.broadcast %207 : vector<8x1xf32> to vector<8x128xf32>
    %209 = arith.mulf %199, %208 : vector<8x128xf32>
    %210 = vector.broadcast %145 : vector<1x128xf32> to vector<8x128xf32>
    %211 = arith.mulf %209, %210 : vector<8x128xf32>
    %212 = vector.broadcast %146 : vector<1x128xf32> to vector<8x128xf32>
    %213 = arith.addf %211, %212 : vector<8x128xf32>
    %214 = arith.truncf %213 : vector<8x128xf32> to vector<8x128xbf16>
    %c1_85 = arith.constant 1 : index
    %c0_86 = arith.constant 0 : index
    %c0_87 = arith.constant 0 : index
    %215 = vector.load %arg8[%c1_85, %c0_86, %c0_87] : memref<2x128x256xbf16, #tpu.memory_space<vmem>>, vector<1x128x256xbf16>
    %216 = vector.shape_cast %215 : vector<1x128x256xbf16> to vector<128x256xbf16>
    %cst_88 = arith.constant dense<0.000000e+00> : vector<8x256xf32>
    %217 = tpu.matmul %214, %216, %cst_88 {dimension_numbers = #tpu.dot_dimension_numbers<[1], [0], [0], [1], [0, 0, 1, 1], [], []>} : vector<8x128xbf16>, vector<128x256xbf16>, vector<8x256xf32> -> vector<8x256xf32>
    %c1_89 = arith.constant 1 : index
    %c0_90 = arith.constant 0 : index
    %c0_91 = arith.constant 0 : index
    %218 = vector.load %arg9[%c1_89, %c0_90, %c0_91] : memref<2x1x256xf32, #tpu.memory_space<vmem>>, vector<1x1x256xf32>
    %219 = vector.shape_cast %218 : vector<1x1x256xf32> to vector<1x256xf32>
    %220 = vector.broadcast %219 : vector<1x256xf32> to vector<8x256xf32>
    %221 = arith.addf %217, %220 : vector<8x256xf32>
    %cst_92 = arith.constant 5.000000e-01 : f32
    %222 = vector.broadcast %cst_92 : f32 to vector<8x256xf32>
    %223 = arith.mulf %222, %221 : vector<8x256xf32>
    %cst_93 = arith.constant 4.471500e-02 : f32
    %224 = vector.broadcast %cst_93 : f32 to vector<8x256xf32>
    %225 = arith.mulf %224, %221 : vector<8x256xf32>
    %226 = arith.mulf %225, %221 : vector<8x256xf32>
    %227 = arith.mulf %226, %221 : vector<8x256xf32>
    %228 = arith.addf %221, %227 : vector<8x256xf32>
    %cst_94 = arith.constant 0.797884583 : f32
    %229 = vector.broadcast %cst_94 : f32 to vector<8x256xf32>
    %230 = arith.mulf %229, %228 : vector<8x256xf32>
    %231 = math.tanh %230 : vector<8x256xf32>
    %cst_95 = arith.constant 1.000000e+00 : f32
    %232 = vector.broadcast %cst_95 : f32 to vector<8x256xf32>
    %233 = arith.addf %232, %231 : vector<8x256xf32>
    %234 = arith.mulf %223, %233 : vector<8x256xf32>
    %235 = arith.truncf %234 : vector<8x256xf32> to vector<8x256xbf16>
    %c1_96 = arith.constant 1 : index
    %c0_97 = arith.constant 0 : index
    %c0_98 = arith.constant 0 : index
    %236 = vector.load %arg10[%c1_96, %c0_97, %c0_98] : memref<2x256x128xbf16, #tpu.memory_space<vmem>>, vector<1x256x128xbf16>
    %237 = vector.shape_cast %236 : vector<1x256x128xbf16> to vector<256x128xbf16>
    %cst_99 = arith.constant dense<0.000000e+00> : vector<8x128xf32>
    %238 = tpu.matmul %235, %237, %cst_99 {dimension_numbers = #tpu.dot_dimension_numbers<[1], [0], [0], [1], [0, 0, 1, 1], [], []>} : vector<8x256xbf16>, vector<256x128xbf16>, vector<8x128xf32> -> vector<8x128xf32>
    %239 = vector.broadcast %147 : vector<1x128xf32> to vector<8x128xf32>
    %240 = arith.addf %238, %239 : vector<8x128xf32>
    %241 = arith.addf %240, %213 : vector<8x128xf32>
    %cst_100 = arith.constant dense<0.000000e+00> : vector<8xf32>
    %242 = vector.multi_reduction <add>, %241, %cst_100 [1] : vector<8x128xf32> to vector<8xf32>
    %243 = vector.shape_cast %242 : vector<8xf32> to vector<8x1xf32>
    %cst_101 = arith.constant 1.280000e+02 : f32
    %244 = vector.broadcast %cst_101 : f32 to vector<8x1xf32>
    %245 = arith.divf %243, %244 : vector<8x1xf32>
    %246 = vector.broadcast %245 : vector<8x1xf32> to vector<8x128xf32>
    %247 = arith.subf %241, %246 : vector<8x128xf32>
    %248 = arith.mulf %247, %247 : vector<8x128xf32>
    %cst_102 = arith.constant dense<0.000000e+00> : vector<8xf32>
    %249 = vector.multi_reduction <add>, %248, %cst_102 [1] : vector<8x128xf32> to vector<8xf32>
    %250 = vector.shape_cast %249 : vector<8xf32> to vector<8x1xf32>
    %cst_103 = arith.constant 1.280000e+02 : f32
    %251 = vector.broadcast %cst_103 : f32 to vector<8x1xf32>
    %252 = arith.divf %250, %251 : vector<8x1xf32>
    %cst_104 = arith.constant 9.99999996E-13 : f32
    %253 = vector.broadcast %cst_104 : f32 to vector<8x1xf32>
    %254 = arith.addf %252, %253 : vector<8x1xf32>
    %255 = math.rsqrt %254 : vector<8x1xf32>
    %256 = vector.broadcast %255 : vector<8x1xf32> to vector<8x128xf32>
    %257 = arith.mulf %247, %256 : vector<8x128xf32>
    %258 = vector.broadcast %148 : vector<1x128xf32> to vector<8x128xf32>
    %259 = arith.mulf %257, %258 : vector<8x128xf32>
    %260 = vector.broadcast %149 : vector<1x128xf32> to vector<8x128xf32>
    %261 = arith.addf %259, %260 : vector<8x128xf32>
    %262 = vector.extract_strided_slice %261 {offsets = [0, 0], sizes = [1, 128], strides = [1, 1]} : vector<8x128xf32> to vector<1x128xf32>
    %263 = arith.truncf %262 : vector<1x128xf32> to vector<1x128xbf16>
    %c0_105 = arith.constant 0 : index
    %c0_106 = arith.constant 0 : index
    %264 = vector.load %arg11[%c0_105, %c0_106] : memref<128x128xbf16, #tpu.memory_space<vmem>>, vector<128x128xbf16>
    %cst_107 = arith.constant dense<0.000000e+00> : vector<1x128xf32>
    %265 = tpu.matmul %263, %264, %cst_107 {dimension_numbers = #tpu.dot_dimension_numbers<[1], [0], [0], [1], [0, 0, 1, 1], [], []>} : vector<1x128xbf16>, vector<128x128xbf16>, vector<1x128xf32> -> vector<1x128xf32>
    %266 = arith.addf %265, %2 : vector<1x128xf32>
    %267 = math.tanh %266 : vector<1x128xf32>
    %c0_108 = arith.constant 0 : index
    %c0_109 = arith.constant 0 : index
    %c0_110 = arith.constant 0 : index
    %268 = vector.load %arg3[%c0_108, %c0_109, %c0_110] : memref<1x1x128xf32, #tpu.memory_space<vmem>>, vector<1x1x128xf32>
    %269 = vector.shape_cast %268 : vector<1x1x128xf32> to vector<1x128xf32>
    %270 = arith.mulf %267, %269 : vector<1x128xf32>
    %c0_111 = arith.constant 0 : index
    %c0_112 = arith.constant 0 : index
    %c0_113 = arith.constant 0 : index
    %271 = vector.load %arg12[%c0_111, %c0_112, %c0_113] : memref<1x1x128xf32, #tpu.memory_space<vmem>>, vector<1x1x128xf32>
    %272 = vector.shape_cast %271 : vector<1x1x128xf32> to vector<1x128xf32>
    %273 = vector.shape_cast %270 : vector<1x128xf32> to vector<1x1x128xf32>
    tpu.vector_store %arg12[%c0_111, %c0_112, %c0_113], %273 {strides = array<i32>} : memref<1x1x128xf32, #tpu.memory_space<vmem>>, vector<1x1x128xf32>,
    return
  }
  func.func @transform_0(%arg0: i32) -> (i32, i32, i32) {
    %c0_i32 = arith.constant 0 : i32
    %c0_i32_0 = arith.constant 0 : i32
    %c0_i32_1 = arith.constant 0 : i32
    return %arg0, %c0_i32, %c0_i32_0 : i32, i32, i32
  }
  func.func @transform_1(%arg0: i32) -> (i32, i32, i32) {
    %c0_i32 = arith.constant 0 : i32
    %c0_i32_0 = arith.constant 0 : i32
    %c0_i32_1 = arith.constant 0 : i32
    return %arg0, %c0_i32, %c0_i32_0 : i32, i32, i32
  }
  func.func @transform_2(%arg0: i32) -> (i32, i32, i32) {
    %c0_i32 = arith.constant 0 : i32
    %c0_i32_0 = arith.constant 0 : i32
    %c0_i32_1 = arith.constant 0 : i32
    return %arg0, %c0_i32, %c0_i32_0 : i32, i32, i32
  }
  func.func @transform_3(%arg0: i32) -> (i32, i32) {
    %c0_i32 = arith.constant 0 : i32
    %c0_i32_0 = arith.constant 0 : i32
    %c0_i32_1 = arith.constant 0 : i32
    return %c0_i32, %c0_i32_0 : i32, i32
  }
  func.func @transform_4(%arg0: i32) -> (i32, i32, i32) {
    %c0_i32 = arith.constant 0 : i32
    %c0_i32_0 = arith.constant 0 : i32
    %c0_i32_1 = arith.constant 0 : i32
    %c0_i32_2 = arith.constant 0 : i32
    return %c0_i32, %c0_i32_0, %c0_i32_1 : i32, i32, i32
  }
  func.func @transform_5(%arg0: i32) -> (i32, i32, i32) {
    %c0_i32 = arith.constant 0 : i32
    %c0_i32_0 = arith.constant 0 : i32
    %c0_i32_1 = arith.constant 0 : i32
    %c0_i32_2 = arith.constant 0 : i32
    return %c0_i32, %c0_i32_0, %c0_i32_1 : i32, i32, i32
  }
  func.func @transform_6(%arg0: i32) -> (i32, i32, i32) {
    %c0_i32 = arith.constant 0 : i32
    %c0_i32_0 = arith.constant 0 : i32
    %c0_i32_1 = arith.constant 0 : i32
    %c0_i32_2 = arith.constant 0 : i32
    return %c0_i32, %c0_i32_0, %c0_i32_1 : i32, i32, i32
  }
  func.func @transform_7(%arg0: i32) -> (i32, i32, i32) {
    %c0_i32 = arith.constant 0 : i32
    %c0_i32_0 = arith.constant 0 : i32
    %c0_i32_1 = arith.constant 0 : i32
    %c0_i32_2 = arith.constant 0 : i32
    return %c0_i32, %c0_i32_0, %c0_i32_1 : i32, i32, i32
  }
  func.func @transform_8(%arg0: i32) -> (i32, i32, i32) {
    %c0_i32 = arith.constant 0 : i32
    %c0_i32_0 = arith.constant 0 : i32
    %c0_i32_1 = arith.constant 0 : i32
    %c0_i32_2 = arith.constant 0 : i32
    return %c0_i32, %c0_i32_0, %c0_i32_1 : i32, i32, i32
  }
  func.func @transform_9(%arg0: i32) -> (i32, i32, i32) {
    %c0_i32 = arith.constant 0 : i32
    %c0_i32_0 = arith.constant 0 : i32
    %c0_i32_1 = arith.constant 0 : i32
    %c0_i32_2 = arith.constant 0 : i32
    return %c0_i32, %c0_i32_0, %c0_i32_1 : i32, i32, i32
  }
  func.func @transform_10(%arg0: i32) -> (i32, i32) {
    %c0_i32 = arith.constant 0 : i32
    %c0_i32_0 = arith.constant 0 : i32
    %c0_i32_1 = arith.constant 0 : i32
    return %c0_i32, %c0_i32_0 : i32, i32
  }
  func.func @transform_11(%arg0: i32) -> (i32, i32, i32) {
    %c0_i32 = arith.constant 0 : i32
    %c0_i32_0 = arith.constant 0 : i32
    %c0_i32_1 = arith.constant 0 : i32
    return %arg0, %c0_i32, %c0_i32_0 : i32, i32, i32
  }
}

</mosaic_0001>

<llo_original>
// kernel: tpu_custom_call.1
$region0: #{tpu_custom_call.1}
  #allocation0 [shape = 'u32[]', space=smem, size = 0x4, offset = 0x4, fixed_abs, tag = 'smem constant byte address 0x4 - core index']
  #allocation1 [shape = 'u32[144,128]{1,0:T(1,128)}', space=vmem, size = 0x12000, scoped, tag = 'internal scratch']
  %s0 = inlined_call_operand.hbm [shape: f32[2,8,128], index: 0, kind: input, shape index: {}]
  %s1 = inlined_call_operand.hbm [shape: f32[2,1,8], index: 1, kind: input, shape index: {}]
  %s2 = inlined_call_operand.hbm [shape: f32[2,1,128], index: 2, kind: input, shape index: {}]
  %s3 = inlined_call_operand.hbm [shape: f32[15,128], index: 3, kind: input, shape index: {}]
  %s4 = inlined_call_operand.hbm [shape: bf16[2,128,384], index: 4, kind: input, shape index: {}]
  %s5 = inlined_call_operand.vmem [shape: f32[2,1,384], index: 5, kind: input, shape index: {}]
  %s6 = inlined_call_operand.hbm [shape: bf16[2,128,128], index: 6, kind: input, shape index: {}]
  %s7 = inlined_call_operand.hbm [shape: bf16[2,128,256], index: 7, kind: input, shape index: {}]
  %s8 = inlined_call_operand.vmem [shape: f32[2,1,256], index: 8, kind: input, shape index: {}]
  %s9 = inlined_call_operand.hbm [shape: bf16[2,256,128], index: 9, kind: input, shape index: {}]
  %s10 = inlined_call_operand.hbm [shape: bf16[128,128], index: 10, kind: input, shape index: {}]
  %s11 = inlined_call_operand.hbm [shape: f32[2,1,128], index: 11, kind: output, shape index: {}]
  %s12 = sld [smem:[#allocation0]]
  $region113: #{tpu_custom_call.1} parent=0
    _
  %s14 = ssub.s32 1, %s12
  %s15 = scalar_select 0, %s14, %s12
  $region1: #{tpu_custom_call.1} parent=0
    #allocation2 [shape = 'u8[8192]{0}', space=vmem, size = 0x2000, scoped, tag = 'input window, operand 0']
    #allocation3 [shape = 's32[2]{0}', space=sflag, size = 0x8, scoped, tag = 'scoped memory for tpu_custom_call.1']
    #allocation4 [shape = 's32[2]{0}', space=sflag, size = 0x8, scoped, tag = 'scoped memory for tpu_custom_call.1']
    #allocation5 [shape = 'u8[1024]{0}', space=vmem, size = 0x400, scoped, tag = 'input window, operand 1']
    #allocation6 [shape = 's32[2]{0}', space=sflag, size = 0x8, scoped, tag = 'scoped memory for tpu_custom_call.1']
    #allocation7 [shape = 'u8[1024]{0}', space=vmem, size = 0x400, scoped, tag = 'input window, operand 2']
    #allocation8 [shape = 'u8[8192]{0}', space=vmem, size = 0x2000, scoped, tag = 'input window, operand 3, single buffered']
    #allocation9 [shape = 's32[1]{0}', space=sflag, size = 0x4, scoped, tag = 'scoped memory for tpu_custom_call.1']
    #allocation10 [shape = 'u8[196608]{0}', space=vmem, size = 0x30000, scoped, tag = 'input window, operand 4, single buffered']
    #allocation11 [shape = 'u8[65536]{0}', space=vmem, size = 0x10000, scoped, tag = 'input window, operand 6, single buffered']
    #allocation12 [shape = 's32[1]{0}', space=sflag, size = 0x4, scoped, tag = 'scoped memory for tpu_custom_call.1']
    #allocation13 [shape = 'u8[131072]{0}', space=vmem, size = 0x20000, scoped, tag = 'input window, operand 7, single buffered']
    #allocation14 [shape = 'u8[131072]{0}', space=vmem, size = 0x20000, scoped, tag = 'input window, operand 9, single buffered']
    #allocation15 [shape = 's32[1]{0}', space=sflag, size = 0x4, scoped, tag = 'scoped memory for tpu_custom_call.1']
    #allocation16 [shape = 'u8[32768]{0}', space=vmem, size = 0x8000, scoped, tag = 'input window, operand 10, single buffered']
    #allocation17 [shape = 'u8[1024]{0}', space=vmem, size = 0x400, scoped, tag = 'output window, operand 0']
    %16 = vsyncpa [#allocation3], 0
    %s17 = scalar_lea.sflag [#allocation3], 1
    %18 = vsyncpa %s17, 0
    %19 = vsyncpa [#allocation6], 0
    %s20 = scalar_lea.sflag [#allocation6], 1
    %21 = vsyncpa %s20, 0
    %22 = vsyncpa [#allocation9], 0
    %23 = vsyncpa [#allocation12], 0
    %24 = vsyncpa [#allocation15], 0
    %25 = vsyncpa [#allocation4], 0
    %s26 = scalar_lea.sflag [#allocation4], 1
    %27 = vsyncpa %s26, 0
    loop: start=0, step=1, limit=4
    $region2: #{tpu_custom_call.1} parent=1 // loop_pre_header
      _
    $region3: #{tpu_custom_call.1} parent=1 // loop_header
      %s29 = sphi 0, %s33
      %p30 = scmp.ge.s32.totalorder %s29, 4
      %s39 = sphi 0, %s41
      %s42 = sphi 0, %s39
      %s43 = sphi 0, %s42
      %s59 = sphi 0, %s43
      %s65 = sphi 0, %s67
      %s68 = sphi 0, %s65
      %s69 = sphi 0, %s68
      %s85 = sphi 0, %s69
      %s91 = sphi 0, %s93
      %s94 = sphi 0, %s91
      %s95 = sphi 0, %s94
      %s111 = sphi 0, %s95
      %s115 = sphi 0, %s115
      %s117 = sphi 0, %s115
      %s118 = sphi 0, %s117
      %s132 = sphi 0, %s118
      %s136 = sphi 0, %s136
      %s138 = sphi 0, %s136
      %s139 = sphi 0, %s138
      %s153 = sphi 0, %s139
      %s157 = sphi 0, %s157
      %s159 = sphi 0, %s157
      %s160 = sphi 0, %s159
      %s174 = sphi 0, %s160
      %s178 = sphi 0, %s178
      %s180 = sphi 0, %s178
      %s181 = sphi 0, %s180
      %s195 = sphi 0, %s181
      %s199 = sphi 0, %s199
      %s201 = sphi 0, %s199
      %s202 = sphi 0, %s201
      %s216 = sphi 0, %s202
      %s220 = sphi 0, %s220
      %s222 = sphi 0, %s220
      %s223 = sphi 0, %s222
      %s237 = sphi 0, %s223
      %s241 = sphi 0, %s241
      %s243 = sphi 0, %s241
      %s244 = sphi 0, %s243
      %s258 = sphi 0, %s244
      %s262 = sphi 0, %s262
      %s264 = sphi 0, %s262
      %s265 = sphi 0, %s264
      %s279 = sphi 0, %s265
      %s285 = sphi 0, %s287
      %s288 = sphi 0, %s285
      %s289 = sphi 0, %s288
      %s305 = sphi 0, %s289
    $region4: #{tpu_custom_call.1} parent=1 // loop_header_branch
      %32 = sbr.rel (%p30) target = $region8
    $region5: #{tpu_custom_call.1} parent=1 // loop_body
      %s34 = ssub.s32 %s29, 1
      %s35 = ssub.s32 %s29, 2
      %s36 = sadd.s32 %s29, 1
      %s37 = ssub.s32 %s29, %s36
      %p38 = scmp.eq.s32.totalorder %s37, 0
      %s40 = sadd.s32 %s39, 1
      %s41 = scalar_select %p38, %s39, %s40
      %p44 = pneg %p38
      %p45 = scmp.eq.s32.totalorder %s29, 1
      %p46 = por %p44, %p45
      %p47 = scmp.ne.s32.totalorder %s39, %s42
      %p48 = scmp.eq.s32.totalorder %s29, 0
      %p49 = por %p47, %p48
      %p50 = scmp.ne.s32.totalorder %s39, %s42
      %p51 = scmp.eq.s32.totalorder %s34, 1
      %p52 = por %p50, %p51
      %p53 = scmp.ne.s32.totalorder %s42, %s43
      %p54 = scmp.eq.s32.totalorder %s34, 0
      %p55 = por %p53, %p54
      %p56 = scmp.ne.s32.totalorder %s42, %s43
      %p57 = scmp.eq.s32.totalorder %s35, 1
      %p58 = por %p56, %p57
      %p60 = scmp.ne.s32.totalorder %s43, %s59
      %p61 = scmp.eq.s32.totalorder %s35, 0
      %p62 = por %p60, %p61
      %s63 = ssub.s32 %s29, %s36
      %p64 = scmp.eq.s32.totalorder %s63, 0
      %s66 = sadd.s32 %s65, 1
      %s67 = scalar_select %p64, %s65, %s66
      %p70 = pneg %p64
      %p71 = scmp.eq.s32.totalorder %s29, 1
      %p72 = por %p70, %p71
      %p73 = scmp.ne.s32.totalorder %s65, %s68
      %p74 = scmp.eq.s32.totalorder %s29, 0
      %p75 = por %p73, %p74
      %p76 = scmp.ne.s32.totalorder %s65, %s68
      %p77 = scmp.eq.s32.totalorder %s34, 1
      %p78 = por %p76, %p77
      %p79 = scmp.ne.s32.totalorder %s68, %s69
      %p80 = scmp.eq.s32.totalorder %s34, 0
      %p81 = por %p79, %p80
      %p82 = scmp.ne.s32.totalorder %s68, %s69
      %p83 = scmp.eq.s32.totalorder %s35, 1
      %p84 = por %p82, %p83
      %p86 = scmp.ne.s32.totalorder %s69, %s85
      %p87 = scmp.eq.s32.totalorder %s35, 0
      %p88 = por %p86, %p87
      %s89 = ssub.s32 %s29, %s36
      %p90 = scmp.eq.s32.totalorder %s89, 0
      %s92 = sadd.s32 %s91, 1
      %s93 = scalar_select %p90, %s91, %s92
      %p96 = pneg %p90
      %p97 = scmp.eq.s32.totalorder %s29, 1
      %p98 = por %p96, %p97
      %p99 = scmp.ne.s32.totalorder %s91, %s94
      %p100 = scmp.eq.s32.totalorder %s29, 0
      %p101 = por %p99, %p100
      %p102 = scmp.ne.s32.totalorder %s91, %s94
      %p103 = scmp.eq.s32.totalorder %s34, 1
      %p104 = por %p102, %p103
      %p105 = scmp.ne.s32.totalorder %s94, %s95
      %p106 = scmp.eq.s32.totalorder %s34, 0
      %p107 = por %p105, %p106
      %p108 = scmp.ne.s32.totalorder %s94, %s95
      %p109 = scmp.eq.s32.totalorder %s35, 1
      %p110 = por %p108, %p109
      %p112 = scmp.ne.s32.totalorder %s95, %s111
      %p113 = scmp.eq.s32.totalorder %s35, 0
      %p114 = por %p112, %p113
      %s116 = sadd.s32 %s115, 1
      %p119 = scmp.eq.s32.totalorder %s29, 1
      %p120 = scmp.ne.s32.totalorder %s115, %s117
      %p121 = scmp.eq.s32.totalorder %s29, 0
      %p122 = por %p120, %p121
      %p123 = scmp.ne.s32.totalorder %s115, %s117
      %p124 = scmp.eq.s32.totalorder %s34, 1
      %p125 = por %p123, %p124
      %p126 = scmp.ne.s32.totalorder %s117, %s118
      %p127 = scmp.eq.s32.totalorder %s34, 0
      %p128 = por %p126, %p127
      %p129 = scmp.ne.s32.totalorder %s117, %s118
      %p130 = scmp.eq.s32.totalorder %s35, 1
      %p131 = por %p129, %p130
      %p133 = scmp.ne.s32.totalorder %s118, %s132
      %p134 = scmp.eq.s32.totalorder %s35, 0
      %p135 = por %p133, %p134
      %s137 = sadd.s32 %s136, 1
      %p140 = scmp.eq.s32.totalorder %s29, 1
      %p141 = scmp.ne.s32.totalorder %s136, %s138
      %p142 = scmp.eq.s32.totalorder %s29, 0
      %p143 = por %p141, %p142
      %p144 = scmp.ne.s32.totalorder %s136, %s138
      %p145 = scmp.eq.s32.totalorder %s34, 1
      %p146 = por %p144, %p145
      %p147 = scmp.ne.s32.totalorder %s138, %s139
      %p148 = scmp.eq.s32.totalorder %s34, 0
      %p149 = por %p147, %p148
      %p150 = scmp.ne.s32.totalorder %s138, %s139
      %p151 = scmp.eq.s32.totalorder %s35, 1
      %p152 = por %p150, %p151
      %p154 = scmp.ne.s32.totalorder %s139, %s153
      %p155 = scmp.eq.s32.totalorder %s35, 0
      %p156 = por %p154, %p155
      %s158 = sadd.s32 %s157, 1
      %p161 = scmp.eq.s32.totalorder %s29, 1
      %p162 = scmp.ne.s32.totalorder %s157, %s159
      %p163 = scmp.eq.s32.totalorder %s29, 0
      %p164 = por %p162, %p163
      %p165 = scmp.ne.s32.totalorder %s157, %s159
      %p166 = scmp.eq.s32.totalorder %s34, 1
      %p167 = por %p165, %p166
      %p168 = scmp.ne.s32.totalorder %s159, %s160
      %p169 = scmp.eq.s32.totalorder %s34, 0
      %p170 = por %p168, %p169
      %p171 = scmp.ne.s32.totalorder %s159, %s160
      %p172 = scmp.eq.s32.totalorder %s35, 1
      %p173 = por %p171, %p172
      %p175 = scmp.ne.s32.totalorder %s160, %s174
      %p176 = scmp.eq.s32.totalorder %s35, 0
      %p177 = por %p175, %p176
      %s179 = sadd.s32 %s178, 1
      %p182 = scmp.eq.s32.totalorder %s29, 1
      %p183 = scmp.ne.s32.totalorder %s178, %s180
      %p184 = scmp.eq.s32.totalorder %s29, 0
      %p185 = por %p183, %p184
      %p186 = scmp.ne.s32.totalorder %s178, %s180
      %p187 = scmp.eq.s32.totalorder %s34, 1
      %p188 = por %p186, %p187
      %p189 = scmp.ne.s32.totalorder %s180, %s181
      %p190 = scmp.eq.s32.totalorder %s34, 0
      %p191 = por %p189, %p190
      %p192 = scmp.ne.s32.totalorder %s180, %s181
      %p193 = scmp.eq.s32.totalorder %s35, 1
      %p194 = por %p192, %p193
      %p196 = scmp.ne.s32.totalorder %s181, %s195
      %p197 = scmp.eq.s32.totalorder %s35, 0
      %p198 = por %p196, %p197
      %s200 = sadd.s32 %s199, 1
      %p203 = scmp.eq.s32.totalorder %s29, 1
      %p204 = scmp.ne.s32.totalorder %s199, %s201
      %p205 = scmp.eq.s32.totalorder %s29, 0
      %p206 = por %p204, %p205
      %p207 = scmp.ne.s32.totalorder %s199, %s201
      %p208 = scmp.eq.s32.totalorder %s34, 1
      %p209 = por %p207, %p208
      %p210 = scmp.ne.s32.totalorder %s201, %s202
      %p211 = scmp.eq.s32.totalorder %s34, 0
      %p212 = por %p210, %p211
      %p213 = scmp.ne.s32.totalorder %s201, %s202
      %p214 = scmp.eq.s32.totalorder %s35, 1
      %p215 = por %p213, %p214
      %p217 = scmp.ne.s32.totalorder %s202, %s216
      %p218 = scmp.eq.s32.totalorder %s35, 0
      %p219 = por %p217, %p218
      %s221 = sadd.s32 %s220, 1
      %p224 = scmp.eq.s32.totalorder %s29, 1
      %p225 = scmp.ne.s32.totalorder %s220, %s222
      %p226 = scmp.eq.s32.totalorder %s29, 0
      %p227 = por %p225, %p226
      %p228 = scmp.ne.s32.totalorder %s220, %s222
      %p229 = scmp.eq.s32.totalorder %s34, 1
      %p230 = por %p228, %p229
      %p231 = scmp.ne.s32.totalorder %s222, %s223
      %p232 = scmp.eq.s32.totalorder %s34, 0
      %p233 = por %p231, %p232
      %p234 = scmp.ne.s32.totalorder %s222, %s223
      %p235 = scmp.eq.s32.totalorder %s35, 1
      %p236 = por %p234, %p235
      %p238 = scmp.ne.s32.totalorder %s223, %s237
      %p239 = scmp.eq.s32.totalorder %s35, 0
      %p240 = por %p238, %p239
      %s242 = sadd.s32 %s241, 1
      %p245 = scmp.eq.s32.totalorder %s29, 1
      %p246 = scmp.ne.s32.totalorder %s241, %s243
      %p247 = scmp.eq.s32.totalorder %s29, 0
      %p248 = por %p246, %p247
      %p249 = scmp.ne.s32.totalorder %s241, %s243
      %p250 = scmp.eq.s32.totalorder %s34, 1
      %p251 = por %p249, %p250
      %p252 = scmp.ne.s32.totalorder %s243, %s244
      %p253 = scmp.eq.s32.totalorder %s34, 0
      %p254 = por %p252, %p253
      %p255 = scmp.ne.s32.totalorder %s243, %s244
      %p256 = scmp.eq.s32.totalorder %s35, 1
      %p257 = por %p255, %p256
      %p259 = scmp.ne.s32.totalorder %s244, %s258
      %p260 = scmp.eq.s32.totalorder %s35, 0
      %p261 = por %p259, %p260
      %s263 = sadd.s32 %s262, 1
      %p266 = scmp.eq.s32.totalorder %s29, 1
      %p267 = scmp.ne.s32.totalorder %s262, %s264
      %p268 = scmp.eq.s32.totalorder %s29, 0
      %p269 = por %p267, %p268
      %p270 = scmp.ne.s32.totalorder %s262, %s264
      %p271 = scmp.eq.s32.totalorder %s34, 1
      %p272 = por %p270, %p271
      %p273 = scmp.ne.s32.totalorder %s264, %s265
      %p274 = scmp.eq.s32.totalorder %s34, 0
      %p275 = por %p273, %p274
      %p276 = scmp.ne.s32.totalorder %s264, %s265
      %p277 = scmp.eq.s32.totalorder %s35, 1
      %p278 = por %p276, %p277
      %p280 = scmp.ne.s32.totalorder %s265, %s279
      %p281 = scmp.eq.s32.totalorder %s35, 0
      %p282 = por %p280, %p281
      %s283 = ssub.s32 %s29, %s36
      %p284 = scmp.eq.s32.totalorder %s283, 0
      %s286 = sadd.s32 %s285, 1
      %s287 = scalar_select %p284, %s285, %s286
      %p290 = pneg %p284
      %p291 = scmp.eq.s32.totalorder %s29, 1
      %p292 = por %p290, %p291
      %p293 = scmp.ne.s32.totalorder %s285, %s288
      %p294 = scmp.eq.s32.totalorder %s29, 0
      %p295 = por %p293, %p294
      %p296 = scmp.ne.s32.totalorder %s285, %s288
      %p297 = scmp.eq.s32.totalorder %s34, 1
      %p298 = por %p296, %p297
      %p299 = scmp.ne.s32.totalorder %s288, %s289
      %p300 = scmp.eq.s32.totalorder %s34, 0
      %p301 = por %p299, %p300
      %p302 = scmp.ne.s32.totalorder %s288, %s289
      %p303 = scmp.eq.s32.totalorder %s35, 1
      %p304 = por %p302, %p303
      %p306 = scmp.ne.s32.totalorder %s289, %s305
      %p307 = scmp.eq.s32.totalorder %s35, 0
      %p308 = por %p306, %p307
      %p309 = scmp.le.s32.totalorder 1, %s29
      %p310 = scmp.lt.s32.totalorder %s29, 3
      %p311 = pnand %p309, %p310
      %p312 = pneg %p311
      // Predicated region
      $region9: #{tpu_custom_call.1} parent=5 // pred_check
        _
      $region10: #{tpu_custom_call.1} parent=5 // pred_check_branch
        %314 = sbr.rel (%p311) target = $region12
      $region11: #{tpu_custom_call.1} parent=5 // pred_region
        %s315 = ssub.s32 %s29, 1
        // Predicated region
        $region13: #{tpu_custom_call.1} parent=11 // pred_check
          %p316 = pneg %p128
        $region14: #{tpu_custom_call.1} parent=11 // pred_check_branch
          %318 = sbr.rel (%p316) target = $region16
        $region15: #{tpu_custom_call.1} parent=11 // pred_region
          %s320 = ssub.s32 256, 256
          %321 = vsyncadd [#allocation9], %s320
          %s322 = sshll.u32 [#allocation8], 4
          %s323 = int_to_ptr.vmem [resolvable:$true] %s322
          %328 = dma.hbm_to_vmem [thread:$0]  %s3, 256, %s323, [#allocation9], 128, 128, 8
        $region16: #{tpu_custom_call.1} parent=11 // pred_fallthru
          _
        // Predicated region
        $region17: #{tpu_custom_call.1} parent=11 // pred_check
          %p329 = pneg %p149
        $region18: #{tpu_custom_call.1} parent=11 // pred_check_branch
          %331 = sbr.rel (%p329) target = $region20
        $region19: #{tpu_custom_call.1} parent=11 // pred_region
          %s333 = ssub.s32 6144, 6144
          %334 = vsyncadd [#allocation9], %s333
          %s335 = sshll.u32 [#allocation10], 4
          %s336 = int_to_ptr.vmem [resolvable:$true] %s335
          %341 = dma.hbm_to_vmem [thread:$0]  %s4, 6144, %s336, [#allocation9], 192, 192, 12
        $region20: #{tpu_custom_call.1} parent=11 // pred_fallthru
          _
        // Predicated region
        $region21: #{tpu_custom_call.1} parent=11 // pred_check
          %p342 = pneg %p170
        $region22: #{tpu_custom_call.1} parent=11 // pred_check_branch
          %344 = sbr.rel (%p342) target = $region24
        $region23: #{tpu_custom_call.1} parent=11 // pred_region
          _
        $region24: #{tpu_custom_call.1} parent=11 // pred_fallthru
          _
        // Predicated region
        $region25: #{tpu_custom_call.1} parent=11 // pred_check
          %p345 = pneg %p191
        $region26: #{tpu_custom_call.1} parent=11 // pred_check_branch
          %347 = sbr.rel (%p345) target = $region28
        $region27: #{tpu_custom_call.1} parent=11 // pred_region
          %s349 = ssub.s32 2048, 2048
          %350 = vsyncadd [#allocation12], %s349
          %s351 = sshll.u32 [#allocation11], 4
          %s352 = int_to_ptr.vmem [resolvable:$true] %s351
          %357 = dma.hbm_to_vmem [thread:$0]  %s6, 2048, %s352, [#allocation12], 64, 64, 4
        $region28: #{tpu_custom_call.1} parent=11 // pred_fallthru
          _
        // Predicated region
        $region29: #{tpu_custom_call.1} parent=11 // pred_check
          %p358 = pneg %p212
        $region30: #{tpu_custom_call.1} parent=11 // pred_check_branch
          %360 = sbr.rel (%p358) target = $region32
        $region31: #{tpu_custom_call.1} parent=11 // pred_region
          %s362 = ssub.s32 4096, 4096
          %363 = vsyncadd [#allocation12], %s362
          %s364 = sshll.u32 [#allocation13], 4
          %s365 = int_to_ptr.vmem [resolvable:$true] %s364
          %370 = dma.hbm_to_vmem [thread:$0]  %s7, 4096, %s365, [#allocation12], 128, 128, 8
        $region32: #{tpu_custom_call.1} parent=11 // pred_fallthru
          _
        // Predicated region
        $region33: #{tpu_custom_call.1} parent=11 // pred_check
          %p371 = pneg %p233
        $region34: #{tpu_custom_call.1} parent=11 // pred_check_branch
          %373 = sbr.rel (%p371) target = $region36
        $region35: #{tpu_custom_call.1} parent=11 // pred_region
          _
        $region36: #{tpu_custom_call.1} parent=11 // pred_fallthru
          _
        // Predicated region
        $region37: #{tpu_custom_call.1} parent=11 // pred_check
          %p374 = pneg %p254
        $region38: #{tpu_custom_call.1} parent=11 // pred_check_branch
          %376 = sbr.rel (%p374) target = $region40
        $region39: #{tpu_custom_call.1} parent=11 // pred_region
          %s378 = ssub.s32 4096, 4096
          %379 = vsyncadd [#allocation15], %s378
          %s380 = sshll.u32 [#allocation14], 4
          %s381 = int_to_ptr.vmem [resolvable:$true] %s380
          %386 = dma.hbm_to_vmem [thread:$0]  %s9, 4096, %s381, [#allocation15], 64, 64, 4
        $region40: #{tpu_custom_call.1} parent=11 // pred_fallthru
          _
        // Predicated region
        $region41: #{tpu_custom_call.1} parent=11 // pred_check
          %p387 = pneg %p275
        $region42: #{tpu_custom_call.1} parent=11 // pred_check_branch
          %389 = sbr.rel (%p387) target = $region44
        $region43: #{tpu_custom_call.1} parent=11 // pred_region
          %s391 = ssub.s32 1024, 1024
          %392 = vsyncadd [#allocation15], %s391
          %s393 = sshll.u32 [#allocation16], 4
          %s394 = int_to_ptr.vmem [resolvable:$true] %s393
          %399 = dma.hbm_to_vmem [thread:$0]  %s10, 1024, %s394, [#allocation15], 64, 64, 4
        $region44: #{tpu_custom_call.1} parent=11 // pred_fallthru
          _
      $region12: #{tpu_custom_call.1} parent=5 // pred_fallthru
        _
      %p400 = scmp.lt.s32.totalorder %s29, 2
      // Predicated region
      $region45: #{tpu_custom_call.1} parent=5 // pred_check
        %p401 = pneg %p400
      $region46: #{tpu_custom_call.1} parent=5 // pred_check_branch
        %403 = sbr.rel (%p401) target = $region48
      $region47: #{tpu_custom_call.1} parent=5 // pred_region
        // Predicated region
        $region49: #{tpu_custom_call.1} parent=47 // pred_check
          %p404 = pneg %p49
        $region50: #{tpu_custom_call.1} parent=47 // pred_check_branch
          %406 = sbr.rel (%p404) target = $region52
        $region51: #{tpu_custom_call.1} parent=47 // pred_region
          %s407 = sand.u32 %s39, 1
          %s408 = scalar_lea.sflag [#allocation3], %s407
          %s409 = sand.u32 %s39, 1
          %s410 = smul.addr %s409, 8
          %s411 = scalar_lea.vmem [#allocation2], %s410
          %s413 = ssub.s32 128, 128
          %414 = vsyncadd %s408, %s413
          %s415 = smul.addr %s29, 128
          %s416 = scalar_lea.hbm %s0, %s415
          %s418 = sshll.u32 %s411, 4
          %s419 = int_to_ptr.vmem [resolvable:$true] %s418
          %421 = dma.hbm_to_vmem [thread:$0]  %s416, 128, %s419, %s408
        $region52: #{tpu_custom_call.1} parent=47 // pred_fallthru
          _
        // Predicated region
        $region53: #{tpu_custom_call.1} parent=47 // pred_check
          %p422 = pneg %p75
        $region54: #{tpu_custom_call.1} parent=47 // pred_check_branch
          %424 = sbr.rel (%p422) target = $region56
        $region55: #{tpu_custom_call.1} parent=47 // pred_region
          %s425 = sand.u32 %s29, 1
          %s426 = scalar_lea.sflag [#allocation6], %s425
          %s427 = sand.u32 %s65, 1
          %s428 = scalar_lea.vmem [#allocation5], %s427
          %s430 = ssub.s32 16, 16
          %431 = vsyncadd %s426, %s430
          %s432 = smul.addr %s29, 16
          %s433 = scalar_lea.hbm %s1, %s432
          %s435 = sshll.u32 %s428, 4
          %s436 = int_to_ptr.vmem [resolvable:$true] %s435
          %438 = dma.hbm_to_vmem [thread:$0]  %s433, 16, %s436, %s426
        $region56: #{tpu_custom_call.1} parent=47 // pred_fallthru
          _
        // Predicated region
        $region57: #{tpu_custom_call.1} parent=47 // pred_check
          %p439 = pneg %p101
        $region58: #{tpu_custom_call.1} parent=47 // pred_check_branch
          %441 = sbr.rel (%p439) target = $region60
        $region59: #{tpu_custom_call.1} parent=47 // pred_region
          %s442 = sand.u32 %s29, 1
          %s443 = scalar_lea.sflag [#allocation6], %s442
          %s444 = sand.u32 %s91, 1
          %s445 = scalar_lea.vmem [#allocation7], %s444
          %s447 = ssub.s32 16, 16
          %448 = vsyncadd %s443, %s447
          %s449 = smul.addr %s29, 16
          %s450 = scalar_lea.hbm %s2, %s449
          %s452 = sshll.u32 %s445, 4
          %s453 = int_to_ptr.vmem [resolvable:$true] %s452
          %455 = dma.hbm_to_vmem [thread:$0]  %s450, 16, %s453, %s443
        $region60: #{tpu_custom_call.1} parent=47 // pred_fallthru
          _
      $region48: #{tpu_custom_call.1} parent=5 // pred_fallthru
        _
      %p456 = scmp.le.s32.totalorder 1, %s29
      %p457 = scmp.lt.s32.totalorder %s29, 3
      %p458 = pnand %p456, %p457
      %p459 = pneg %p458
      // Predicated region
      $region61: #{tpu_custom_call.1} parent=5 // pred_check
        _
      $region62: #{tpu_custom_call.1} parent=5 // pred_check_branch
        %461 = sbr.rel (%p458) target = $region64
      $region63: #{tpu_custom_call.1} parent=5 // pred_region
        %s462 = ssub.s32 %s29, 1
        %s463 = sand.u32 %s42, 1
        %s464 = scalar_lea.sflag [#allocation3], %s463
        %s465 = sand.u32 %s42, 1
        %s466 = smul.addr %s465, 8
        %s467 = scalar_lea.vmem [#allocation2], %s466
        // Predicated region
        $region65: #{tpu_custom_call.1} parent=63 // pred_check
          %p468 = pneg %p55
        $region66: #{tpu_custom_call.1} parent=63 // pred_check_branch
          %470 = sbr.rel (%p468) target = $region68
        $region67: #{tpu_custom_call.1} parent=63 // pred_region
          %471 = dma.done %s464, 128
        $region68: #{tpu_custom_call.1} parent=63 // pred_fallthru
          _
        %s472 = sand.u32 %s34, 1
        %s473 = scalar_lea.sflag [#allocation6], %s472
        %s474 = sand.u32 %s68, 1
        %s475 = scalar_lea.vmem [#allocation5], %s474
        // Predicated region
        $region69: #{tpu_custom_call.1} parent=63 // pred_check
          %p476 = pneg %p81
        $region70: #{tpu_custom_call.1} parent=63 // pred_check_branch
          %478 = sbr.rel (%p476) target = $region72
        $region71: #{tpu_custom_call.1} parent=63 // pred_region
          %479 = dma.done %s473, 16
        $region72: #{tpu_custom_call.1} parent=63 // pred_fallthru
          _
        %s480 = sand.u32 %s34, 1
        %s481 = scalar_lea.sflag [#allocation6], %s480
        %s482 = sand.u32 %s94, 1
        %s483 = scalar_lea.vmem [#allocation7], %s482
        // Predicated region
        $region73: #{tpu_custom_call.1} parent=63 // pred_check
          %p484 = pneg %p107
        $region74: #{tpu_custom_call.1} parent=63 // pred_check_branch
          %486 = sbr.rel (%p484) target = $region76
        $region75: #{tpu_custom_call.1} parent=63 // pred_region
          %487 = dma.done %s481, 16
        $region76: #{tpu_custom_call.1} parent=63 // pred_fallthru
          _
        // Predicated region
        $region77: #{tpu_custom_call.1} parent=63 // pred_check
          %p488 = pneg %p128
        $region78: #{tpu_custom_call.1} parent=63 // pred_check_branch
          %490 = sbr.rel (%p488) target = $region80
        $region79: #{tpu_custom_call.1} parent=63 // pred_region
          %491 = dma.done [#allocation9], 256
        $region80: #{tpu_custom_call.1} parent=63 // pred_fallthru
          _
        // Predicated region
        $region81: #{tpu_custom_call.1} parent=63 // pred_check
          %p492 = pneg %p149
        $region82: #{tpu_custom_call.1} parent=63 // pred_check_branch
          %494 = sbr.rel (%p492) target = $region84
        $region83: #{tpu_custom_call.1} parent=63 // pred_region
          %495 = dma.done [#allocation9], 6144
        $region84: #{tpu_custom_call.1} parent=63 // pred_fallthru
          _
        // Predicated region
        $region85: #{tpu_custom_call.1} parent=63 // pred_check
          %p496 = pneg %p191
        $region86: #{tpu_custom_call.1} parent=63 // pred_check_branch
          %498 = sbr.rel (%p496) target = $region88
        $region87: #{tpu_custom_call.1} parent=63 // pred_region
          %499 = dma.done [#allocation12], 2048
        $region88: #{tpu_custom_call.1} parent=63 // pred_fallthru
          _
        // Predicated region
        $region89: #{tpu_custom_call.1} parent=63 // pred_check
          %p500 = pneg %p212
        $region90: #{tpu_custom_call.1} parent=63 // pred_check_branch
          %502 = sbr.rel (%p500) target = $region92
        $region91: #{tpu_custom_call.1} parent=63 // pred_region
          %503 = dma.done [#allocation12], 4096
        $region92: #{tpu_custom_call.1} parent=63 // pred_fallthru
          _
        // Predicated region
        $region93: #{tpu_custom_call.1} parent=63 // pred_check
          %p504 = pneg %p254
        $region94: #{tpu_custom_call.1} parent=63 // pred_check_branch
          %506 = sbr.rel (%p504) target = $region96
        $region95: #{tpu_custom_call.1} parent=63 // pred_region
          %507 = dma.done [#allocation15], 4096
        $region96: #{tpu_custom_call.1} parent=63 // pred_fallthru
          _
        // Predicated region
        $region97: #{tpu_custom_call.1} parent=63 // pred_check
          %p508 = pneg %p275
        $region98: #{tpu_custom_call.1} parent=63 // pred_check_branch
          %510 = sbr.rel (%p508) target = $region100
        $region99: #{tpu_custom_call.1} parent=63 // pred_region
          %511 = dma.done [#allocation15], 1024
        $region100: #{tpu_custom_call.1} parent=63 // pred_fallthru
          _
        %s512 = sand.u32 %s42, 1
        %s513 = scalar_lea.sflag [#allocation3], %s512
        %s514 = sand.u32 %s42, 1
        %s515 = smul.addr %s514, 8
        %s516 = scalar_lea.vmem [#allocation2], %s515
        %p517 = pneg %p55
        %p518 = pneg %p52
        %s519 = sand.u32 %s34, 1
        %s520 = scalar_lea.sflag [#allocation6], %s519
        %s521 = sand.u32 %s68, 1
        %s522 = scalar_lea.vmem [#allocation5], %s521
        %p523 = pneg %p81
        %p524 = pneg %p78
        %s525 = sand.u32 %s34, 1
        %s526 = scalar_lea.sflag [#allocation6], %s525
        %s527 = sand.u32 %s94, 1
        %s528 = scalar_lea.vmem [#allocation7], %s527
        %p529 = pneg %p107
        %p530 = pneg %p104
        %p531 = pneg %p128
        %p532 = pneg %p125
        %p533 = pneg %p149
        %p534 = pneg %p146
        %p535 = pneg %p170
        %p536 = pneg %p167
        %p537 = pneg %p191
        %p538 = pneg %p188
        %p539 = pneg %p212
        %p540 = pneg %p209
        %p541 = pneg %p233
        %p542 = pneg %p230
        %p543 = pneg %p254
        %p544 = pneg %p251
        %p545 = pneg %p275
        %p546 = pneg %p272
        %p547 = pneg %p301
        %p548 = pneg %p298
        %s549 = sand.u32 %s288, 1
        %s550 = scalar_lea.sflag [#allocation4], %s549
        %s551 = sand.u32 %s288, 1
        %s552 = scalar_lea.vmem [#allocation17], %s551
        %v554 = vld [vmem:[#allocation8] sm:$0x1]
        %v555 = vld [vmem:[#allocation8 + $0x1] sm:$0x1]
        %v556 = vld [vmem:[#allocation8 + $0x2] sm:$0x1]
        %v557 = vld [vmem:[%s467] sm:$0xff]
        %558 = vadd.xlane.f32.xlu0 %v557
        %v559 = vpop.xlane.xlu0 %558
        %v560 = vrcp.pop 128.0
        %v561 = vmul.f32 %v559, %v560
        %v562 = vsub.f32 %v557, %v561
        %v563 = vmul.f32 %v562, %v562
        %564 = vadd.xlane.f32.xlu0 %v563
        %v565 = vpop.xlane.xlu0 %564
        %v566 = vmul.f32 %v565, %v560
        %v567 = vadd.f32 %v566, 1e-12
        %v568 = vrsqrt.pop %v567
        %v569 = vmul.f32 %v562, %v568
        %v570 = vlaneseq
        %v571 = vshrl.u32 %v570, 7
        %v572 = vsub.s32 0, %v571
        %v573 = vrot.slane %v554, %v572
        %v574 = vmul.f32 %v569, %v573
        %v575 = vlaneseq
        %v576 = vshrl.u32 %v575, 7
        %v577 = vsub.s32 0, %v576
        %v578 = vrot.slane %v555, %v577
        %v579 = vadd.f32 %v574, %v578
        %v580 = vld [vmem:[%s475] sm:$0x1]
        %v581 = vld [vmem:[#allocation8 + $0x3] sm:$0x1]
        %v582 = vld [vmem:[#allocation8 + $0x4] sm:$0x1]
        %v583 = vld [vmem:[#allocation8 + $0x5] sm:$0x1]
        %v584 = vld [vmem:[#allocation8 + $0x6] sm:$0x1]
        %v585 = vld [vmem:[#allocation8 + $0x7] sm:$0x1]
        %v586 = vld [vmem:[#allocation8 + $0x8] sm:$0x1]
        %v587 = vpack.c.bf16 %v579, %v579
        %v588 = vld [vmem:[#allocation10] sm:$0xff]
        %v589 = vld [vmem:[#allocation10 + $0x8] sm:$0xf]
        %v590 = vld [vmem:[#allocation10 + $0xc] sm:$0xff]
        %v591 = vld [vmem:[#allocation10 + $0x14] sm:$0xf]
        %v592 = vld [vmem:[#allocation10 + $0x18] sm:$0xff]
        %v593 = vld [vmem:[#allocation10 + $0x20] sm:$0xf]
        %v594 = vld [vmem:[#allocation10 + $0x24] sm:$0xff]
        %v595 = vld [vmem:[#allocation10 + $0x2c] sm:$0xf]
        %v596 = vld [vmem:[#allocation10 + $0x30] sm:$0xff]
        %v597 = vld [vmem:[#allocation10 + $0x38] sm:$0xf]
        %v598 = vld [vmem:[#allocation10 + $0x3c] sm:$0xff]
        %v599 = vld [vmem:[#allocation10 + $0x44] sm:$0xf]
        %v600 = vld [vmem:[#allocation10 + $0x48] sm:$0xff]
        %v601 = vld [vmem:[#allocation10 + $0x50] sm:$0xf]
        %v602 = vld [vmem:[#allocation10 + $0x54] sm:$0xff]
        %v603 = vld [vmem:[#allocation10 + $0x5c] sm:$0xf]
        %v604 = vld [vmem:[#allocation10 + $0x60] sm:$0xff]
        %v605 = vld [vmem:[#allocation10 + $0x68] sm:$0xf]
        %v606 = vld [vmem:[#allocation10 + $0x6c] sm:$0xff]
        %v607 = vld [vmem:[#allocation10 + $0x74] sm:$0xf]
        %v608 = vld [vmem:[#allocation10 + $0x78] sm:$0xff]
        %v609 = vld [vmem:[#allocation10 + $0x80] sm:$0xf]
        %v610 = vld [vmem:[#allocation10 + $0x84] sm:$0xff]
        %v611 = vld [vmem:[#allocation10 + $0x8c] sm:$0xf]
        %v612 = vld [vmem:[#allocation10 + $0x90] sm:$0xff]
        %v613 = vld [vmem:[#allocation10 + $0x98] sm:$0xf]
        %v614 = vld [vmem:[#allocation10 + $0x9c] sm:$0xff]
        %v615 = vld [vmem:[#allocation10 + $0xa4] sm:$0xf]
        %v616 = vld [vmem:[#allocation10 + $0xa8] sm:$0xff]
        %v617 = vld [vmem:[#allocation10 + $0xb0] sm:$0xf]
        %v618 = vld [vmem:[#allocation10 + $0xb4] sm:$0xff]
        %v619 = vld [vmem:[#allocation10 + $0xbc] sm:$0xf]
        %v620 = vld [vmem:[%s5] sm:$0x7]
        %v622 = vlaneseq
        %v623 = vshrl.u32 %v622, 7
        %v624 = vsub.s32 0, %v623
        %v625 = vrot.slane %v620, %v624
        %v626 = vlaneseq
        %v627 = vshrl.u32 %v626, 7
        %v628 = vsub.s32 1, %v627
        %v629 = vrot.slane %v620, %v628
        %v630 = vlaneseq
        %v631 = vshrl.u32 %v630, 7
        %v632 = vsub.s32 2, %v631
        %v633 = vrot.slane %v620, %v632
        %v669 = vunpack.c.l.b16 %v588
        %v670 = vunpack.c.h.b16 %v588
        %v671 = vunpack.c.l.b16 %v589
        %v672 = vunpack.c.l.b16 %v590
        %v673 = vunpack.c.h.b16 %v590
        %v674 = vunpack.c.l.b16 %v591
        %v675 = vunpack.c.l.b16 %v592
        %v676 = vunpack.c.h.b16 %v592
        %v677 = vunpack.c.l.b16 %v593
        %v678 = vunpack.c.l.b16 %v594
        %v679 = vunpack.c.h.b16 %v594
        %v680 = vunpack.c.l.b16 %v595
        %v681 = vunpack.c.l.b16 %v596
        %v682 = vunpack.c.h.b16 %v596
        %v683 = vunpack.c.l.b16 %v597
        %v684 = vunpack.c.l.b16 %v598
        %v685 = vunpack.c.h.b16 %v598
        %v686 = vunpack.c.l.b16 %v599
        %v687 = vunpack.c.l.b16 %v600
        %v688 = vunpack.c.h.b16 %v600
        %v689 = vunpack.c.l.b16 %v601
        %v690 = vunpack.c.l.b16 %v602
        %v691 = vunpack.c.h.b16 %v602
        %v692 = vunpack.c.l.b16 %v603
        %v693 = vunpack.c.l.b16 %v604
        %v694 = vunpack.c.h.b16 %v604
        %v695 = vunpack.c.l.b16 %v605
        %v696 = vunpack.c.l.b16 %v606
        %v697 = vunpack.c.h.b16 %v606
        %v698 = vunpack.c.l.b16 %v607
        %v699 = vunpack.c.l.b16 %v608
        %v700 = vunpack.c.h.b16 %v608
        %v701 = vunpack.c.l.b16 %v609
        %v702 = vunpack.c.l.b16 %v610
        %v703 = vunpack.c.h.b16 %v610
        %v704 = vunpack.c.l.b16 %v611
        %v705 = vunpack.c.l.b16 %v612
        %v706 = vunpack.c.h.b16 %v612
        %v707 = vunpack.c.l.b16 %v613
        %v708 = vunpack.c.l.b16 %v614
        %v709 = vunpack.c.h.b16 %v614
        %v710 = vunpack.c.l.b16 %v615
        %v711 = vunpack.c.l.b16 %v616
        %v712 = vunpack.c.h.b16 %v616
        %v713 = vunpack.c.l.b16 %v617
        %v714 = vunpack.c.l.b16 %v618
        %v715 = vunpack.c.h.b16 %v618
        %v716 = vunpack.c.l.b16 %v619
        %v717 = vpack.c.b16 %v672, %v669
        %v718 = vpack.c.b16 %v673, %v670
        %v719 = vpack.c.b16 %v674, %v671
        %v720 = vpack.c.b16 %v678, %v675
        %v721 = vpack.c.b16 %v679, %v676
        %v722 = vpack.c.b16 %v680, %v677
        %v723 = vpack.c.b16 %v684, %v681
        %v724 = vpack.c.b16 %v685, %v682
        %v725 = vpack.c.b16 %v686, %v683
        %v726 = vpack.c.b16 %v690, %v687
        %v727 = vpack.c.b16 %v691, %v688
        %v728 = vpack.c.b16 %v692, %v689
        %v729 = vpack.c.b16 %v696, %v693
        %v730 = vpack.c.b16 %v697, %v694
        %v731 = vpack.c.b16 %v698, %v695
        %v732 = vpack.c.b16 %v702, %v699
        %v733 = vpack.c.b16 %v703, %v700
        %v734 = vpack.c.b16 %v704, %v701
        %v735 = vpack.c.b16 %v708, %v705
        %v736 = vpack.c.b16 %v709, %v706
        %v737 = vpack.c.b16 %v710, %v707
        %v738 = vpack.c.b16 %v714, %v711
        %v739 = vpack.c.b16 %v715, %v712
        %v740 = vpack.c.b16 %v716, %v713
        %765 = vmatprep.subr.bf16.mxu0 %v739
        %766 = vmatpush1.bf16.msra.mxu0 %v738
        %767 = vmatprep.subr.bf16.mxu0 %v736
        %768 = vmatpush1.bf16.msra.mxu0 %v735
        %769 = vmatprep.subr.bf16.mxu0 %v733
        %770 = vmatpush1.bf16.msra.mxu0 %v732
        %771 = vmatprep.subr.bf16.mxu0 %v730
        %772 = vmatpush1.bf16.msra.mxu0 %v729
        %773 = vmatprep.subr.bf16.mxu0 %v727
        %774 = vmatpush1.bf16.msra.mxu0 %v726
        %775 = vmatprep.subr.bf16.mxu0 %v724
        %776 = vmatpush1.bf16.msra.mxu0 %v723
        %777 = vmatprep.subr.bf16.mxu0 %v721
        %778 = vmatpush1.bf16.msra.mxu0 %v720
        %779 = vmatprep.subr.bf16.mxu0 %v718
        %780 = vmatpush1.bf16.msra.mxu0 %v717
        %781 = vmatprep.subr.bf16.mxu0 0
        %782 = vmatpush2.bf16.msra.mxu0 0
        %783 = vmatprep.subr.bf16.mxu0 0
        %784 = vmatpush2.bf16.msra.mxu0 0
        %785 = vmatprep.subr.bf16.mxu0 0
        %786 = vmatpush2.bf16.msra.mxu0 0
        %787 = vmatprep.subr.bf16.mxu0 0
        %788 = vmatpush2.bf16.msra.mxu0 0
        %789 = vmatprep.subr.bf16.mxu0 0
        %790 = vmatpush2.bf16.msra.mxu0 0
        %791 = vmatprep.subr.bf16.mxu0 0
        %792 = vmatpush2.bf16.msra.mxu0 0
        %793 = vmatprep.subr.bf16.mxu0 0
        %794 = vmatpush2.bf16.msra.mxu0 0
        %795 = vmatprep.subr.bf16.mxu0 0
        %796 = vmatpush2.bf16.msra.mxu0 0
        %797 = vmatprep.mubr.bf16.mxu0 0
        %798 = vmatmul.mubr.bf16.gmra.mxu0 %v587
        %v799 = vpop.f32.mrf.mxu0
        %v800 = vadd.f32 %v625, %v799
        %v801 = vpop.f32.mrf.mxu0
        %v802 = vadd.f32 %v629, %v801
        %v803 = vpop.f32.mrf.mxu0
        %v804 = vpop.f32.mrf.mxu0
        %805 = vdwg.mxu0
        %806 = vmatprep.subr.bf16.mxu0 0
        %807 = vmatpush1.bf16.msra.mxu0 %v740
        %808 = vmatprep.subr.bf16.mxu0 0
        %809 = vmatpush1.bf16.msra.mxu0 %v737
        %810 = vmatprep.subr.bf16.mxu0 0
        %811 = vmatpush1.bf16.msra.mxu0 %v734
        %812 = vmatprep.subr.bf16.mxu0 0
        %813 = vmatpush1.bf16.msra.mxu0 %v731
        %814 = vmatprep.subr.bf16.mxu0 0
        %815 = vmatpush1.bf16.msra.mxu0 %v728
        %816 = vmatprep.subr.bf16.mxu0 0
        %817 = vmatpush1.bf16.msra.mxu0 %v725
        %818 = vmatprep.subr.bf16.mxu0 0
        %819 = vmatpush1.bf16.msra.mxu0 %v722
        %820 = vmatprep.subr.bf16.mxu0 0
        %821 = vmatpush1.bf16.msra.mxu0 %v719
        %822 = vmatprep.subr.bf16.mxu0 0
        %823 = vmatpush2.bf16.msra.mxu0 0
        %824 = vmatprep.subr.bf16.mxu0 0
        %825 = vmatpush2.bf16.msra.mxu0 0
        %826 = vmatprep.subr.bf16.mxu0 0
        %827 = vmatpush2.bf16.msra.mxu0 0
        %828 = vmatprep.subr.bf16.mxu0 0
        %829 = vmatpush2.bf16.msra.mxu0 0
        %830 = vmatprep.subr.bf16.mxu0 0
        %831 = vmatpush2.bf16.msra.mxu0 0
        %832 = vmatprep.subr.bf16.mxu0 0
        %833 = vmatpush2.bf16.msra.mxu0 0
        %834 = vmatprep.subr.bf16.mxu0 0
        %835 = vmatpush2.bf16.msra.mxu0 0
        %836 = vmatprep.subr.bf16.mxu0 0
        %837 = vmatpush2.bf16.msra.mxu0 0
        %838 = vmatprep.mubr.bf16.mxu0 0
        %839 = vmatmul.mubr.bf16.gmra.mxu0 %v587
        %v840 = vpop.f32.mrf.mxu0
        %v841 = vadd.f32 %v633, %v840
        %v842 = vpop.f32.mrf.mxu0
        %v843 = vpop.f32.mrf.mxu0
        %v844 = vpop.f32.mrf.mxu0
        %845 = vdwg.mxu0
        %847 = vrot.lane.b32.xlu0 %v800, 64
        %v848 = vpop.permute.xlu0 %847
        %v850 = vcombine.high %v800, 0.0
        %v852 = vunpack.c.l.s4 1983009808
        %v853 = vunpack.c.0.s8 %v852
        %v854 = vlaneseq
        %v855 = vshrl.u32 %v854, 7
        %v856 = vsub.s32 %v853, %v855
        %v857 = vrot.slane %v800, %v856
        %v859 = vunpack.c.l.s4 1983009808
        %v860 = vunpack.c.0.s8 %v859
        %v861 = vlaneseq
        %v862 = vshrl.u32 %v861, 7
        %v863 = vsub.s32 %v860, %v862
        %v864 = vrot.slane %v850, %v863
        %v865 = vcombine.high %v848, 0.0
        %v867 = vunpack.c.l.s4 1983009808
        %v868 = vunpack.c.0.s8 %v867
        %v869 = vlaneseq
        %v870 = vshrl.u32 %v869, 7
        %v871 = vsub.s32 %v868, %v870
        %v872 = vrot.slane %v848, %v871
        %v874 = vunpack.c.l.s4 1983009808
        %v875 = vunpack.c.0.s8 %v874
        %v876 = vlaneseq
        %v877 = vshrl.u32 %v876, 7
        %v878 = vsub.s32 %v875, %v877
        %v879 = vrot.slane %v865, %v878
        %v880 = vcombine.low %v857, %v872
        %v881 = vcombine.high %v857, %v872
        %v883 = vunpack.c.l.s4 1934713408
        %v884 = vunpack.c.0.s8 %v883
        %v885 = vlaneseq
        %v886 = vshrl.u32 %v885, 7
        %v887 = vsub.s32 %v884, %v886
        %v888 = vrot.slane %v880, %v887
        %v890 = vunpack.c.l.s4 1934713408
        %v891 = vunpack.c.0.s8 %v890
        %v892 = vlaneseq
        %v893 = vshrl.u32 %v892, 7
        %v894 = vsub.s32 %v891, %v893
        %v895 = vrot.slane %v881, %v894
        %v896 = vcombine.low %v864, %v879
        %v897 = vcombine.high %v864, %v879
        %v899 = vunpack.c.l.s4 1934713408
        %v900 = vunpack.c.0.s8 %v899
        %v901 = vlaneseq
        %v902 = vshrl.u32 %v901, 7
        %v903 = vsub.s32 %v900, %v902
        %v904 = vrot.slane %v896, %v903
        %v906 = vunpack.c.l.s4 1934713408
        %v907 = vunpack.c.0.s8 %v906
        %v908 = vlaneseq
        %v909 = vshrl.u32 %v908, 7
        %v910 = vsub.s32 %v907, %v909
        %v911 = vrot.slane %v897, %v910
        %v912 = vcombine.high %v888, 0.0
        %v913 = vcombine.high %v895, 0.0
        %v914 = vcombine.high %v904, 0.0
        %v915 = vcombine.high %v911, 0.0
        %v916 = vcombine.low %v888, %v895
        %v918 = vunpack.c.l.s4 1983009808
        %v919 = vunpack.c.0.s8 %v918
        %v920 = vlaneseq
        %v921 = vshrl.u32 %v920, 7
        %v922 = vsub.s32 %v919, %v921
        %v923 = vrot.slane %v916, %v922
        %v924 = vcombine.low %v912, %v913
        %v926 = vunpack.c.l.s4 1983009808
        %v927 = vunpack.c.0.s8 %v926
        %v928 = vlaneseq
        %v929 = vshrl.u32 %v928, 7
        %v930 = vsub.s32 %v927, %v929
        %v931 = vrot.slane %v924, %v930
        %v932 = vcombine.low %v904, %v911
        %v934 = vunpack.c.l.s4 1983009808
        %v935 = vunpack.c.0.s8 %v934
        %v936 = vlaneseq
        %v937 = vshrl.u32 %v936, 7
        %v938 = vsub.s32 %v935, %v937
        %v939 = vrot.slane %v932, %v938
        %v940 = vcombine.low %v914, %v915
        %v942 = vunpack.c.l.s4 1983009808
        %v943 = vunpack.c.0.s8 %v942
        %v944 = vlaneseq
        %v945 = vshrl.u32 %v944, 7
        %v946 = vsub.s32 %v943, %v945
        %v947 = vrot.slane %v940, %v946
        %v948 = vcombine.low %v923, %v931
        %v950 = vunpack.c.l.s4 1934713408
        %v951 = vunpack.c.0.s8 %v950
        %v952 = vlaneseq
        %v953 = vshrl.u32 %v952, 7
        %v954 = vsub.s32 %v951, %v953
        %v955 = vrot.slane %v948, %v954
        %v956 = vcombine.low %v939, %v947
        %v958 = vunpack.c.l.s4 1934713408
        %v959 = vunpack.c.0.s8 %v958
        %v960 = vlaneseq
        %v961 = vshrl.u32 %v960, 7
        %v962 = vsub.s32 %v959, %v961
        %v963 = vrot.slane %v956, %v962
        %v964 = vcombine.low %v955, %v963
        %v965 = vcombine.high %v955, %v963
        %v966 = vpack.c.bf16 %v964, %v964
        %v967 = vpack.c.bf16 %v965, %v965
        %969 = vrot.lane.b32.xlu0 %v802, 64
        %v970 = vpop.permute.xlu0 %969
        %v972 = vcombine.high %v802, 0.0
        %v974 = vunpack.c.l.s4 1983009808
        %v975 = vunpack.c.0.s8 %v974
        %v976 = vlaneseq
        %v977 = vshrl.u32 %v976, 7
        %v978 = vsub.s32 %v975, %v977
        %v979 = vrot.slane %v802, %v978
        %v981 = vunpack.c.l.s4 1983009808
        %v982 = vunpack.c.0.s8 %v981
        %v983 = vlaneseq
        %v984 = vshrl.u32 %v983, 7
        %v985 = vsub.s32 %v982, %v984
        %v986 = vrot.slane %v972, %v985
        %v987 = vcombine.high %v970, 0.0
        %v989 = vunpack.c.l.s4 1983009808
        %v990 = vunpack.c.0.s8 %v989
        %v991 = vlaneseq
        %v992 = vshrl.u32 %v991, 7
        %v993 = vsub.s32 %v990, %v992
        %v994 = vrot.slane %v970, %v993
        %v996 = vunpack.c.l.s4 1983009808
        %v997 = vunpack.c.0.s8 %v996
        %v998 = vlaneseq
        %v999 = vshrl.u32 %v998, 7
        %v1000 = vsub.s32 %v997, %v999
        %v1001 = vrot.slane %v987, %v1000
        %v1002 = vcombine.low %v979, %v994
        %v1003 = vcombine.high %v979, %v994
        %v1005 = vunpack.c.l.s4 1934713408
        %v1006 = vunpack.c.0.s8 %v1005
        %v1007 = vlaneseq
        %v1008 = vshrl.u32 %v1007, 7
        %v1009 = vsub.s32 %v1006, %v1008
        %v1010 = vrot.slane %v1002, %v1009
        %v1012 = vunpack.c.l.s4 1934713408
        %v1013 = vunpack.c.0.s8 %v1012
        %v1014 = vlaneseq
        %v1015 = vshrl.u32 %v1014, 7
        %v1016 = vsub.s32 %v1013, %v1015
        %v1017 = vrot.slane %v1003, %v1016
        %v1018 = vcombine.low %v986, %v1001
        %v1019 = vcombine.high %v986, %v1001
        %v1021 = vunpack.c.l.s4 1934713408
        %v1022 = vunpack.c.0.s8 %v1021
        %v1023 = vlaneseq
        %v1024 = vshrl.u32 %v1023, 7
        %v1025 = vsub.s32 %v1022, %v1024
        %v1026 = vrot.slane %v1018, %v1025
        %v1028 = vunpack.c.l.s4 1934713408
        %v1029 = vunpack.c.0.s8 %v1028
        %v1030 = vlaneseq
        %v1031 = vshrl.u32 %v1030, 7
        %v1032 = vsub.s32 %v1029, %v1031
        %v1033 = vrot.slane %v1019, %v1032
        %v1034 = vcombine.high %v1010, 0.0
        %v1035 = vcombine.high %v1017, 0.0
        %v1036 = vcombine.high %v1026, 0.0
        %v1037 = vcombine.high %v1033, 0.0
        %v1038 = vcombine.low %v1010, %v1017
        %v1040 = vunpack.c.l.s4 1983009808
        %v1041 = vunpack.c.0.s8 %v1040
        %v1042 = vlaneseq
        %v1043 = vshrl.u32 %v1042, 7
        %v1044 = vsub.s32 %v1041, %v1043
        %v1045 = vrot.slane %v1038, %v1044
        %v1046 = vcombine.low %v1034, %v1035
        %v1048 = vunpack.c.l.s4 1983009808
        %v1049 = vunpack.c.0.s8 %v1048
        %v1050 = vlaneseq
        %v1051 = vshrl.u32 %v1050, 7
        %v1052 = vsub.s32 %v1049, %v1051
        %v1053 = vrot.slane %v1046, %v1052
        %v1054 = vcombine.low %v1026, %v1033
        %v1056 = vunpack.c.l.s4 1983009808
        %v1057 = vunpack.c.0.s8 %v1056
        %v1058 = vlaneseq
        %v1059 = vshrl.u32 %v1058, 7
        %v1060 = vsub.s32 %v1057, %v1059
        %v1061 = vrot.slane %v1054, %v1060
        %v1062 = vcombine.low %v1036, %v1037
        %v1064 = vunpack.c.l.s4 1983009808
        %v1065 = vunpack.c.0.s8 %v1064
        %v1066 = vlaneseq
        %v1067 = vshrl.u32 %v1066, 7
        %v1068 = vsub.s32 %v1065, %v1067
        %v1069 = vrot.slane %v1062, %v1068
        %v1070 = vcombine.low %v1045, %v1053
        %v1072 = vunpack.c.l.s4 1934713408
        %v1073 = vunpack.c.0.s8 %v1072
        %v1074 = vlaneseq
        %v1075 = vshrl.u32 %v1074, 7
        %v1076 = vsub.s32 %v1073, %v1075
        %v1077 = vrot.slane %v1070, %v1076
        %v1078 = vcombine.low %v1061, %v1069
        %v1080 = vunpack.c.l.s4 1934713408
        %v1081 = vunpack.c.0.s8 %v1080
        %v1082 = vlaneseq
        %v1083 = vshrl.u32 %v1082, 7
        %v1084 = vsub.s32 %v1081, %v1083
        %v1085 = vrot.slane %v1078, %v1084
        %v1086 = vcombine.low %v1077, %v1085
        %v1087 = vcombine.high %v1077, %v1085
        %v1088 = vpack.c.bf16 %v1086, %v1086
        %v1089 = vpack.c.bf16 %v1087, %v1087
        %1091 = vrot.lane.b32.xlu0 %v841, 64
        %v1092 = vpop.permute.xlu0 %1091
        %v1094 = vcombine.high %v841, 0.0
        %v1096 = vunpack.c.l.s4 1983009808
        %v1097 = vunpack.c.0.s8 %v1096
        %v1098 = vlaneseq
        %v1099 = vshrl.u32 %v1098, 7
        %v1100 = vsub.s32 %v1097, %v1099
        %v1101 = vrot.slane %v841, %v1100
        %v1103 = vunpack.c.l.s4 1983009808
        %v1104 = vunpack.c.0.s8 %v1103
        %v1105 = vlaneseq
        %v1106 = vshrl.u32 %v1105, 7
        %v1107 = vsub.s32 %v1104, %v1106
        %v1108 = vrot.slane %v1094, %v1107
        %v1109 = vcombine.high %v1092, 0.0
        %v1111 = vunpack.c.l.s4 1983009808
        %v1112 = vunpack.c.0.s8 %v1111
        %v1113 = vlaneseq
        %v1114 = vshrl.u32 %v1113, 7
        %v1115 = vsub.s32 %v1112, %v1114
        %v1116 = vrot.slane %v1092, %v1115
        %v1118 = vunpack.c.l.s4 1983009808
        %v1119 = vunpack.c.0.s8 %v1118
        %v1120 = vlaneseq
        %v1121 = vshrl.u32 %v1120, 7
        %v1122 = vsub.s32 %v1119, %v1121
        %v1123 = vrot.slane %v1109, %v1122
        %v1124 = vcombine.low %v1101, %v1116
        %v1125 = vcombine.high %v1101, %v1116
        %v1127 = vunpack.c.l.s4 1934713408
        %v1128 = vunpack.c.0.s8 %v1127
        %v1129 = vlaneseq
        %v1130 = vshrl.u32 %v1129, 7
        %v1131 = vsub.s32 %v1128, %v1130
        %v1132 = vrot.slane %v1124, %v1131
        %v1134 = vunpack.c.l.s4 1934713408
        %v1135 = vunpack.c.0.s8 %v1134
        %v1136 = vlaneseq
        %v1137 = vshrl.u32 %v1136, 7
        %v1138 = vsub.s32 %v1135, %v1137
        %v1139 = vrot.slane %v1125, %v1138
        %v1140 = vcombine.low %v1108, %v1123
        %v1141 = vcombine.high %v1108, %v1123
        %v1143 = vunpack.c.l.s4 1934713408
        %v1144 = vunpack.c.0.s8 %v1143
        %v1145 = vlaneseq
        %v1146 = vshrl.u32 %v1145, 7
        %v1147 = vsub.s32 %v1144, %v1146
        %v1148 = vrot.slane %v1140, %v1147
        %v1150 = vunpack.c.l.s4 1934713408
        %v1151 = vunpack.c.0.s8 %v1150
        %v1152 = vlaneseq
        %v1153 = vshrl.u32 %v1152, 7
        %v1154 = vsub.s32 %v1151, %v1153
        %v1155 = vrot.slane %v1141, %v1154
        %v1156 = vcombine.high %v1132, 0.0
        %v1157 = vcombine.high %v1139, 0.0
        %v1158 = vcombine.high %v1148, 0.0
        %v1159 = vcombine.high %v1155, 0.0
        %v1160 = vcombine.low %v1132, %v1139
        %v1162 = vunpack.c.l.s4 1983009808
        %v1163 = vunpack.c.0.s8 %v1162
        %v1164 = vlaneseq
        %v1165 = vshrl.u32 %v1164, 7
        %v1166 = vsub.s32 %v1163, %v1165
        %v1167 = vrot.slane %v1160, %v1166
        %v1168 = vcombine.low %v1156, %v1157
        %v1170 = vunpack.c.l.s4 1983009808
        %v1171 = vunpack.c.0.s8 %v1170
        %v1172 = vlaneseq
        %v1173 = vshrl.u32 %v1172, 7
        %v1174 = vsub.s32 %v1171, %v1173
        %v1175 = vrot.slane %v1168, %v1174
        %v1176 = vcombine.low %v1148, %v1155
        %v1178 = vunpack.c.l.s4 1983009808
        %v1179 = vunpack.c.0.s8 %v1178
        %v1180 = vlaneseq
        %v1181 = vshrl.u32 %v1180, 7
        %v1182 = vsub.s32 %v1179, %v1181
        %v1183 = vrot.slane %v1176, %v1182
        %v1184 = vcombine.low %v1158, %v1159
        %v1186 = vunpack.c.l.s4 1983009808
        %v1187 = vunpack.c.0.s8 %v1186
        %v1188 = vlaneseq
        %v1189 = vshrl.u32 %v1188, 7
        %v1190 = vsub.s32 %v1187, %v1189
        %v1191 = vrot.slane %v1184, %v1190
        %v1192 = vcombine.low %v1167, %v1175
        %v1194 = vunpack.c.l.s4 1934713408
        %v1195 = vunpack.c.0.s8 %v1194
        %v1196 = vlaneseq
        %v1197 = vshrl.u32 %v1196, 7
        %v1198 = vsub.s32 %v1195, %v1197
        %v1199 = vrot.slane %v1192, %v1198
        %v1200 = vcombine.low %v1183, %v1191
        %v1202 = vunpack.c.l.s4 1934713408
        %v1203 = vunpack.c.0.s8 %v1202
        %v1204 = vlaneseq
        %v1205 = vshrl.u32 %v1204, 7
        %v1206 = vsub.s32 %v1203, %v1205
        %v1207 = vrot.slane %v1200, %v1206
        %v1208 = vcombine.low %v1199, %v1207
        %v1209 = vcombine.high %v1199, %v1207
        %v1210 = vpack.c.bf16 %v1208, %v1208
        %v1211 = vpack.c.bf16 %v1209, %v1209
        %v1213 = vlaneseq
        %v1214 = vshrl.u32 %v1213, 7
        %v1215 = vsub.s32 0, %v1214
        %v1216 = vrot.slane %v580, %v1215
        %vm1218 = vcmask 523264
        %v1220 = vsel %vm1218, %v966, 0
        %v1223 = vsel %vm1218, %v1088, 0
        %1225 = vmatprep.subr.bf16.mxu0 0
        %1226 = vmatpush1.bf16.xpose.msra.mxu0 0
        %1227 = vmatprep.subr.bf16.mxu0 0
        %1228 = vmatpush1.bf16.xpose.msra.mxu0 0
        %1229 = vmatprep.subr.bf16.mxu0 0
        %1230 = vmatpush1.bf16.xpose.msra.mxu0 0
        %1231 = vmatprep.subr.bf16.mxu0 0
        %1232 = vmatpush1.bf16.xpose.msra.mxu0 0
        %1233 = vmatprep.subr.bf16.mxu0 0
        %1234 = vmatpush1.bf16.xpose.msra.mxu0 0
        %1235 = vmatprep.subr.bf16.mxu0 0
        %1236 = vmatpush1.bf16.xpose.msra.mxu0 0
        %1237 = vmatprep.subr.bf16.mxu0 0
        %1238 = vmatpush1.bf16.xpose.msra.mxu0 0
        %1239 = vmatprep.subr.bf16.mxu0 0
        %1240 = vmatpush1.bf16.xpose.msra.mxu0 %v1223
        %1241 = vmatprep.subr.bf16.mxu0 0
        %1242 = vmatpush2.bf16.xpose.msra.mxu0 0
        %1243 = vmatprep.subr.bf16.mxu0 0
        %1244 = vmatpush2.bf16.xpose.msra.mxu0 0
        %1245 = vmatprep.subr.bf16.mxu0 0
        %1246 = vmatpush2.bf16.xpose.msra.mxu0 0
        %1247 = vmatprep.subr.bf16.mxu0 0
        %1248 = vmatpush2.bf16.xpose.msra.mxu0 0
        %1249 = vmatprep.subr.bf16.mxu0 0
        %1250 = vmatpush2.bf16.xpose.msra.mxu0 0
        %1251 = vmatprep.subr.bf16.mxu0 0
        %1252 = vmatpush2.bf16.xpose.msra.mxu0 0
        %1253 = vmatprep.subr.bf16.mxu0 0
        %1254 = vmatpush2.bf16.xpose.msra.mxu0 0
        %1255 = vmatprep.subr.bf16.mxu0 0
        %1256 = vmatpush2.bf16.xpose.msra.mxu0 0
        %1257 = vmatprep.mubr.bf16.mxu0 0
        %1258 = vmatmul.mubr.bf16.gmra.mxu0 %v1220
        %v1259 = vpop.f32.mrf.mxu0
        %v1260 = vadd.f32 %v1216, %v1259
        %v1261 = vpop.f32.mrf.mxu0
        %v1262 = vpop.f32.mrf.mxu0
        %v1263 = vpop.f32.mrf.mxu0
        %1264 = vdwg.mxu0
        %v1266 = vsel %vm1218, %v967, 0
        %v1269 = vsel %vm1218, %v1089, 0
        %1271 = vmatprep.subr.bf16.mxu0 0
        %1272 = vmatpush1.bf16.xpose.msra.mxu0 0
        %1273 = vmatprep.subr.bf16.mxu0 0
        %1274 = vmatpush1.bf16.xpose.msra.mxu0 0
        %1275 = vmatprep.subr.bf16.mxu0 0
        %1276 = vmatpush1.bf16.xpose.msra.mxu0 0
        %1277 = vmatprep.subr.bf16.mxu0 0
        %1278 = vmatpush1.bf16.xpose.msra.mxu0 0
        %1279 = vmatprep.subr.bf16.mxu0 0
        %1280 = vmatpush1.bf16.xpose.msra.mxu0 0
        %1281 = vmatprep.subr.bf16.mxu0 0
        %1282 = vmatpush1.bf16.xpose.msra.mxu0 0
        %1283 = vmatprep.subr.bf16.mxu0 0
        %1284 = vmatpush1.bf16.xpose.msra.mxu0 0
        %1285 = vmatprep.subr.bf16.mxu0 0
        %1286 = vmatpush1.bf16.xpose.msra.mxu0 %v1269
        %1287 = vmatprep.subr.bf16.mxu0 0
        %1288 = vmatpush2.bf16.xpose.msra.mxu0 0
        %1289 = vmatprep.subr.bf16.mxu0 0
        %1290 = vmatpush2.bf16.xpose.msra.mxu0 0
        %1291 = vmatprep.subr.bf16.mxu0 0
        %1292 = vmatpush2.bf16.xpose.msra.mxu0 0
        %1293 = vmatprep.subr.bf16.mxu0 0
        %1294 = vmatpush2.bf16.xpose.msra.mxu0 0
        %1295 = vmatprep.subr.bf16.mxu0 0
        %1296 = vmatpush2.bf16.xpose.msra.mxu0 0
        %1297 = vmatprep.subr.bf16.mxu0 0
        %1298 = vmatpush2.bf16.xpose.msra.mxu0 0
        %1299 = vmatprep.subr.bf16.mxu0 0
        %1300 = vmatpush2.bf16.xpose.msra.mxu0 0
        %1301 = vmatprep.subr.bf16.mxu0 0
        %1302 = vmatpush2.bf16.xpose.msra.mxu0 0
        %1303 = vmatprep.mubr.bf16.mxu0 0
        %1304 = vmatmul.mubr.bf16.gmra.mxu0 %v1266
        %v1305 = vpop.f32.mrf.mxu0
        %v1306 = vadd.f32 %v1216, %v1305
        %v1307 = vpop.f32.mrf.mxu0
        %v1308 = vpop.f32.mrf.mxu0
        %v1309 = vpop.f32.mrf.mxu0
        %1310 = vdwg.mxu0
        %vm1311 = vcmask 64512
        %v1312 = vsel %vm1311, %v1260, -inf
        %1313 = vmax.xlane.f32.xlu0 %v1312
        %v1314 = vpop.xlane.xlu0 %1313
        %v1315 = vsel %vm1311, %v1306, -inf
        %1316 = vmax.xlane.f32.xlu0 %v1315
        %v1317 = vpop.xlane.xlu0 %1316
        %v1318 = vsub.f32 %v1260, %v1314
        %v1319 = vsub.f32 %v1306, %v1317
        %v1320 = vmul.f32 %v1318, 1.442695
        %v1321 = vpow.pop %v1320
        %v1322 = vmul.f32 %v1319, 1.442695
        %v1323 = vpow.pop %v1322
        %v1324 = vsel %vm1311, %v1321, 0.0
        %1325 = vadd.xlane.f32.xlu0 %v1324
        %v1326 = vpop.xlane.xlu0 %1325
        %v1327 = vsel %vm1311, %v1323, 0.0
        %1328 = vadd.xlane.f32.xlu0 %v1327
        %v1329 = vpop.xlane.xlu0 %1328
        %v1330 = vrcp.pop %v1326
        %v1331 = vrcp.pop %v1329
        %v1332 = vmul.f32 %v1321, %v1330
        %v1333 = vmul.f32 %v1323, %v1331
        %v1334 = vpack.c.bf16 %v1332, %v1332
        %v1335 = vpack.c.bf16 %v1333, %v1333
        %v1337 = vsel %vm1311, %v1334, 0
        %vm1339 = vcmask 1043456
        %v1341 = vsel %vm1339, %v1210, 0
        %1343 = vmatprep.subr.bf16.mxu0 0
        %1344 = vmatpush1.bf16.msra.mxu0 0
        %1345 = vmatprep.subr.bf16.mxu0 0
        %1346 = vmatpush1.bf16.msra.mxu0 0
        %1347 = vmatprep.subr.bf16.mxu0 0
        %1348 = vmatpush1.bf16.msra.mxu0 0
        %1349 = vmatprep.subr.bf16.mxu0 0
        %1350 = vmatpush1.bf16.msra.mxu0 0
        %1351 = vmatprep.subr.bf16.mxu0 0
        %1352 = vmatpush1.bf16.msra.mxu0 0
        %1353 = vmatprep.subr.bf16.mxu0 0
        %1354 = vmatpush1.bf16.msra.mxu0 0
        %1355 = vmatprep.subr.bf16.mxu0 0
        %1356 = vmatpush1.bf16.msra.mxu0 0
        %1357 = vmatprep.subr.bf16.mxu0 0
        %1358 = vmatpush1.bf16.msra.mxu0 %v1341
        %1359 = vmatprep.subr.bf16.mxu0 0
        %1360 = vmatpush2.bf16.msra.mxu0 0
        %1361 = vmatprep.subr.bf16.mxu0 0
        %1362 = vmatpush2.bf16.msra.mxu0 0
        %1363 = vmatprep.subr.bf16.mxu0 0
        %1364 = vmatpush2.bf16.msra.mxu0 0
        %1365 = vmatprep.subr.bf16.mxu0 0
        %1366 = vmatpush2.bf16.msra.mxu0 0
        %1367 = vmatprep.subr.bf16.mxu0 0
        %1368 = vmatpush2.bf16.msra.mxu0 0
        %1369 = vmatprep.subr.bf16.mxu0 0
        %1370 = vmatpush2.bf16.msra.mxu0 0
        %1371 = vmatprep.subr.bf16.mxu0 0
        %1372 = vmatpush2.bf16.msra.mxu0 0
        %1373 = vmatprep.subr.bf16.mxu0 0
        %1374 = vmatpush2.bf16.msra.mxu0 0
        %1375 = vmatprep.mubr.bf16.mxu0 0
        %1376 = vmatmul.mubr.bf16.gmra.mxu0 %v1337
        %v1377 = vpop.f32.mrf.mxu0
        %v1378 = vadd.f32 0.0, %v1377
        %v1379 = vpop.f32.mrf.mxu0
        %v1380 = vpop.f32.mrf.mxu0
        %v1381 = vpop.f32.mrf.mxu0
        %1382 = vdwg.mxu0
        %v1384 = vsel %vm1311, %v1335, 0
        %v1387 = vsel %vm1339, %v1211, 0
        %1389 = vmatprep.subr.bf16.mxu0 0
        %1390 = vmatpush1.bf16.msra.mxu0 0
        %1391 = vmatprep.subr.bf16.mxu0 0
        %1392 = vmatpush1.bf16.msra.mxu0 0
        %1393 = vmatprep.subr.bf16.mxu0 0
        %1394 = vmatpush1.bf16.msra.mxu0 0
        %1395 = vmatprep.subr.bf16.mxu0 0
        %1396 = vmatpush1.bf16.msra.mxu0 0
        %1397 = vmatprep.subr.bf16.mxu0 0
        %1398 = vmatpush1.bf16.msra.mxu0 0
        %1399 = vmatprep.subr.bf16.mxu0 0
        %1400 = vmatpush1.bf16.msra.mxu0 0
        %1401 = vmatprep.subr.bf16.mxu0 0
        %1402 = vmatpush1.bf16.msra.mxu0 0
        %1403 = vmatprep.subr.bf16.mxu0 0
        %1404 = vmatpush1.bf16.msra.mxu0 %v1387
        %1405 = vmatprep.subr.bf16.mxu0 0
        %1406 = vmatpush2.bf16.msra.mxu0 0
        %1407 = vmatprep.subr.bf16.mxu0 0
        %1408 = vmatpush2.bf16.msra.mxu0 0
        %1409 = vmatprep.subr.bf16.mxu0 0
        %1410 = vmatpush2.bf16.msra.mxu0 0
        %1411 = vmatprep.subr.bf16.mxu0 0
        %1412 = vmatpush2.bf16.msra.mxu0 0
        %1413 = vmatprep.subr.bf16.mxu0 0
        %1414 = vmatpush2.bf16.msra.mxu0 0
        %1415 = vmatprep.subr.bf16.mxu0 0
        %1416 = vmatpush2.bf16.msra.mxu0 0
        %1417 = vmatprep.subr.bf16.mxu0 0
        %1418 = vmatpush2.bf16.msra.mxu0 0
        %1419 = vmatprep.subr.bf16.mxu0 0
        %1420 = vmatpush2.bf16.msra.mxu0 0
        %1421 = vmatprep.mubr.bf16.mxu0 0
        %1422 = vmatmul.mubr.bf16.gmra.mxu0 %v1384
        %v1423 = vpop.f32.mrf.mxu0
        %v1424 = vadd.f32 0.0, %v1423
        %v1425 = vpop.f32.mrf.mxu0
        %v1426 = vpop.f32.mrf.mxu0
        %v1427 = vpop.f32.mrf.mxu0
        %1428 = vdwg.mxu0
        %v1429 = vcombine.high %v1378, 0.0
        %v1431 = vunpack.c.l.s4 1983009808
        %v1432 = vunpack.c.0.s8 %v1431
        %v1433 = vlaneseq
        %v1434 = vshrl.u32 %v1433, 7
        %v1435 = vsub.s32 %v1432, %v1434
        %v1436 = vrot.slane %v1378, %v1435
        %v1438 = vunpack.c.l.s4 1983009808
        %v1439 = vunpack.c.0.s8 %v1438
        %v1440 = vlaneseq
        %v1441 = vshrl.u32 %v1440, 7
        %v1442 = vsub.s32 %v1439, %v1441
        %v1443 = vrot.slane %v1429, %v1442
        %v1444 = vcombine.high %v1424, 0.0
        %v1446 = vunpack.c.l.s4 1983009808
        %v1447 = vunpack.c.0.s8 %v1446
        %v1448 = vlaneseq
        %v1449 = vshrl.u32 %v1448, 7
        %v1450 = vsub.s32 %v1447, %v1449
        %v1451 = vrot.slane %v1424, %v1450
        %v1453 = vunpack.c.l.s4 1983009808
        %v1454 = vunpack.c.0.s8 %v1453
        %v1455 = vlaneseq
        %v1456 = vshrl.u32 %v1455, 7
        %v1457 = vsub.s32 %v1454, %v1456
        %v1458 = vrot.slane %v1444, %v1457
        %v1459 = vcombine.low %v1436, %v1451
        %v1460 = vcombine.high %v1436, %v1451
        %v1462 = vunpack.c.l.s4 1934713408
        %v1463 = vunpack.c.0.s8 %v1462
        %v1464 = vlaneseq
        %v1465 = vshrl.u32 %v1464, 7
        %v1466 = vsub.s32 %v1463, %v1465
        %v1467 = vrot.slane %v1459, %v1466
        %v1469 = vunpack.c.l.s4 1934713408
        %v1470 = vunpack.c.0.s8 %v1469
        %v1471 = vlaneseq
        %v1472 = vshrl.u32 %v1471, 7
        %v1473 = vsub.s32 %v1470, %v1472
        %v1474 = vrot.slane %v1460, %v1473
        %v1475 = vcombine.low %v1443, %v1458
        %v1476 = vcombine.high %v1443, %v1458
        %v1478 = vunpack.c.l.s4 1934713408
        %v1479 = vunpack.c.0.s8 %v1478
        %v1480 = vlaneseq
        %v1481 = vshrl.u32 %v1480, 7
        %v1482 = vsub.s32 %v1479, %v1481
        %v1483 = vrot.slane %v1475, %v1482
        %v1485 = vunpack.c.l.s4 1934713408
        %v1486 = vunpack.c.0.s8 %v1485
        %v1487 = vlaneseq
        %v1488 = vshrl.u32 %v1487, 7
        %v1489 = vsub.s32 %v1486, %v1488
        %v1490 = vrot.slane %v1476, %v1489
        %v1491 = vcombine.high %v1467, 0.0
        %v1492 = vcombine.high %v1474, 0.0
        %v1493 = vcombine.high %v1483, 0.0
        %v1494 = vcombine.high %v1490, 0.0
        %v1495 = vcombine.low %v1467, %v1474
        %v1497 = vunpack.c.l.s4 1983009808
        %v1498 = vunpack.c.0.s8 %v1497
        %v1499 = vlaneseq
        %v1500 = vshrl.u32 %v1499, 7
        %v1501 = vsub.s32 %v1498, %v1500
        %v1502 = vrot.slane %v1495, %v1501
        %v1503 = vcombine.low %v1491, %v1492
        %v1505 = vunpack.c.l.s4 1983009808
        %v1506 = vunpack.c.0.s8 %v1505
        %v1507 = vlaneseq
        %v1508 = vshrl.u32 %v1507, 7
        %v1509 = vsub.s32 %v1506, %v1508
        %v1510 = vrot.slane %v1503, %v1509
        %v1511 = vcombine.low %v1483, %v1490
        %v1513 = vunpack.c.l.s4 1983009808
        %v1514 = vunpack.c.0.s8 %v1513
        %v1515 = vlaneseq
        %v1516 = vshrl.u32 %v1515, 7
        %v1517 = vsub.s32 %v1514, %v1516
        %v1518 = vrot.slane %v1511, %v1517
        %v1519 = vcombine.low %v1493, %v1494
        %v1521 = vunpack.c.l.s4 1983009808
        %v1522 = vunpack.c.0.s8 %v1521
        %v1523 = vlaneseq
        %v1524 = vshrl.u32 %v1523, 7
        %v1525 = vsub.s32 %v1522, %v1524
        %v1526 = vrot.slane %v1519, %v1525
        %v1527 = vcombine.low %v1502, %v1510
        %v1529 = vunpack.c.l.s4 1934713408
        %v1530 = vunpack.c.0.s8 %v1529
        %v1531 = vlaneseq
        %v1532 = vshrl.u32 %v1531, 7
        %v1533 = vsub.s32 %v1530, %v1532
        %v1534 = vrot.slane %v1527, %v1533
        %v1535 = vcombine.low %v1518, %v1526
        %v1537 = vunpack.c.l.s4 1934713408
        %v1538 = vunpack.c.0.s8 %v1537
        %v1539 = vlaneseq
        %v1540 = vshrl.u32 %v1539, 7
        %v1541 = vsub.s32 %v1538, %v1540
        %v1542 = vrot.slane %v1535, %v1541
        %v1543 = vcombine.low %v1534, %v1542
        %v1544 = vcombine.high %v1534, %v1542
        %1546 = vrot.lane.b32.xlu0 %v1544, 64
        %v1547 = vpop.permute.xlu0 %1546
        %v1549 = vsel %vm1218, %v1543, %v1547
        %v1550 = vpack.c.bf16 %v1549, %v1549
        %v1551 = vld [vmem:[#allocation11] sm:$0xf]
        %v1552 = vld [vmem:[#allocation11 + $0x4] sm:$0xf]
        %v1553 = vld [vmem:[#allocation11 + $0x8] sm:$0xf]
        %v1554 = vld [vmem:[#allocation11 + $0xc] sm:$0xf]
        %v1555 = vld [vmem:[#allocation11 + $0x10] sm:$0xf]
        %v1556 = vld [vmem:[#allocation11 + $0x14] sm:$0xf]
        %v1557 = vld [vmem:[#allocation11 + $0x18] sm:$0xf]
        %v1558 = vld [vmem:[#allocation11 + $0x1c] sm:$0xf]
        %v1559 = vld [vmem:[#allocation11 + $0x20] sm:$0xf]
        %v1560 = vld [vmem:[#allocation11 + $0x24] sm:$0xf]
        %v1561 = vld [vmem:[#allocation11 + $0x28] sm:$0xf]
        %v1562 = vld [vmem:[#allocation11 + $0x2c] sm:$0xf]
        %v1563 = vld [vmem:[#allocation11 + $0x30] sm:$0xf]
        %v1564 = vld [vmem:[#allocation11 + $0x34] sm:$0xf]
        %v1565 = vld [vmem:[#allocation11 + $0x38] sm:$0xf]
        %v1566 = vld [vmem:[#allocation11 + $0x3c] sm:$0xf]
        %v1567 = vlaneseq
        %v1568 = vshrl.u32 %v1567, 7
        %v1569 = vsub.s32 0, %v1568
        %v1570 = vrot.slane %v581, %v1569
        %v1587 = vunpack.c.l.b16 %v1551
        %v1588 = vunpack.c.l.b16 %v1552
        %v1589 = vunpack.c.l.b16 %v1553
        %v1590 = vunpack.c.l.b16 %v1554
        %v1591 = vunpack.c.l.b16 %v1555
        %v1592 = vunpack.c.l.b16 %v1556
        %v1593 = vunpack.c.l.b16 %v1557
        %v1594 = vunpack.c.l.b16 %v1558
        %v1595 = vunpack.c.l.b16 %v1559
        %v1596 = vunpack.c.l.b16 %v1560
        %v1597 = vunpack.c.l.b16 %v1561
        %v1598 = vunpack.c.l.b16 %v1562
        %v1599 = vunpack.c.l.b16 %v1563
        %v1600 = vunpack.c.l.b16 %v1564
        %v1601 = vunpack.c.l.b16 %v1565
        %v1602 = vunpack.c.l.b16 %v1566
        %v1603 = vpack.c.b16 %v1588, %v1587
        %v1604 = vpack.c.b16 %v1590, %v1589
        %v1605 = vpack.c.b16 %v1592, %v1591
        %v1606 = vpack.c.b16 %v1594, %v1593
        %v1607 = vpack.c.b16 %v1596, %v1595
        %v1608 = vpack.c.b16 %v1598, %v1597
        %v1609 = vpack.c.b16 %v1600, %v1599
        %v1610 = vpack.c.b16 %v1602, %v1601
        %1619 = vmatprep.subr.bf16.mxu0 0
        %1620 = vmatpush1.bf16.msra.mxu0 %v1610
        %1621 = vmatprep.subr.bf16.mxu0 0
        %1622 = vmatpush1.bf16.msra.mxu0 %v1609
        %1623 = vmatprep.subr.bf16.mxu0 0
        %1624 = vmatpush1.bf16.msra.mxu0 %v1608
        %1625 = vmatprep.subr.bf16.mxu0 0
        %1626 = vmatpush1.bf16.msra.mxu0 %v1607
        %1627 = vmatprep.subr.bf16.mxu0 0
        %1628 = vmatpush1.bf16.msra.mxu0 %v1606
        %1629 = vmatprep.subr.bf16.mxu0 0
        %1630 = vmatpush1.bf16.msra.mxu0 %v1605
        %1631 = vmatprep.subr.bf16.mxu0 0
        %1632 = vmatpush1.bf16.msra.mxu0 %v1604
        %1633 = vmatprep.subr.bf16.mxu0 0
        %1634 = vmatpush1.bf16.msra.mxu0 %v1603
        %1635 = vmatprep.subr.bf16.mxu0 0
        %1636 = vmatpush2.bf16.msra.mxu0 0
        %1637 = vmatprep.subr.bf16.mxu0 0
        %1638 = vmatpush2.bf16.msra.mxu0 0
        %1639 = vmatprep.subr.bf16.mxu0 0
        %1640 = vmatpush2.bf16.msra.mxu0 0
        %1641 = vmatprep.subr.bf16.mxu0 0
        %1642 = vmatpush2.bf16.msra.mxu0 0
        %1643 = vmatprep.subr.bf16.mxu0 0
        %1644 = vmatpush2.bf16.msra.mxu0 0
        %1645 = vmatprep.subr.bf16.mxu0 0
        %1646 = vmatpush2.bf16.msra.mxu0 0
        %1647 = vmatprep.subr.bf16.mxu0 0
        %1648 = vmatpush2.bf16.msra.mxu0 0
        %1649 = vmatprep.subr.bf16.mxu0 0
        %1650 = vmatpush2.bf16.msra.mxu0 0
        %1651 = vmatprep.mubr.bf16.mxu0 0
        %1652 = vmatmul.mubr.bf16.gmra.mxu0 %v1550
        %v1653 = vpop.f32.mrf.mxu0
        %v1654 = vadd.f32 %v1570, %v1653
        %v1655 = vpop.f32.mrf.mxu0
        %v1656 = vpop.f32.mrf.mxu0
        %v1657 = vpop.f32.mrf.mxu0
        %1658 = vdwg.mxu0
        %v1659 = vadd.f32 %v1654, %v579
        %1660 = vadd.xlane.f32.xlu0 %v1659
        %v1661 = vpop.xlane.xlu0 %1660
        %v1662 = vmul.f32 %v1661, %v560
        %v1663 = vsub.f32 %v1659, %v1662
        %v1664 = vmul.f32 %v1663, %v1663
        %1665 = vadd.xlane.f32.xlu0 %v1664
        %v1666 = vpop.xlane.xlu0 %1665
        %v1667 = vmul.f32 %v1666, %v560
        %v1668 = vadd.f32 %v1667, 1e-12
        %v1669 = vrsqrt.pop %v1668
        %v1670 = vmul.f32 %v1663, %v1669
        %v1671 = vlaneseq
        %v1672 = vshrl.u32 %v1671, 7
        %v1673 = vsub.s32 0, %v1672
        %v1674 = vrot.slane %v582, %v1673
        %v1675 = vmul.f32 %v1670, %v1674
        %v1676 = vlaneseq
        %v1677 = vshrl.u32 %v1676, 7
        %v1678 = vsub.s32 0, %v1677
        %v1679 = vrot.slane %v583, %v1678
        %v1680 = vadd.f32 %v1675, %v1679
        %v1681 = vpack.c.bf16 %v1680, %v1680
        %v1682 = vld [vmem:[#allocation13] sm:$0xff]
        %v1683 = vld [vmem:[#allocation13 + $0x8] sm:$0xff]
        %v1684 = vld [vmem:[#allocation13 + $0x10] sm:$0xff]
        %v1685 = vld [vmem:[#allocation13 + $0x18] sm:$0xff]
        %v1686 = vld [vmem:[#allocation13 + $0x20] sm:$0xff]
        %v1687 = vld [vmem:[#allocation13 + $0x28] sm:$0xff]
        %v1688 = vld [vmem:[#allocation13 + $0x30] sm:$0xff]
        %v1689 = vld [vmem:[#allocation13 + $0x38] sm:$0xff]
        %v1690 = vld [vmem:[#allocation13 + $0x40] sm:$0xff]
        %v1691 = vld [vmem:[#allocation13 + $0x48] sm:$0xff]
        %v1692 = vld [vmem:[#allocation13 + $0x50] sm:$0xff]
        %v1693 = vld [vmem:[#allocation13 + $0x58] sm:$0xff]
        %v1694 = vld [vmem:[#allocation13 + $0x60] sm:$0xff]
        %v1695 = vld [vmem:[#allocation13 + $0x68] sm:$0xff]
        %v1696 = vld [vmem:[#allocation13 + $0x70] sm:$0xff]
        %v1697 = vld [vmem:[#allocation13 + $0x78] sm:$0xff]
        %v1698 = vld [vmem:[%s8] sm:$0x3]
        %v1700 = vlaneseq
        %v1701 = vshrl.u32 %v1700, 7
        %v1702 = vsub.s32 0, %v1701
        %v1703 = vrot.slane %v1698, %v1702
        %v1704 = vlaneseq
        %v1705 = vshrl.u32 %v1704, 7
        %v1706 = vsub.s32 1, %v1705
        %v1707 = vrot.slane %v1698, %v1706
        %v1726 = vunpack.c.l.b16 %v1682
        %v1727 = vunpack.c.h.b16 %v1682
        %v1728 = vunpack.c.l.b16 %v1683
        %v1729 = vunpack.c.h.b16 %v1683
        %v1730 = vunpack.c.l.b16 %v1684
        %v1731 = vunpack.c.h.b16 %v1684
        %v1732 = vunpack.c.l.b16 %v1685
        %v1733 = vunpack.c.h.b16 %v1685
        %v1734 = vunpack.c.l.b16 %v1686
        %v1735 = vunpack.c.h.b16 %v1686
        %v1736 = vunpack.c.l.b16 %v1687
        %v1737 = vunpack.c.h.b16 %v1687
        %v1738 = vunpack.c.l.b16 %v1688
        %v1739 = vunpack.c.h.b16 %v1688
        %v1740 = vunpack.c.l.b16 %v1689
        %v1741 = vunpack.c.h.b16 %v1689
        %v1742 = vunpack.c.l.b16 %v1690
        %v1743 = vunpack.c.h.b16 %v1690
        %v1744 = vunpack.c.l.b16 %v1691
        %v1745 = vunpack.c.h.b16 %v1691
        %v1746 = vunpack.c.l.b16 %v1692
        %v1747 = vunpack.c.h.b16 %v1692
        %v1748 = vunpack.c.l.b16 %v1693
        %v1749 = vunpack.c.h.b16 %v1693
        %v1750 = vunpack.c.l.b16 %v1694
        %v1751 = vunpack.c.h.b16 %v1694
        %v1752 = vunpack.c.l.b16 %v1695
        %v1753 = vunpack.c.h.b16 %v1695
        %v1754 = vunpack.c.l.b16 %v1696
        %v1755 = vunpack.c.h.b16 %v1696
        %v1756 = vunpack.c.l.b16 %v1697
        %v1757 = vunpack.c.h.b16 %v1697
        %v1758 = vpack.c.b16 %v1728, %v1726
        %v1759 = vpack.c.b16 %v1729, %v1727
        %v1760 = vpack.c.b16 %v1732, %v1730
        %v1761 = vpack.c.b16 %v1733, %v1731
        %v1762 = vpack.c.b16 %v1736, %v1734
        %v1763 = vpack.c.b16 %v1737, %v1735
        %v1764 = vpack.c.b16 %v1740, %v1738
        %v1765 = vpack.c.b16 %v1741, %v1739
        %v1766 = vpack.c.b16 %v1744, %v1742
        %v1767 = vpack.c.b16 %v1745, %v1743
        %v1768 = vpack.c.b16 %v1748, %v1746
        %v1769 = vpack.c.b16 %v1749, %v1747
        %v1770 = vpack.c.b16 %v1752, %v1750
        %v1771 = vpack.c.b16 %v1753, %v1751
        %v1772 = vpack.c.b16 %v1756, %v1754
        %v1773 = vpack.c.b16 %v1757, %v1755
        %1790 = vmatprep.subr.bf16.mxu0 %v1773
        %1791 = vmatpush1.bf16.msra.mxu0 %v1772
        %1792 = vmatprep.subr.bf16.mxu0 %v1771
        %1793 = vmatpush1.bf16.msra.mxu0 %v1770
        %1794 = vmatprep.subr.bf16.mxu0 %v1769
        %1795 = vmatpush1.bf16.msra.mxu0 %v1768
        %1796 = vmatprep.subr.bf16.mxu0 %v1767
        %1797 = vmatpush1.bf16.msra.mxu0 %v1766
        %1798 = vmatprep.subr.bf16.mxu0 %v1765
        %1799 = vmatpush1.bf16.msra.mxu0 %v1764
        %1800 = vmatprep.subr.bf16.mxu0 %v1763
        %1801 = vmatpush1.bf16.msra.mxu0 %v1762
        %1802 = vmatprep.subr.bf16.mxu0 %v1761
        %1803 = vmatpush1.bf16.msra.mxu0 %v1760
        %1804 = vmatprep.subr.bf16.mxu0 %v1759
        %1805 = vmatpush1.bf16.msra.mxu0 %v1758
        %1806 = vmatprep.subr.bf16.mxu0 0
        %1807 = vmatpush2.bf16.msra.mxu0 0
        %1808 = vmatprep.subr.bf16.mxu0 0
        %1809 = vmatpush2.bf16.msra.mxu0 0
        %1810 = vmatprep.subr.bf16.mxu0 0
        %1811 = vmatpush2.bf16.msra.mxu0 0
        %1812 = vmatprep.subr.bf16.mxu0 0
        %1813 = vmatpush2.bf16.msra.mxu0 0
        %1814 = vmatprep.subr.bf16.mxu0 0
        %1815 = vmatpush2.bf16.msra.mxu0 0
        %1816 = vmatprep.subr.bf16.mxu0 0
        %1817 = vmatpush2.bf16.msra.mxu0 0
        %1818 = vmatprep.subr.bf16.mxu0 0
        %1819 = vmatpush2.bf16.msra.mxu0 0
        %1820 = vmatprep.subr.bf16.mxu0 0
        %1821 = vmatpush2.bf16.msra.mxu0 0
        %1822 = vmatprep.mubr.bf16.mxu0 0
        %1823 = vmatmul.mubr.bf16.gmra.mxu0 %v1681
        %v1824 = vpop.f32.mrf.mxu0
        %v1825 = vadd.f32 %v1703, %v1824
        %v1826 = vpop.f32.mrf.mxu0
        %v1827 = vadd.f32 %v1707, %v1826
        %v1828 = vpop.f32.mrf.mxu0
        %v1829 = vpop.f32.mrf.mxu0
        %1830 = vdwg.mxu0
        %v1831 = vmul.f32 %v1825, 0.5
        %v1832 = vmul.f32 %v1827, 0.5
        %v1833 = vmul.f32 %v1825, 0.044715
        %v1834 = vmul.f32 %v1827, 0.044715
        %v1835 = vmul.f32 %v1833, %v1825
        %v1836 = vmul.f32 %v1834, %v1827
        %v1837 = vmul.f32 %v1835, %v1825
        %v1838 = vmul.f32 %v1836, %v1827
        %v1839 = vadd.f32 %v1825, %v1837
        %v1840 = vadd.f32 %v1827, %v1838
        %v1841 = vmul.f32 %v1839, 0.7978846
        %v1842 = vmul.f32 %v1840, 0.7978846
        %v1843 = vtanh.pop %v1841
        %v1844 = vtanh.pop %v1842
        %v1845 = vadd.f32 %v1843, 1.0
        %v1846 = vadd.f32 %v1844, 1.0
        %v1847 = vmul.f32 %v1831, %v1845
        %v1848 = vmul.f32 %v1832, %v1846
        %v1849 = vpack.c.bf16 %v1847, %v1847
        %v1850 = vpack.c.bf16 %v1848, %v1848
        %v1851 = vld [vmem:[#allocation14] sm:$0xf]
        %v1852 = vld [vmem:[#allocation14 + $0x4] sm:$0xf]
        %v1853 = vld [vmem:[#allocation14 + $0x8] sm:$0xf]
        %v1854 = vld [vmem:[#allocation14 + $0xc] sm:$0xf]
        %v1855 = vld [vmem:[#allocation14 + $0x10] sm:$0xf]
        %v1856 = vld [vmem:[#allocation14 + $0x14] sm:$0xf]
        %v1857 = vld [vmem:[#allocation14 + $0x18] sm:$0xf]
        %v1858 = vld [vmem:[#allocation14 + $0x1c] sm:$0xf]
        %v1859 = vld [vmem:[#allocation14 + $0x20] sm:$0xf]
        %v1860 = vld [vmem:[#allocation14 + $0x24] sm:$0xf]
        %v1861 = vld [vmem:[#allocation14 + $0x28] sm:$0xf]
        %v1862 = vld [vmem:[#allocation14 + $0x2c] sm:$0xf]
        %v1863 = vld [vmem:[#allocation14 + $0x30] sm:$0xf]
        %v1864 = vld [vmem:[#allocation14 + $0x34] sm:$0xf]
        %v1865 = vld [vmem:[#allocation14 + $0x38] sm:$0xf]
        %v1866 = vld [vmem:[#allocation14 + $0x3c] sm:$0xf]
        %v1867 = vld [vmem:[#allocation14 + $0x40] sm:$0xf]
        %v1868 = vld [vmem:[#allocation14 + $0x44] sm:$0xf]
        %v1869 = vld [vmem:[#allocation14 + $0x48] sm:$0xf]
        %v1870 = vld [vmem:[#allocation14 + $0x4c] sm:$0xf]
        %v1871 = vld [vmem:[#allocation14 + $0x50] sm:$0xf]
        %v1872 = vld [vmem:[#allocation14 + $0x54] sm:$0xf]
        %v1873 = vld [vmem:[#allocation14 + $0x58] sm:$0xf]
        %v1874 = vld [vmem:[#allocation14 + $0x5c] sm:$0xf]
        %v1875 = vld [vmem:[#allocation14 + $0x60] sm:$0xf]
        %v1876 = vld [vmem:[#allocation14 + $0x64] sm:$0xf]
        %v1877 = vld [vmem:[#allocation14 + $0x68] sm:$0xf]
        %v1878 = vld [vmem:[#allocation14 + $0x6c] sm:$0xf]
        %v1879 = vld [vmem:[#allocation14 + $0x70] sm:$0xf]
        %v1880 = vld [vmem:[#allocation14 + $0x74] sm:$0xf]
        %v1881 = vld [vmem:[#allocation14 + $0x78] sm:$0xf]
        %v1882 = vld [vmem:[#allocation14 + $0x7c] sm:$0xf]
        %v1883 = vlaneseq
        %v1884 = vshrl.u32 %v1883, 7
        %v1885 = vsub.s32 0, %v1884
        %v1886 = vrot.slane %v584, %v1885
        %v1919 = vunpack.c.l.b16 %v1851
        %v1920 = vunpack.c.l.b16 %v1852
        %v1921 = vunpack.c.l.b16 %v1853
        %v1922 = vunpack.c.l.b16 %v1854
        %v1923 = vunpack.c.l.b16 %v1855
        %v1924 = vunpack.c.l.b16 %v1856
        %v1925 = vunpack.c.l.b16 %v1857
        %v1926 = vunpack.c.l.b16 %v1858
        %v1927 = vunpack.c.l.b16 %v1859
        %v1928 = vunpack.c.l.b16 %v1860
        %v1929 = vunpack.c.l.b16 %v1861
        %v1930 = vunpack.c.l.b16 %v1862
        %v1931 = vunpack.c.l.b16 %v1863
        %v1932 = vunpack.c.l.b16 %v1864
        %v1933 = vunpack.c.l.b16 %v1865
        %v1934 = vunpack.c.l.b16 %v1866
        %v1935 = vunpack.c.l.b16 %v1867
        %v1936 = vunpack.c.l.b16 %v1868
        %v1937 = vunpack.c.l.b16 %v1869
        %v1938 = vunpack.c.l.b16 %v1870
        %v1939 = vunpack.c.l.b16 %v1871
        %v1940 = vunpack.c.l.b16 %v1872
        %v1941 = vunpack.c.l.b16 %v1873
        %v1942 = vunpack.c.l.b16 %v1874
        %v1943 = vunpack.c.l.b16 %v1875
        %v1944 = vunpack.c.l.b16 %v1876
        %v1945 = vunpack.c.l.b16 %v1877
        %v1946 = vunpack.c.l.b16 %v1878
        %v1947 = vunpack.c.l.b16 %v1879
        %v1948 = vunpack.c.l.b16 %v1880
        %v1949 = vunpack.c.l.b16 %v1881
        %v1950 = vunpack.c.l.b16 %v1882
        %v1951 = vpack.c.b16 %v1920, %v1919
        %v1952 = vpack.c.b16 %v1922, %v1921
        %v1953 = vpack.c.b16 %v1924, %v1923
        %v1954 = vpack.c.b16 %v1926, %v1925
        %v1955 = vpack.c.b16 %v1928, %v1927
        %v1956 = vpack.c.b16 %v1930, %v1929
        %v1957 = vpack.c.b16 %v1932, %v1931
        %v1958 = vpack.c.b16 %v1934, %v1933
        %v1959 = vpack.c.b16 %v1936, %v1935
        %v1960 = vpack.c.b16 %v1938, %v1937
        %v1961 = vpack.c.b16 %v1940, %v1939
        %v1962 = vpack.c.b16 %v1942, %v1941
        %v1963 = vpack.c.b16 %v1944, %v1943
        %v1964 = vpack.c.b16 %v1946, %v1945
        %v1965 = vpack.c.b16 %v1948, %v1947
        %v1966 = vpack.c.b16 %v1950, %v1949
        %1983 = vmatprep.subr.bf16.mxu0 0
        %1984 = vmatpush1.bf16.msra.mxu0 %v1958
        %1985 = vmatprep.subr.bf16.mxu0 0
        %1986 = vmatpush1.bf16.msra.mxu0 %v1957
        %1987 = vmatprep.subr.bf16.mxu0 0
        %1988 = vmatpush1.bf16.msra.mxu0 %v1956
        %1989 = vmatprep.subr.bf16.mxu0 0
        %1990 = vmatpush1.bf16.msra.mxu0 %v1955
        %1991 = vmatprep.subr.bf16.mxu0 0
        %1992 = vmatpush1.bf16.msra.mxu0 %v1954
        %1993 = vmatprep.subr.bf16.mxu0 0
        %1994 = vmatpush1.bf16.msra.mxu0 %v1953
        %1995 = vmatprep.subr.bf16.mxu0 0
        %1996 = vmatpush1.bf16.msra.mxu0 %v1952
        %1997 = vmatprep.subr.bf16.mxu0 0
        %1998 = vmatpush1.bf16.msra.mxu0 %v1951
        %1999 = vmatprep.subr.bf16.mxu0 0
        %2000 = vmatpush2.bf16.msra.mxu0 %v1966
        %2001 = vmatprep.subr.bf16.mxu0 0
        %2002 = vmatpush2.bf16.msra.mxu0 %v1965
        %2003 = vmatprep.subr.bf16.mxu0 0
        %2004 = vmatpush2.bf16.msra.mxu0 %v1964
        %2005 = vmatprep.subr.bf16.mxu0 0
        %2006 = vmatpush2.bf16.msra.mxu0 %v1963
        %2007 = vmatprep.subr.bf16.mxu0 0
        %2008 = vmatpush2.bf16.msra.mxu0 %v1962
        %2009 = vmatprep.subr.bf16.mxu0 0
        %2010 = vmatpush2.bf16.msra.mxu0 %v1961
        %2011 = vmatprep.subr.bf16.mxu0 0
        %2012 = vmatpush2.bf16.msra.mxu0 %v1960
        %2013 = vmatprep.subr.bf16.mxu0 0
        %2014 = vmatpush2.bf16.msra.mxu0 %v1959
        %2015 = vmatprep.mubr.bf16.mxu0 %v1850
        %2016 = vmatmul.mubr.bf16.gmra.mxu0 %v1849
        %v2017 = vpop.f32.mrf.mxu0
        %v2018 = vadd.f32 %v1886, %v2017
        %v2019 = vpop.f32.mrf.mxu0
        %v2020 = vpop.f32.mrf.mxu0
        %v2021 = vpop.f32.mrf.mxu0
        %2022 = vdwg.mxu0
        %v2023 = vadd.f32 %v2018, %v1680
        %2024 = vadd.xlane.f32.xlu0 %v2023
        %v2025 = vpop.xlane.xlu0 %2024
        %v2026 = vmul.f32 %v2025, %v560
        %v2027 = vsub.f32 %v2023, %v2026
        %v2028 = vmul.f32 %v2027, %v2027
        %2029 = vadd.xlane.f32.xlu0 %v2028
        %v2030 = vpop.xlane.xlu0 %2029
        %v2031 = vmul.f32 %v2030, %v560
        %v2032 = vadd.f32 %v2031, 1e-12
        %v2033 = vrsqrt.pop %v2032
        %v2034 = vmul.f32 %v2027, %v2033
        %v2035 = vlaneseq
        %v2036 = vshrl.u32 %v2035, 7
        %v2037 = vsub.s32 0, %v2036
        %v2038 = vrot.slane %v585, %v2037
        %v2039 = vmul.f32 %v2034, %v2038
        %v2040 = vlaneseq
        %v2041 = vshrl.u32 %v2040, 7
        %v2042 = vsub.s32 0, %v2041
        %v2043 = vrot.slane %v586, %v2042
        %v2044 = vadd.f32 %v2039, %v2043
        %v2045 = vld [vmem:[#allocation8 + $0x9] sm:$0x1]
        %v2046 = vld [vmem:[#allocation8 + $0xa] sm:$0x1]
        %v2047 = vld [vmem:[#allocation8 + $0xb] sm:$0x1]
        %v2048 = vld [vmem:[#allocation8 + $0xc] sm:$0x1]
        %v2049 = vld [vmem:[#allocation8 + $0xd] sm:$0x1]
        %v2050 = vld [vmem:[#allocation8 + $0xe] sm:$0x1]
        %v2051 = vpack.c.bf16 %v2044, %v2044
        %s2052 = scalar_lea.vmem [#allocation10], 192
        %v2053 = vld [vmem:[%s2052] sm:$0xff]
        %v2054 = vld [vmem:[%s2052 + $0x8] sm:$0xf]
        %v2055 = vld [vmem:[%s2052 + $0xc] sm:$0xff]
        %v2056 = vld [vmem:[%s2052 + $0x14] sm:$0xf]
        %v2057 = vld [vmem:[%s2052 + $0x18] sm:$0xff]
        %v2058 = vld [vmem:[%s2052 + $0x20] sm:$0xf]
        %v2059 = vld [vmem:[%s2052 + $0x24] sm:$0xff]
        %v2060 = vld [vmem:[%s2052 + $0x2c] sm:$0xf]
        %v2061 = vld [vmem:[%s2052 + $0x30] sm:$0xff]
        %v2062 = vld [vmem:[%s2052 + $0x38] sm:$0xf]
        %v2063 = vld [vmem:[%s2052 + $0x3c] sm:$0xff]
        %v2064 = vld [vmem:[%s2052 + $0x44] sm:$0xf]
        %v2065 = vld [vmem:[%s2052 + $0x48] sm:$0xff]
        %v2066 = vld [vmem:[%s2052 + $0x50] sm:$0xf]
        %v2067 = vld [vmem:[%s2052 + $0x54] sm:$0xff]
        %v2068 = vld [vmem:[%s2052 + $0x5c] sm:$0xf]
        %v2069 = vld [vmem:[%s2052 + $0x60] sm:$0xff]
        %v2070 = vld [vmem:[%s2052 + $0x68] sm:$0xf]
        %v2071 = vld [vmem:[%s2052 + $0x6c] sm:$0xff]
        %v2072 = vld [vmem:[%s2052 + $0x74] sm:$0xf]
        %v2073 = vld [vmem:[%s2052 + $0x78] sm:$0xff]
        %v2074 = vld [vmem:[%s2052 + $0x80] sm:$0xf]
        %v2075 = vld [vmem:[%s2052 + $0x84] sm:$0xff]
        %v2076 = vld [vmem:[%s2052 + $0x8c] sm:$0xf]
        %v2077 = vld [vmem:[%s2052 + $0x90] sm:$0xff]
        %v2078 = vld [vmem:[%s2052 + $0x98] sm:$0xf]
        %v2079 = vld [vmem:[%s2052 + $0x9c] sm:$0xff]
        %v2080 = vld [vmem:[%s2052 + $0xa4] sm:$0xf]
        %v2081 = vld [vmem:[%s2052 + $0xa8] sm:$0xff]
        %v2082 = vld [vmem:[%s2052 + $0xb0] sm:$0xf]
        %v2083 = vld [vmem:[%s2052 + $0xb4] sm:$0xff]
        %v2084 = vld [vmem:[%s2052 + $0xbc] sm:$0xf]
        %s2085 = scalar_lea.vmem %s5, 3
        %v2086 = vld [vmem:[%s2085] sm:$0x7]
        %v2088 = vlaneseq
        %v2089 = vshrl.u32 %v2088, 7
        %v2090 = vsub.s32 0, %v2089
        %v2091 = vrot.slane %v2086, %v2090
        %v2092 = vlaneseq
        %v2093 = vshrl.u32 %v2092, 7
        %v2094 = vsub.s32 1, %v2093
        %v2095 = vrot.slane %v2086, %v2094
        %v2096 = vlaneseq
        %v2097 = vshrl.u32 %v2096, 7
        %v2098 = vsub.s32 2, %v2097
        %v2099 = vrot.slane %v2086, %v2098
        %v2135 = vunpack.c.l.b16 %v2053
        %v2136 = vunpack.c.h.b16 %v2053
        %v2137 = vunpack.c.l.b16 %v2054
        %v2138 = vunpack.c.l.b16 %v2055
        %v2139 = vunpack.c.h.b16 %v2055
        %v2140 = vunpack.c.l.b16 %v2056
        %v2141 = vunpack.c.l.b16 %v2057
        %v2142 = vunpack.c.h.b16 %v2057
        %v2143 = vunpack.c.l.b16 %v2058
        %v2144 = vunpack.c.l.b16 %v2059
        %v2145 = vunpack.c.h.b16 %v2059
        %v2146 = vunpack.c.l.b16 %v2060
        %v2147 = vunpack.c.l.b16 %v2061
        %v2148 = vunpack.c.h.b16 %v2061
        %v2149 = vunpack.c.l.b16 %v2062
        %v2150 = vunpack.c.l.b16 %v2063
        %v2151 = vunpack.c.h.b16 %v2063
        %v2152 = vunpack.c.l.b16 %v2064
        %v2153 = vunpack.c.l.b16 %v2065
        %v2154 = vunpack.c.h.b16 %v2065
        %v2155 = vunpack.c.l.b16 %v2066
        %v2156 = vunpack.c.l.b16 %v2067
        %v2157 = vunpack.c.h.b16 %v2067
        %v2158 = vunpack.c.l.b16 %v2068
        %v2159 = vunpack.c.l.b16 %v2069
        %v2160 = vunpack.c.h.b16 %v2069
        %v2161 = vunpack.c.l.b16 %v2070
        %v2162 = vunpack.c.l.b16 %v2071
        %v2163 = vunpack.c.h.b16 %v2071
        %v2164 = vunpack.c.l.b16 %v2072
        %v2165 = vunpack.c.l.b16 %v2073
        %v2166 = vunpack.c.h.b16 %v2073
        %v2167 = vunpack.c.l.b16 %v2074
        %v2168 = vunpack.c.l.b16 %v2075
        %v2169 = vunpack.c.h.b16 %v2075
        %v2170 = vunpack.c.l.b16 %v2076
        %v2171 = vunpack.c.l.b16 %v2077
        %v2172 = vunpack.c.h.b16 %v2077
        %v2173 = vunpack.c.l.b16 %v2078
        %v2174 = vunpack.c.l.b16 %v2079
        %v2175 = vunpack.c.h.b16 %v2079
        %v2176 = vunpack.c.l.b16 %v2080
        %v2177 = vunpack.c.l.b16 %v2081
        %v2178 = vunpack.c.h.b16 %v2081
        %v2179 = vunpack.c.l.b16 %v2082
        %v2180 = vunpack.c.l.b16 %v2083
        %v2181 = vunpack.c.h.b16 %v2083
        %v2182 = vunpack.c.l.b16 %v2084
        %v2183 = vpack.c.b16 %v2138, %v2135
        %v2184 = vpack.c.b16 %v2139, %v2136
        %v2185 = vpack.c.b16 %v2140, %v2137
        %v2186 = vpack.c.b16 %v2144, %v2141
        %v2187 = vpack.c.b16 %v2145, %v2142
        %v2188 = vpack.c.b16 %v2146, %v2143
        %v2189 = vpack.c.b16 %v2150, %v2147
        %v2190 = vpack.c.b16 %v2151, %v2148
        %v2191 = vpack.c.b16 %v2152, %v2149
        %v2192 = vpack.c.b16 %v2156, %v2153
        %v2193 = vpack.c.b16 %v2157, %v2154
        %v2194 = vpack.c.b16 %v2158, %v2155
        %v2195 = vpack.c.b16 %v2162, %v2159
        %v2196 = vpack.c.b16 %v2163, %v2160
        %v2197 = vpack.c.b16 %v2164, %v2161
        %v2198 = vpack.c.b16 %v2168, %v2165
        %v2199 = vpack.c.b16 %v2169, %v2166
        %v2200 = vpack.c.b16 %v2170, %v2167
        %v2201 = vpack.c.b16 %v2174, %v2171
        %v2202 = vpack.c.b16 %v2175, %v2172
        %v2203 = vpack.c.b16 %v2176, %v2173
        %v2204 = vpack.c.b16 %v2180, %v2177
        %v2205 = vpack.c.b16 %v2181, %v2178
        %v2206 = vpack.c.b16 %v2182, %v2179
        %2231 = vmatprep.subr.bf16.mxu0 %v2205
        %2232 = vmatpush1.bf16.msra.mxu0 %v2204
        %2233 = vmatprep.subr.bf16.mxu0 %v2202
        %2234 = vmatpush1.bf16.msra.mxu0 %v2201
        %2235 = vmatprep.subr.bf16.mxu0 %v2199
        %2236 = vmatpush1.bf16.msra.mxu0 %v2198
        %2237 = vmatprep.subr.bf16.mxu0 %v2196
        %2238 = vmatpush1.bf16.msra.mxu0 %v2195
        %2239 = vmatprep.subr.bf16.mxu0 %v2193
        %2240 = vmatpush1.bf16.msra.mxu0 %v2192
        %2241 = vmatprep.subr.bf16.mxu0 %v2190
        %2242 = vmatpush1.bf16.msra.mxu0 %v2189
        %2243 = vmatprep.subr.bf16.mxu0 %v2187
        %2244 = vmatpush1.bf16.msra.mxu0 %v2186
        %2245 = vmatprep.subr.bf16.mxu0 %v2184
        %2246 = vmatpush1.bf16.msra.mxu0 %v2183
        %2247 = vmatprep.subr.bf16.mxu0 0
        %2248 = vmatpush2.bf16.msra.mxu0 0
        %2249 = vmatprep.subr.bf16.mxu0 0
        %2250 = vmatpush2.bf16.msra.mxu0 0
        %2251 = vmatprep.subr.bf16.mxu0 0
        %2252 = vmatpush2.bf16.msra.mxu0 0
        %2253 = vmatprep.subr.bf16.mxu0 0
        %2254 = vmatpush2.bf16.msra.mxu0 0
        %2255 = vmatprep.subr.bf16.mxu0 0
        %2256 = vmatpush2.bf16.msra.mxu0 0
        %2257 = vmatprep.subr.bf16.mxu0 0
        %2258 = vmatpush2.bf16.msra.mxu0 0
        %2259 = vmatprep.subr.bf16.mxu0 0
        %2260 = vmatpush2.bf16.msra.mxu0 0
        %2261 = vmatprep.subr.bf16.mxu0 0
        %2262 = vmatpush2.bf16.msra.mxu0 0
        %2263 = vmatprep.mubr.bf16.mxu0 0
        %2264 = vmatmul.mubr.bf16.gmra.mxu0 %v2051
        %v2265 = vpop.f32.mrf.mxu0
        %v2266 = vadd.f32 %v2091, %v2265
        %v2267 = vpop.f32.mrf.mxu0
        %v2268 = vadd.f32 %v2095, %v2267
        %v2269 = vpop.f32.mrf.mxu0
        %v2270 = vpop.f32.mrf.mxu0
        %2271 = vdwg.mxu0
        %2272 = vmatprep.subr.bf16.mxu0 0
        %2273 = vmatpush1.bf16.msra.mxu0 %v2206
        %2274 = vmatprep.subr.bf16.mxu0 0
        %2275 = vmatpush1.bf16.msra.mxu0 %v2203
        %2276 = vmatprep.subr.bf16.mxu0 0
        %2277 = vmatpush1.bf16.msra.mxu0 %v2200
        %2278 = vmatprep.subr.bf16.mxu0 0
        %2279 = vmatpush1.bf16.msra.mxu0 %v2197
        %2280 = vmatprep.subr.bf16.mxu0 0
        %2281 = vmatpush1.bf16.msra.mxu0 %v2194
        %2282 = vmatprep.subr.bf16.mxu0 0
        %2283 = vmatpush1.bf16.msra.mxu0 %v2191
        %2284 = vmatprep.subr.bf16.mxu0 0
        %2285 = vmatpush1.bf16.msra.mxu0 %v2188
        %2286 = vmatprep.subr.bf16.mxu0 0
        %2287 = vmatpush1.bf16.msra.mxu0 %v2185
        %2288 = vmatprep.subr.bf16.mxu0 0
        %2289 = vmatpush2.bf16.msra.mxu0 0
        %2290 = vmatprep.subr.bf16.mxu0 0
        %2291 = vmatpush2.bf16.msra.mxu0 0
        %2292 = vmatprep.subr.bf16.mxu0 0
        %2293 = vmatpush2.bf16.msra.mxu0 0
        %2294 = vmatprep.subr.bf16.mxu0 0
        %2295 = vmatpush2.bf16.msra.mxu0 0
        %2296 = vmatprep.subr.bf16.mxu0 0
        %2297 = vmatpush2.bf16.msra.mxu0 0
        %2298 = vmatprep.subr.bf16.mxu0 0
        %2299 = vmatpush2.bf16.msra.mxu0 0
        %2300 = vmatprep.subr.bf16.mxu0 0
        %2301 = vmatpush2.bf16.msra.mxu0 0
        %2302 = vmatprep.subr.bf16.mxu0 0
        %2303 = vmatpush2.bf16.msra.mxu0 0
        %2304 = vmatprep.mubr.bf16.mxu0 0
        %2305 = vmatmul.mubr.bf16.gmra.mxu0 %v2051
        %v2306 = vpop.f32.mrf.mxu0
        %v2307 = vadd.f32 %v2099, %v2306
        %v2308 = vpop.f32.mrf.mxu0
        %v2309 = vpop.f32.mrf.mxu0
        %v2310 = vpop.f32.mrf.mxu0
        %2311 = vdwg.mxu0
        %2313 = vrot.lane.b32.xlu0 %v2266, 64
        %v2314 = vpop.permute.xlu0 %2313
        %v2316 = vcombine.high %v2266, 0.0
        %v2318 = vunpack.c.l.s4 1983009808
        %v2319 = vunpack.c.0.s8 %v2318
        %v2320 = vlaneseq
        %v2321 = vshrl.u32 %v2320, 7
        %v2322 = vsub.s32 %v2319, %v2321
        %v2323 = vrot.slane %v2266, %v2322
        %v2325 = vunpack.c.l.s4 1983009808
        %v2326 = vunpack.c.0.s8 %v2325
        %v2327 = vlaneseq
        %v2328 = vshrl.u32 %v2327, 7
        %v2329 = vsub.s32 %v2326, %v2328
        %v2330 = vrot.slane %v2316, %v2329
        %v2331 = vcombine.high %v2314, 0.0
        %v2333 = vunpack.c.l.s4 1983009808
        %v2334 = vunpack.c.0.s8 %v2333
        %v2335 = vlaneseq
        %v2336 = vshrl.u32 %v2335, 7
        %v2337 = vsub.s32 %v2334, %v2336
        %v2338 = vrot.slane %v2314, %v2337
        %v2340 = vunpack.c.l.s4 1983009808
        %v2341 = vunpack.c.0.s8 %v2340
        %v2342 = vlaneseq
        %v2343 = vshrl.u32 %v2342, 7
        %v2344 = vsub.s32 %v2341, %v2343
        %v2345 = vrot.slane %v2331, %v2344
        %v2346 = vcombine.low %v2323, %v2338
        %v2347 = vcombine.high %v2323, %v2338
        %v2349 = vunpack.c.l.s4 1934713408
        %v2350 = vunpack.c.0.s8 %v2349
        %v2351 = vlaneseq
        %v2352 = vshrl.u32 %v2351, 7
        %v2353 = vsub.s32 %v2350, %v2352
        %v2354 = vrot.slane %v2346, %v2353
        %v2356 = vunpack.c.l.s4 1934713408
        %v2357 = vunpack.c.0.s8 %v2356
        %v2358 = vlaneseq
        %v2359 = vshrl.u32 %v2358, 7
        %v2360 = vsub.s32 %v2357, %v2359
        %v2361 = vrot.slane %v2347, %v2360
        %v2362 = vcombine.low %v2330, %v2345
        %v2363 = vcombine.high %v2330, %v2345
        %v2365 = vunpack.c.l.s4 1934713408
        %v2366 = vunpack.c.0.s8 %v2365
        %v2367 = vlaneseq
        %v2368 = vshrl.u32 %v2367, 7
        %v2369 = vsub.s32 %v2366, %v2368
        %v2370 = vrot.slane %v2362, %v2369
        %v2372 = vunpack.c.l.s4 1934713408
        %v2373 = vunpack.c.0.s8 %v2372
        %v2374 = vlaneseq
        %v2375 = vshrl.u32 %v2374, 7
        %v2376 = vsub.s32 %v2373, %v2375
        %v2377 = vrot.slane %v2363, %v2376
        %v2378 = vcombine.high %v2354, 0.0
        %v2379 = vcombine.high %v2361, 0.0
        %v2380 = vcombine.high %v2370, 0.0
        %v2381 = vcombine.high %v2377, 0.0
        %v2382 = vcombine.low %v2354, %v2361
        %v2384 = vunpack.c.l.s4 1983009808
        %v2385 = vunpack.c.0.s8 %v2384
        %v2386 = vlaneseq
        %v2387 = vshrl.u32 %v2386, 7
        %v2388 = vsub.s32 %v2385, %v2387
        %v2389 = vrot.slane %v2382, %v2388
        %v2390 = vcombine.low %v2378, %v2379
        %v2392 = vunpack.c.l.s4 1983009808
        %v2393 = vunpack.c.0.s8 %v2392
        %v2394 = vlaneseq
        %v2395 = vshrl.u32 %v2394, 7
        %v2396 = vsub.s32 %v2393, %v2395
        %v2397 = vrot.slane %v2390, %v2396
        %v2398 = vcombine.low %v2370, %v2377
        %v2400 = vunpack.c.l.s4 1983009808
        %v2401 = vunpack.c.0.s8 %v2400
        %v2402 = vlaneseq
        %v2403 = vshrl.u32 %v2402, 7
        %v2404 = vsub.s32 %v2401, %v2403
        %v2405 = vrot.slane %v2398, %v2404
        %v2406 = vcombine.low %v2380, %v2381
        %v2408 = vunpack.c.l.s4 1983009808
        %v2409 = vunpack.c.0.s8 %v2408
        %v2410 = vlaneseq
        %v2411 = vshrl.u32 %v2410, 7
        %v2412 = vsub.s32 %v2409, %v2411
        %v2413 = vrot.slane %v2406, %v2412
        %v2414 = vcombine.low %v2389, %v2397
        %v2416 = vunpack.c.l.s4 1934713408
        %v2417 = vunpack.c.0.s8 %v2416
        %v2418 = vlaneseq
        %v2419 = vshrl.u32 %v2418, 7
        %v2420 = vsub.s32 %v2417, %v2419
        %v2421 = vrot.slane %v2414, %v2420
        %v2422 = vcombine.low %v2405, %v2413
        %v2424 = vunpack.c.l.s4 1934713408
        %v2425 = vunpack.c.0.s8 %v2424
        %v2426 = vlaneseq
        %v2427 = vshrl.u32 %v2426, 7
        %v2428 = vsub.s32 %v2425, %v2427
        %v2429 = vrot.slane %v2422, %v2428
        %v2430 = vcombine.low %v2421, %v2429
        %v2431 = vcombine.high %v2421, %v2429
        %v2432 = vpack.c.bf16 %v2430, %v2430
        %v2433 = vpack.c.bf16 %v2431, %v2431
        %2435 = vrot.lane.b32.xlu0 %v2268, 64
        %v2436 = vpop.permute.xlu0 %2435
        %v2438 = vcombine.high %v2268, 0.0
        %v2440 = vunpack.c.l.s4 1983009808
        %v2441 = vunpack.c.0.s8 %v2440
        %v2442 = vlaneseq
        %v2443 = vshrl.u32 %v2442, 7
        %v2444 = vsub.s32 %v2441, %v2443
        %v2445 = vrot.slane %v2268, %v2444
        %v2447 = vunpack.c.l.s4 1983009808
        %v2448 = vunpack.c.0.s8 %v2447
        %v2449 = vlaneseq
        %v2450 = vshrl.u32 %v2449, 7
        %v2451 = vsub.s32 %v2448, %v2450
        %v2452 = vrot.slane %v2438, %v2451
        %v2453 = vcombine.high %v2436, 0.0
        %v2455 = vunpack.c.l.s4 1983009808
        %v2456 = vunpack.c.0.s8 %v2455
        %v2457 = vlaneseq
        %v2458 = vshrl.u32 %v2457, 7
        %v2459 = vsub.s32 %v2456, %v2458
        %v2460 = vrot.slane %v2436, %v2459
        %v2462 = vunpack.c.l.s4 1983009808
        %v2463 = vunpack.c.0.s8 %v2462
        %v2464 = vlaneseq
        %v2465 = vshrl.u32 %v2464, 7
        %v2466 = vsub.s32 %v2463, %v2465
        %v2467 = vrot.slane %v2453, %v2466
        %v2468 = vcombine.low %v2445, %v2460
        %v2469 = vcombine.high %v2445, %v2460
        %v2471 = vunpack.c.l.s4 1934713408
        %v2472 = vunpack.c.0.s8 %v2471
        %v2473 = vlaneseq
        %v2474 = vshrl.u32 %v2473, 7
        %v2475 = vsub.s32 %v2472, %v2474
        %v2476 = vrot.slane %v2468, %v2475
        %v2478 = vunpack.c.l.s4 1934713408
        %v2479 = vunpack.c.0.s8 %v2478
        %v2480 = vlaneseq
        %v2481 = vshrl.u32 %v2480, 7
        %v2482 = vsub.s32 %v2479, %v2481
        %v2483 = vrot.slane %v2469, %v2482
        %v2484 = vcombine.low %v2452, %v2467
        %v2485 = vcombine.high %v2452, %v2467
        %v2487 = vunpack.c.l.s4 1934713408
        %v2488 = vunpack.c.0.s8 %v2487
        %v2489 = vlaneseq
        %v2490 = vshrl.u32 %v2489, 7
        %v2491 = vsub.s32 %v2488, %v2490
        %v2492 = vrot.slane %v2484, %v2491
        %v2494 = vunpack.c.l.s4 1934713408
        %v2495 = vunpack.c.0.s8 %v2494
        %v2496 = vlaneseq
        %v2497 = vshrl.u32 %v2496, 7
        %v2498 = vsub.s32 %v2495, %v2497
        %v2499 = vrot.slane %v2485, %v2498
        %v2500 = vcombine.high %v2476, 0.0
        %v2501 = vcombine.high %v2483, 0.0
        %v2502 = vcombine.high %v2492, 0.0
        %v2503 = vcombine.high %v2499, 0.0
        %v2504 = vcombine.low %v2476, %v2483
        %v2506 = vunpack.c.l.s4 1983009808
        %v2507 = vunpack.c.0.s8 %v2506
        %v2508 = vlaneseq
        %v2509 = vshrl.u32 %v2508, 7
        %v2510 = vsub.s32 %v2507, %v2509
        %v2511 = vrot.slane %v2504, %v2510
        %v2512 = vcombine.low %v2500, %v2501
        %v2514 = vunpack.c.l.s4 1983009808
        %v2515 = vunpack.c.0.s8 %v2514
        %v2516 = vlaneseq
        %v2517 = vshrl.u32 %v2516, 7
        %v2518 = vsub.s32 %v2515, %v2517
        %v2519 = vrot.slane %v2512, %v2518
        %v2520 = vcombine.low %v2492, %v2499
        %v2522 = vunpack.c.l.s4 1983009808
        %v2523 = vunpack.c.0.s8 %v2522
        %v2524 = vlaneseq
        %v2525 = vshrl.u32 %v2524, 7
        %v2526 = vsub.s32 %v2523, %v2525
        %v2527 = vrot.slane %v2520, %v2526
        %v2528 = vcombine.low %v2502, %v2503
        %v2530 = vunpack.c.l.s4 1983009808
        %v2531 = vunpack.c.0.s8 %v2530
        %v2532 = vlaneseq
        %v2533 = vshrl.u32 %v2532, 7
        %v2534 = vsub.s32 %v2531, %v2533
        %v2535 = vrot.slane %v2528, %v2534
        %v2536 = vcombine.low %v2511, %v2519
        %v2538 = vunpack.c.l.s4 1934713408
        %v2539 = vunpack.c.0.s8 %v2538
        %v2540 = vlaneseq
        %v2541 = vshrl.u32 %v2540, 7
        %v2542 = vsub.s32 %v2539, %v2541
        %v2543 = vrot.slane %v2536, %v2542
        %v2544 = vcombine.low %v2527, %v2535
        %v2546 = vunpack.c.l.s4 1934713408
        %v2547 = vunpack.c.0.s8 %v2546
        %v2548 = vlaneseq
        %v2549 = vshrl.u32 %v2548, 7
        %v2550 = vsub.s32 %v2547, %v2549
        %v2551 = vrot.slane %v2544, %v2550
        %v2552 = vcombine.low %v2543, %v2551
        %v2553 = vcombine.high %v2543, %v2551
        %v2554 = vpack.c.bf16 %v2552, %v2552
        %v2555 = vpack.c.bf16 %v2553, %v2553
        %2557 = vrot.lane.b32.xlu0 %v2307, 64
        %v2558 = vpop.permute.xlu0 %2557
        %v2560 = vcombine.high %v2307, 0.0
        %v2562 = vunpack.c.l.s4 1983009808
        %v2563 = vunpack.c.0.s8 %v2562
        %v2564 = vlaneseq
        %v2565 = vshrl.u32 %v2564, 7
        %v2566 = vsub.s32 %v2563, %v2565
        %v2567 = vrot.slane %v2307, %v2566
        %v2569 = vunpack.c.l.s4 1983009808
        %v2570 = vunpack.c.0.s8 %v2569
        %v2571 = vlaneseq
        %v2572 = vshrl.u32 %v2571, 7
        %v2573 = vsub.s32 %v2570, %v2572
        %v2574 = vrot.slane %v2560, %v2573
        %v2575 = vcombine.high %v2558, 0.0
        %v2577 = vunpack.c.l.s4 1983009808
        %v2578 = vunpack.c.0.s8 %v2577
        %v2579 = vlaneseq
        %v2580 = vshrl.u32 %v2579, 7
        %v2581 = vsub.s32 %v2578, %v2580
        %v2582 = vrot.slane %v2558, %v2581
        %v2584 = vunpack.c.l.s4 1983009808
        %v2585 = vunpack.c.0.s8 %v2584
        %v2586 = vlaneseq
        %v2587 = vshrl.u32 %v2586, 7
        %v2588 = vsub.s32 %v2585, %v2587
        %v2589 = vrot.slane %v2575, %v2588
        %v2590 = vcombine.low %v2567, %v2582
        %v2591 = vcombine.high %v2567, %v2582
        %v2593 = vunpack.c.l.s4 1934713408
        %v2594 = vunpack.c.0.s8 %v2593
        %v2595 = vlaneseq
        %v2596 = vshrl.u32 %v2595, 7
        %v2597 = vsub.s32 %v2594, %v2596
        %v2598 = vrot.slane %v2590, %v2597
        %v2600 = vunpack.c.l.s4 1934713408
        %v2601 = vunpack.c.0.s8 %v2600
        %v2602 = vlaneseq
        %v2603 = vshrl.u32 %v2602, 7
        %v2604 = vsub.s32 %v2601, %v2603
        %v2605 = vrot.slane %v2591, %v2604
        %v2606 = vcombine.low %v2574, %v2589
        %v2607 = vcombine.high %v2574, %v2589
        %v2609 = vunpack.c.l.s4 1934713408
        %v2610 = vunpack.c.0.s8 %v2609
        %v2611 = vlaneseq
        %v2612 = vshrl.u32 %v2611, 7
        %v2613 = vsub.s32 %v2610, %v2612
        %v2614 = vrot.slane %v2606, %v2613
        %v2616 = vunpack.c.l.s4 1934713408
        %v2617 = vunpack.c.0.s8 %v2616
        %v2618 = vlaneseq
        %v2619 = vshrl.u32 %v2618, 7
        %v2620 = vsub.s32 %v2617, %v2619
        %v2621 = vrot.slane %v2607, %v2620
        %v2622 = vcombine.high %v2598, 0.0
        %v2623 = vcombine.high %v2605, 0.0
        %v2624 = vcombine.high %v2614, 0.0
        %v2625 = vcombine.high %v2621, 0.0
        %v2626 = vcombine.low %v2598, %v2605
        %v2628 = vunpack.c.l.s4 1983009808
        %v2629 = vunpack.c.0.s8 %v2628
        %v2630 = vlaneseq
        %v2631 = vshrl.u32 %v2630, 7
        %v2632 = vsub.s32 %v2629, %v2631
        %v2633 = vrot.slane %v2626, %v2632
        %v2634 = vcombine.low %v2622, %v2623
        %v2636 = vunpack.c.l.s4 1983009808
        %v2637 = vunpack.c.0.s8 %v2636
        %v2638 = vlaneseq
        %v2639 = vshrl.u32 %v2638, 7
        %v2640 = vsub.s32 %v2637, %v2639
        %v2641 = vrot.slane %v2634, %v2640
        %v2642 = vcombine.low %v2614, %v2621
        %v2644 = vunpack.c.l.s4 1983009808
        %v2645 = vunpack.c.0.s8 %v2644
        %v2646 = vlaneseq
        %v2647 = vshrl.u32 %v2646, 7
        %v2648 = vsub.s32 %v2645, %v2647
        %v2649 = vrot.slane %v2642, %v2648
        %v2650 = vcombine.low %v2624, %v2625
        %v2652 = vunpack.c.l.s4 1983009808
        %v2653 = vunpack.c.0.s8 %v2652
        %v2654 = vlaneseq
        %v2655 = vshrl.u32 %v2654, 7
        %v2656 = vsub.s32 %v2653, %v2655
        %v2657 = vrot.slane %v2650, %v2656
        %v2658 = vcombine.low %v2633, %v2641
        %v2660 = vunpack.c.l.s4 1934713408
        %v2661 = vunpack.c.0.s8 %v2660
        %v2662 = vlaneseq
        %v2663 = vshrl.u32 %v2662, 7
        %v2664 = vsub.s32 %v2661, %v2663
        %v2665 = vrot.slane %v2658, %v2664
        %v2666 = vcombine.low %v2649, %v2657
        %v2668 = vunpack.c.l.s4 1934713408
        %v2669 = vunpack.c.0.s8 %v2668
        %v2670 = vlaneseq
        %v2671 = vshrl.u32 %v2670, 7
        %v2672 = vsub.s32 %v2669, %v2671
        %v2673 = vrot.slane %v2666, %v2672
        %v2674 = vcombine.low %v2665, %v2673
        %v2675 = vcombine.high %v2665, %v2673
        %v2676 = vpack.c.bf16 %v2674, %v2674
        %v2677 = vpack.c.bf16 %v2675, %v2675
        %v2679 = vsel %vm1218, %v2432, 0
        %v2682 = vsel %vm1218, %v2554, 0
        %2684 = vmatprep.subr.bf16.mxu0 0
        %2685 = vmatpush1.bf16.xpose.msra.mxu0 0
        %2686 = vmatprep.subr.bf16.mxu0 0
        %2687 = vmatpush1.bf16.xpose.msra.mxu0 0
        %2688 = vmatprep.subr.bf16.mxu0 0
        %2689 = vmatpush1.bf16.xpose.msra.mxu0 0
        %2690 = vmatprep.subr.bf16.mxu0 0
        %2691 = vmatpush1.bf16.xpose.msra.mxu0 0
        %2692 = vmatprep.subr.bf16.mxu0 0
        %2693 = vmatpush1.bf16.xpose.msra.mxu0 0
        %2694 = vmatprep.subr.bf16.mxu0 0
        %2695 = vmatpush1.bf16.xpose.msra.mxu0 0
        %2696 = vmatprep.subr.bf16.mxu0 0
        %2697 = vmatpush1.bf16.xpose.msra.mxu0 0
        %2698 = vmatprep.subr.bf16.mxu0 0
        %2699 = vmatpush1.bf16.xpose.msra.mxu0 %v2682
        %2700 = vmatprep.subr.bf16.mxu0 0
        %2701 = vmatpush2.bf16.xpose.msra.mxu0 0
        %2702 = vmatprep.subr.bf16.mxu0 0
        %2703 = vmatpush2.bf16.xpose.msra.mxu0 0
        %2704 = vmatprep.subr.bf16.mxu0 0
        %2705 = vmatpush2.bf16.xpose.msra.mxu0 0
        %2706 = vmatprep.subr.bf16.mxu0 0
        %2707 = vmatpush2.bf16.xpose.msra.mxu0 0
        %2708 = vmatprep.subr.bf16.mxu0 0
        %2709 = vmatpush2.bf16.xpose.msra.mxu0 0
        %2710 = vmatprep.subr.bf16.mxu0 0
        %2711 = vmatpush2.bf16.xpose.msra.mxu0 0
        %2712 = vmatprep.subr.bf16.mxu0 0
        %2713 = vmatpush2.bf16.xpose.msra.mxu0 0
        %2714 = vmatprep.subr.bf16.mxu0 0
        %2715 = vmatpush2.bf16.xpose.msra.mxu0 0
        %2716 = vmatprep.mubr.bf16.mxu0 0
        %2717 = vmatmul.mubr.bf16.gmra.mxu0 %v2679
        %v2718 = vpop.f32.mrf.mxu0
        %v2719 = vadd.f32 %v1216, %v2718
        %v2720 = vpop.f32.mrf.mxu0
        %v2721 = vpop.f32.mrf.mxu0
        %v2722 = vpop.f32.mrf.mxu0
        %2723 = vdwg.mxu0
        %v2725 = vsel %vm1218, %v2433, 0
        %v2728 = vsel %vm1218, %v2555, 0
        %2730 = vmatprep.subr.bf16.mxu0 0
        %2731 = vmatpush1.bf16.xpose.msra.mxu0 0
        %2732 = vmatprep.subr.bf16.mxu0 0
        %2733 = vmatpush1.bf16.xpose.msra.mxu0 0
        %2734 = vmatprep.subr.bf16.mxu0 0
        %2735 = vmatpush1.bf16.xpose.msra.mxu0 0
        %2736 = vmatprep.subr.bf16.mxu0 0
        %2737 = vmatpush1.bf16.xpose.msra.mxu0 0
        %2738 = vmatprep.subr.bf16.mxu0 0
        %2739 = vmatpush1.bf16.xpose.msra.mxu0 0
        %2740 = vmatprep.subr.bf16.mxu0 0
        %2741 = vmatpush1.bf16.xpose.msra.mxu0 0
        %2742 = vmatprep.subr.bf16.mxu0 0
        %2743 = vmatpush1.bf16.xpose.msra.mxu0 0
        %2744 = vmatprep.subr.bf16.mxu0 0
        %2745 = vmatpush1.bf16.xpose.msra.mxu0 %v2728
        %2746 = vmatprep.subr.bf16.mxu0 0
        %2747 = vmatpush2.bf16.xpose.msra.mxu0 0
        %2748 = vmatprep.subr.bf16.mxu0 0
        %2749 = vmatpush2.bf16.xpose.msra.mxu0 0
        %2750 = vmatprep.subr.bf16.mxu0 0
        %2751 = vmatpush2.bf16.xpose.msra.mxu0 0
        %2752 = vmatprep.subr.bf16.mxu0 0
        %2753 = vmatpush2.bf16.xpose.msra.mxu0 0
        %2754 = vmatprep.subr.bf16.mxu0 0
        %2755 = vmatpush2.bf16.xpose.msra.mxu0 0
        %2756 = vmatprep.subr.bf16.mxu0 0
        %2757 = vmatpush2.bf16.xpose.msra.mxu0 0
        %2758 = vmatprep.subr.bf16.mxu0 0
        %2759 = vmatpush2.bf16.xpose.msra.mxu0 0
        %2760 = vmatprep.subr.bf16.mxu0 0
        %2761 = vmatpush2.bf16.xpose.msra.mxu0 0
        %2762 = vmatprep.mubr.bf16.mxu0 0
        %2763 = vmatmul.mubr.bf16.gmra.mxu0 %v2725
        %v2764 = vpop.f32.mrf.mxu0
        %v2765 = vadd.f32 %v1216, %v2764
        %v2766 = vpop.f32.mrf.mxu0
        %v2767 = vpop.f32.mrf.mxu0
        %v2768 = vpop.f32.mrf.mxu0
        %2769 = vdwg.mxu0
        %v2770 = vsel %vm1311, %v2719, -inf
        %2771 = vmax.xlane.f32.xlu0 %v2770
        %v2772 = vpop.xlane.xlu0 %2771
        %v2773 = vsel %vm1311, %v2765, -inf
        %2774 = vmax.xlane.f32.xlu0 %v2773
        %v2775 = vpop.xlane.xlu0 %2774
        %v2776 = vsub.f32 %v2719, %v2772
        %v2777 = vsub.f32 %v2765, %v2775
        %v2778 = vmul.f32 %v2776, 1.442695
        %v2779 = vpow.pop %v2778
        %v2780 = vmul.f32 %v2777, 1.442695
        %v2781 = vpow.pop %v2780
        %v2782 = vsel %vm1311, %v2779, 0.0
        %2783 = vadd.xlane.f32.xlu0 %v2782
        %v2784 = vpop.xlane.xlu0 %2783
        %v2785 = vsel %vm1311, %v2781, 0.0
        %2786 = vadd.xlane.f32.xlu0 %v2785
        %v2787 = vpop.xlane.xlu0 %2786
        %v2788 = vrcp.pop %v2784
        %v2789 = vrcp.pop %v2787
        %v2790 = vmul.f32 %v2779, %v2788
        %v2791 = vmul.f32 %v2781, %v2789
        %v2792 = vpack.c.bf16 %v2790, %v2790
        %v2793 = vpack.c.bf16 %v2791, %v2791
        %v2795 = vsel %vm1311, %v2792, 0
        %v2798 = vsel %vm1339, %v2676, 0
        %2800 = vmatprep.subr.bf16.mxu0 0
        %2801 = vmatpush1.bf16.msra.mxu0 0
        %2802 = vmatprep.subr.bf16.mxu0 0
        %2803 = vmatpush1.bf16.msra.mxu0 0
        %2804 = vmatprep.subr.bf16.mxu0 0
        %2805 = vmatpush1.bf16.msra.mxu0 0
        %2806 = vmatprep.subr.bf16.mxu0 0
        %2807 = vmatpush1.bf16.msra.mxu0 0
        %2808 = vmatprep.subr.bf16.mxu0 0
        %2809 = vmatpush1.bf16.msra.mxu0 0
        %2810 = vmatprep.subr.bf16.mxu0 0
        %2811 = vmatpush1.bf16.msra.mxu0 0
        %2812 = vmatprep.subr.bf16.mxu0 0
        %2813 = vmatpush1.bf16.msra.mxu0 0
        %2814 = vmatprep.subr.bf16.mxu0 0
        %2815 = vmatpush1.bf16.msra.mxu0 %v2798
        %2816 = vmatprep.subr.bf16.mxu0 0
        %2817 = vmatpush2.bf16.msra.mxu0 0
        %2818 = vmatprep.subr.bf16.mxu0 0
        %2819 = vmatpush2.bf16.msra.mxu0 0
        %2820 = vmatprep.subr.bf16.mxu0 0
        %2821 = vmatpush2.bf16.msra.mxu0 0
        %2822 = vmatprep.subr.bf16.mxu0 0
        %2823 = vmatpush2.bf16.msra.mxu0 0
        %2824 = vmatprep.subr.bf16.mxu0 0
        %2825 = vmatpush2.bf16.msra.mxu0 0
        %2826 = vmatprep.subr.bf16.mxu0 0
        %2827 = vmatpush2.bf16.msra.mxu0 0
        %2828 = vmatprep.subr.bf16.mxu0 0
        %2829 = vmatpush2.bf16.msra.mxu0 0
        %2830 = vmatprep.subr.bf16.mxu0 0
        %2831 = vmatpush2.bf16.msra.mxu0 0
        %2832 = vmatprep.mubr.bf16.mxu0 0
        %2833 = vmatmul.mubr.bf16.gmra.mxu0 %v2795
        %v2834 = vpop.f32.mrf.mxu0
        %v2835 = vadd.f32 0.0, %v2834
        %v2836 = vpop.f32.mrf.mxu0
        %v2837 = vpop.f32.mrf.mxu0
        %v2838 = vpop.f32.mrf.mxu0
        %2839 = vdwg.mxu0
        %v2841 = vsel %vm1311, %v2793, 0
        %v2844 = vsel %vm1339, %v2677, 0
        %2846 = vmatprep.subr.bf16.mxu0 0
        %2847 = vmatpush1.bf16.msra.mxu0 0
        %2848 = vmatprep.subr.bf16.mxu0 0
        %2849 = vmatpush1.bf16.msra.mxu0 0
        %2850 = vmatprep.subr.bf16.mxu0 0
        %2851 = vmatpush1.bf16.msra.mxu0 0
        %2852 = vmatprep.subr.bf16.mxu0 0
        %2853 = vmatpush1.bf16.msra.mxu0 0
        %2854 = vmatprep.subr.bf16.mxu0 0
        %2855 = vmatpush1.bf16.msra.mxu0 0
        %2856 = vmatprep.subr.bf16.mxu0 0
        %2857 = vmatpush1.bf16.msra.mxu0 0
        %2858 = vmatprep.subr.bf16.mxu0 0
        %2859 = vmatpush1.bf16.msra.mxu0 0
        %2860 = vmatprep.subr.bf16.mxu0 0
        %2861 = vmatpush1.bf16.msra.mxu0 %v2844
        %2862 = vmatprep.subr.bf16.mxu0 0
        %2863 = vmatpush2.bf16.msra.mxu0 0
        %2864 = vmatprep.subr.bf16.mxu0 0
        %2865 = vmatpush2.bf16.msra.mxu0 0
        %2866 = vmatprep.subr.bf16.mxu0 0
        %2867 = vmatpush2.bf16.msra.mxu0 0
        %2868 = vmatprep.subr.bf16.mxu0 0
        %2869 = vmatpush2.bf16.msra.mxu0 0
        %2870 = vmatprep.subr.bf16.mxu0 0
        %2871 = vmatpush2.bf16.msra.mxu0 0
        %2872 = vmatprep.subr.bf16.mxu0 0
        %2873 = vmatpush2.bf16.msra.mxu0 0
        %2874 = vmatprep.subr.bf16.mxu0 0
        %2875 = vmatpush2.bf16.msra.mxu0 0
        %2876 = vmatprep.subr.bf16.mxu0 0
        %2877 = vmatpush2.bf16.msra.mxu0 0
        %2878 = vmatprep.mubr.bf16.mxu0 0
        %2879 = vmatmul.mubr.bf16.gmra.mxu0 %v2841
        %v2880 = vpop.f32.mrf.mxu0
        %v2881 = vadd.f32 0.0, %v2880
        %v2882 = vpop.f32.mrf.mxu0
        %v2883 = vpop.f32.mrf.mxu0
        %v2884 = vpop.f32.mrf.mxu0
        %2885 = vdwg.mxu0
        %v2886 = vcombine.high %v2835, 0.0
        %v2888 = vunpack.c.l.s4 1983009808
        %v2889 = vunpack.c.0.s8 %v2888
        %v2890 = vlaneseq
        %v2891 = vshrl.u32 %v2890, 7
        %v2892 = vsub.s32 %v2889, %v2891
        %v2893 = vrot.slane %v2835, %v2892
        %v2895 = vunpack.c.l.s4 1983009808
        %v2896 = vunpack.c.0.s8 %v2895
        %v2897 = vlaneseq
        %v2898 = vshrl.u32 %v2897, 7
        %v2899 = vsub.s32 %v2896, %v2898
        %v2900 = vrot.slane %v2886, %v2899
        %v2901 = vcombine.high %v2881, 0.0
        %v2903 = vunpack.c.l.s4 1983009808
        %v2904 = vunpack.c.0.s8 %v2903
        %v2905 = vlaneseq
        %v2906 = vshrl.u32 %v2905, 7
        %v2907 = vsub.s32 %v2904, %v2906
        %v2908 = vrot.slane %v2881, %v2907
        %v2910 = vunpack.c.l.s4 1983009808
        %v2911 = vunpack.c.0.s8 %v2910
        %v2912 = vlaneseq
        %v2913 = vshrl.u32 %v2912, 7
        %v2914 = vsub.s32 %v2911, %v2913
        %v2915 = vrot.slane %v2901, %v2914
        %v2916 = vcombine.low %v2893, %v2908
        %v2917 = vcombine.high %v2893, %v2908
        %v2919 = vunpack.c.l.s4 1934713408
        %v2920 = vunpack.c.0.s8 %v2919
        %v2921 = vlaneseq
        %v2922 = vshrl.u32 %v2921, 7
        %v2923 = vsub.s32 %v2920, %v2922
        %v2924 = vrot.slane %v2916, %v2923
        %v2926 = vunpack.c.l.s4 1934713408
        %v2927 = vunpack.c.0.s8 %v2926
        %v2928 = vlaneseq
        %v2929 = vshrl.u32 %v2928, 7
        %v2930 = vsub.s32 %v2927, %v2929
        %v2931 = vrot.slane %v2917, %v2930
        %v2932 = vcombine.low %v2900, %v2915
        %v2933 = vcombine.high %v2900, %v2915
        %v2935 = vunpack.c.l.s4 1934713408
        %v2936 = vunpack.c.0.s8 %v2935
        %v2937 = vlaneseq
        %v2938 = vshrl.u32 %v2937, 7
        %v2939 = vsub.s32 %v2936, %v2938
        %v2940 = vrot.slane %v2932, %v2939
        %v2942 = vunpack.c.l.s4 1934713408
        %v2943 = vunpack.c.0.s8 %v2942
        %v2944 = vlaneseq
        %v2945 = vshrl.u32 %v2944, 7
        %v2946 = vsub.s32 %v2943, %v2945
        %v2947 = vrot.slane %v2933, %v2946
        %v2948 = vcombine.high %v2924, 0.0
        %v2949 = vcombine.high %v2931, 0.0
        %v2950 = vcombine.high %v2940, 0.0
        %v2951 = vcombine.high %v2947, 0.0
        %v2952 = vcombine.low %v2924, %v2931
        %v2954 = vunpack.c.l.s4 1983009808
        %v2955 = vunpack.c.0.s8 %v2954
        %v2956 = vlaneseq
        %v2957 = vshrl.u32 %v2956, 7
        %v2958 = vsub.s32 %v2955, %v2957
        %v2959 = vrot.slane %v2952, %v2958
        %v2960 = vcombine.low %v2948, %v2949
        %v2962 = vunpack.c.l.s4 1983009808
        %v2963 = vunpack.c.0.s8 %v2962
        %v2964 = vlaneseq
        %v2965 = vshrl.u32 %v2964, 7
        %v2966 = vsub.s32 %v2963, %v2965
        %v2967 = vrot.slane %v2960, %v2966
        %v2968 = vcombine.low %v2940, %v2947
        %v2970 = vunpack.c.l.s4 1983009808
        %v2971 = vunpack.c.0.s8 %v2970
        %v2972 = vlaneseq
        %v2973 = vshrl.u32 %v2972, 7
        %v2974 = vsub.s32 %v2971, %v2973
        %v2975 = vrot.slane %v2968, %v2974
        %v2976 = vcombine.low %v2950, %v2951
        %v2978 = vunpack.c.l.s4 1983009808
        %v2979 = vunpack.c.0.s8 %v2978
        %v2980 = vlaneseq
        %v2981 = vshrl.u32 %v2980, 7
        %v2982 = vsub.s32 %v2979, %v2981
        %v2983 = vrot.slane %v2976, %v2982
        %v2984 = vcombine.low %v2959, %v2967
        %v2986 = vunpack.c.l.s4 1934713408
        %v2987 = vunpack.c.0.s8 %v2986
        %v2988 = vlaneseq
        %v2989 = vshrl.u32 %v2988, 7
        %v2990 = vsub.s32 %v2987, %v2989
        %v2991 = vrot.slane %v2984, %v2990
        %v2992 = vcombine.low %v2975, %v2983
        %v2994 = vunpack.c.l.s4 1934713408
        %v2995 = vunpack.c.0.s8 %v2994
        %v2996 = vlaneseq
        %v2997 = vshrl.u32 %v2996, 7
        %v2998 = vsub.s32 %v2995, %v2997
        %v2999 = vrot.slane %v2992, %v2998
        %v3000 = vcombine.low %v2991, %v2999
        %v3001 = vcombine.high %v2991, %v2999
        %3003 = vrot.lane.b32.xlu0 %v3001, 64
        %v3004 = vpop.permute.xlu0 %3003
        %v3006 = vsel %vm1218, %v3000, %v3004
        %v3007 = vpack.c.bf16 %v3006, %v3006
        %s3008 = scalar_lea.vmem [#allocation11], 64
        %v3009 = vld [vmem:[%s3008] sm:$0xf]
        %v3010 = vld [vmem:[%s3008 + $0x4] sm:$0xf]
        %v3011 = vld [vmem:[%s3008 + $0x8] sm:$0xf]
        %v3012 = vld [vmem:[%s3008 + $0xc] sm:$0xf]
        %v3013 = vld [vmem:[%s3008 + $0x10] sm:$0xf]
        %v3014 = vld [vmem:[%s3008 + $0x14] sm:$0xf]
        %v3015 = vld [vmem:[%s3008 + $0x18] sm:$0xf]
        %v3016 = vld [vmem:[%s3008 + $0x1c] sm:$0xf]
        %v3017 = vld [vmem:[%s3008 + $0x20] sm:$0xf]
        %v3018 = vld [vmem:[%s3008 + $0x24] sm:$0xf]
        %v3019 = vld [vmem:[%s3008 + $0x28] sm:$0xf]
        %v3020 = vld [vmem:[%s3008 + $0x2c] sm:$0xf]
        %v3021 = vld [vmem:[%s3008 + $0x30] sm:$0xf]
        %v3022 = vld [vmem:[%s3008 + $0x34] sm:$0xf]
        %v3023 = vld [vmem:[%s3008 + $0x38] sm:$0xf]
        %v3024 = vld [vmem:[%s3008 + $0x3c] sm:$0xf]
        %v3025 = vlaneseq
        %v3026 = vshrl.u32 %v3025, 7
        %v3027 = vsub.s32 0, %v3026
        %v3028 = vrot.slane %v2045, %v3027
        %v3045 = vunpack.c.l.b16 %v3009
        %v3046 = vunpack.c.l.b16 %v3010
        %v3047 = vunpack.c.l.b16 %v3011
        %v3048 = vunpack.c.l.b16 %v3012
        %v3049 = vunpack.c.l.b16 %v3013
        %v3050 = vunpack.c.l.b16 %v3014
        %v3051 = vunpack.c.l.b16 %v3015
        %v3052 = vunpack.c.l.b16 %v3016
        %v3053 = vunpack.c.l.b16 %v3017
        %v3054 = vunpack.c.l.b16 %v3018
        %v3055 = vunpack.c.l.b16 %v3019
        %v3056 = vunpack.c.l.b16 %v3020
        %v3057 = vunpack.c.l.b16 %v3021
        %v3058 = vunpack.c.l.b16 %v3022
        %v3059 = vunpack.c.l.b16 %v3023
        %v3060 = vunpack.c.l.b16 %v3024
        %v3061 = vpack.c.b16 %v3046, %v3045
        %v3062 = vpack.c.b16 %v3048, %v3047
        %v3063 = vpack.c.b16 %v3050, %v3049
        %v3064 = vpack.c.b16 %v3052, %v3051
        %v3065 = vpack.c.b16 %v3054, %v3053
        %v3066 = vpack.c.b16 %v3056, %v3055
        %v3067 = vpack.c.b16 %v3058, %v3057
        %v3068 = vpack.c.b16 %v3060, %v3059
        %3077 = vmatprep.subr.bf16.mxu0 0
        %3078 = vmatpush1.bf16.msra.mxu0 %v3068
        %3079 = vmatprep.subr.bf16.mxu0 0
        %3080 = vmatpush1.bf16.msra.mxu0 %v3067
        %3081 = vmatprep.subr.bf16.mxu0 0
        %3082 = vmatpush1.bf16.msra.mxu0 %v3066
        %3083 = vmatprep.subr.bf16.mxu0 0
        %3084 = vmatpush1.bf16.msra.mxu0 %v3065
        %3085 = vmatprep.subr.bf16.mxu0 0
        %3086 = vmatpush1.bf16.msra.mxu0 %v3064
        %3087 = vmatprep.subr.bf16.mxu0 0
        %3088 = vmatpush1.bf16.msra.mxu0 %v3063
        %3089 = vmatprep.subr.bf16.mxu0 0
        %3090 = vmatpush1.bf16.msra.mxu0 %v3062
        %3091 = vmatprep.subr.bf16.mxu0 0
        %3092 = vmatpush1.bf16.msra.mxu0 %v3061
        %3093 = vmatprep.subr.bf16.mxu0 0
        %3094 = vmatpush2.bf16.msra.mxu0 0
        %3095 = vmatprep.subr.bf16.mxu0 0
        %3096 = vmatpush2.bf16.msra.mxu0 0
        %3097 = vmatprep.subr.bf16.mxu0 0
        %3098 = vmatpush2.bf16.msra.mxu0 0
        %3099 = vmatprep.subr.bf16.mxu0 0
        %3100 = vmatpush2.bf16.msra.mxu0 0
        %3101 = vmatprep.subr.bf16.mxu0 0
        %3102 = vmatpush2.bf16.msra.mxu0 0
        %3103 = vmatprep.subr.bf16.mxu0 0
        %3104 = vmatpush2.bf16.msra.mxu0 0
        %3105 = vmatprep.subr.bf16.mxu0 0
        %3106 = vmatpush2.bf16.msra.mxu0 0
        %3107 = vmatprep.subr.bf16.mxu0 0
        %3108 = vmatpush2.bf16.msra.mxu0 0
        %3109 = vmatprep.mubr.bf16.mxu0 0
        %3110 = vmatmul.mubr.bf16.gmra.mxu0 %v3007
        %v3111 = vpop.f32.mrf.mxu0
        %v3112 = vadd.f32 %v3028, %v3111
        %v3113 = vpop.f32.mrf.mxu0
        %v3114 = vpop.f32.mrf.mxu0
        %v3115 = vpop.f32.mrf.mxu0
        %3116 = vdwg.mxu0
        %v3117 = vadd.f32 %v3112, %v2044
        %3118 = vadd.xlane.f32.xlu0 %v3117
        %v3119 = vpop.xlane.xlu0 %3118
        %v3120 = vmul.f32 %v3119, %v560
        %v3121 = vsub.f32 %v3117, %v3120
        %v3122 = vmul.f32 %v3121, %v3121
        %3123 = vadd.xlane.f32.xlu0 %v3122
        %v3124 = vpop.xlane.xlu0 %3123
        %v3125 = vmul.f32 %v3124, %v560
        %v3126 = vadd.f32 %v3125, 1e-12
        %v3127 = vrsqrt.pop %v3126
        %v3128 = vmul.f32 %v3121, %v3127
        %v3129 = vlaneseq
        %v3130 = vshrl.u32 %v3129, 7
        %v3131 = vsub.s32 0, %v3130
        %v3132 = vrot.slane %v2046, %v3131
        %v3133 = vmul.f32 %v3128, %v3132
        %v3134 = vlaneseq
        %v3135 = vshrl.u32 %v3134, 7
        %v3136 = vsub.s32 0, %v3135
        %v3137 = vrot.slane %v2047, %v3136
        %v3138 = vadd.f32 %v3133, %v3137
        %v3139 = vpack.c.bf16 %v3138, %v3138
        %s3140 = scalar_lea.vmem [#allocation13], 128
        %v3141 = vld [vmem:[%s3140] sm:$0xff]
        %v3142 = vld [vmem:[%s3140 + $0x8] sm:$0xff]
        %v3143 = vld [vmem:[%s3140 + $0x10] sm:$0xff]
        %v3144 = vld [vmem:[%s3140 + $0x18] sm:$0xff]
        %v3145 = vld [vmem:[%s3140 + $0x20] sm:$0xff]
        %v3146 = vld [vmem:[%s3140 + $0x28] sm:$0xff]
        %v3147 = vld [vmem:[%s3140 + $0x30] sm:$0xff]
        %v3148 = vld [vmem:[%s3140 + $0x38] sm:$0xff]
        %v3149 = vld [vmem:[%s3140 + $0x40] sm:$0xff]
        %v3150 = vld [vmem:[%s3140 + $0x48] sm:$0xff]
        %v3151 = vld [vmem:[%s3140 + $0x50] sm:$0xff]
        %v3152 = vld [vmem:[%s3140 + $0x58] sm:$0xff]
        %v3153 = vld [vmem:[%s3140 + $0x60] sm:$0xff]
        %v3154 = vld [vmem:[%s3140 + $0x68] sm:$0xff]
        %v3155 = vld [vmem:[%s3140 + $0x70] sm:$0xff]
        %v3156 = vld [vmem:[%s3140 + $0x78] sm:$0xff]
        %s3157 = scalar_lea.vmem %s8, 2
        %v3158 = vld [vmem:[%s3157] sm:$0x3]
        %v3160 = vlaneseq
        %v3161 = vshrl.u32 %v3160, 7
        %v3162 = vsub.s32 0, %v3161
        %v3163 = vrot.slane %v3158, %v3162
        %v3164 = vlaneseq
        %v3165 = vshrl.u32 %v3164, 7
        %v3166 = vsub.s32 1, %v3165
        %v3167 = vrot.slane %v3158, %v3166
        %v3186 = vunpack.c.l.b16 %v3141
        %v3187 = vunpack.c.h.b16 %v3141
        %v3188 = vunpack.c.l.b16 %v3142
        %v3189 = vunpack.c.h.b16 %v3142
        %v3190 = vunpack.c.l.b16 %v3143
        %v3191 = vunpack.c.h.b16 %v3143
        %v3192 = vunpack.c.l.b16 %v3144
        %v3193 = vunpack.c.h.b16 %v3144
        %v3194 = vunpack.c.l.b16 %v3145
        %v3195 = vunpack.c.h.b16 %v3145
        %v3196 = vunpack.c.l.b16 %v3146
        %v3197 = vunpack.c.h.b16 %v3146
        %v3198 = vunpack.c.l.b16 %v3147
        %v3199 = vunpack.c.h.b16 %v3147
        %v3200 = vunpack.c.l.b16 %v3148
        %v3201 = vunpack.c.h.b16 %v3148
        %v3202 = vunpack.c.l.b16 %v3149
        %v3203 = vunpack.c.h.b16 %v3149
        %v3204 = vunpack.c.l.b16 %v3150
        %v3205 = vunpack.c.h.b16 %v3150
        %v3206 = vunpack.c.l.b16 %v3151
        %v3207 = vunpack.c.h.b16 %v3151
        %v3208 = vunpack.c.l.b16 %v3152
        %v3209 = vunpack.c.h.b16 %v3152
        %v3210 = vunpack.c.l.b16 %v3153
        %v3211 = vunpack.c.h.b16 %v3153
        %v3212 = vunpack.c.l.b16 %v3154
        %v3213 = vunpack.c.h.b16 %v3154
        %v3214 = vunpack.c.l.b16 %v3155
        %v3215 = vunpack.c.h.b16 %v3155
        %v3216 = vunpack.c.l.b16 %v3156
        %v3217 = vunpack.c.h.b16 %v3156
        %v3218 = vpack.c.b16 %v3188, %v3186
        %v3219 = vpack.c.b16 %v3189, %v3187
        %v3220 = vpack.c.b16 %v3192, %v3190
        %v3221 = vpack.c.b16 %v3193, %v3191
        %v3222 = vpack.c.b16 %v3196, %v3194
        %v3223 = vpack.c.b16 %v3197, %v3195
        %v3224 = vpack.c.b16 %v3200, %v3198
        %v3225 = vpack.c.b16 %v3201, %v3199
        %v3226 = vpack.c.b16 %v3204, %v3202
        %v3227 = vpack.c.b16 %v3205, %v3203
        %v3228 = vpack.c.b16 %v3208, %v3206
        %v3229 = vpack.c.b16 %v3209, %v3207
        %v3230 = vpack.c.b16 %v3212, %v3210
        %v3231 = vpack.c.b16 %v3213, %v3211
        %v3232 = vpack.c.b16 %v3216, %v3214
        %v3233 = vpack.c.b16 %v3217, %v3215
        %3250 = vmatprep.subr.bf16.mxu0 %v3233
        %3251 = vmatpush1.bf16.msra.mxu0 %v3232
        %3252 = vmatprep.subr.bf16.mxu0 %v3231
        %3253 = vmatpush1.bf16.msra.mxu0 %v3230
        %3254 = vmatprep.subr.bf16.mxu0 %v3229
        %3255 = vmatpush1.bf16.msra.mxu0 %v3228
        %3256 = vmatprep.subr.bf16.mxu0 %v3227
        %3257 = vmatpush1.bf16.msra.mxu0 %v3226
        %3258 = vmatprep.subr.bf16.mxu0 %v3225
        %3259 = vmatpush1.bf16.msra.mxu0 %v3224
        %3260 = vmatprep.subr.bf16.mxu0 %v3223
        %3261 = vmatpush1.bf16.msra.mxu0 %v3222
        %3262 = vmatprep.subr.bf16.mxu0 %v3221
        %3263 = vmatpush1.bf16.msra.mxu0 %v3220
        %3264 = vmatprep.subr.bf16.mxu0 %v3219
        %3265 = vmatpush1.bf16.msra.mxu0 %v3218
        %3266 = vmatprep.subr.bf16.mxu0 0
        %3267 = vmatpush2.bf16.msra.mxu0 0
        %3268 = vmatprep.subr.bf16.mxu0 0
        %3269 = vmatpush2.bf16.msra.mxu0 0
        %3270 = vmatprep.subr.bf16.mxu0 0
        %3271 = vmatpush2.bf16.msra.mxu0 0
        %3272 = vmatprep.subr.bf16.mxu0 0
        %3273 = vmatpush2.bf16.msra.mxu0 0
        %3274 = vmatprep.subr.bf16.mxu0 0
        %3275 = vmatpush2.bf16.msra.mxu0 0
        %3276 = vmatprep.subr.bf16.mxu0 0
        %3277 = vmatpush2.bf16.msra.mxu0 0
        %3278 = vmatprep.subr.bf16.mxu0 0
        %3279 = vmatpush2.bf16.msra.mxu0 0
        %3280 = vmatprep.subr.bf16.mxu0 0
        %3281 = vmatpush2.bf16.msra.mxu0 0
        %3282 = vmatprep.mubr.bf16.mxu0 0
        %3283 = vmatmul.mubr.bf16.gmra.mxu0 %v3139
        %v3284 = vpop.f32.mrf.mxu0
        %v3285 = vadd.f32 %v3163, %v3284
        %v3286 = vpop.f32.mrf.mxu0
        %v3287 = vadd.f32 %v3167, %v3286
        %v3288 = vpop.f32.mrf.mxu0
        %v3289 = vpop.f32.mrf.mxu0
        %3290 = vdwg.mxu0
        %v3291 = vmul.f32 %v3285, 0.5
        %v3292 = vmul.f32 %v3287, 0.5
        %v3293 = vmul.f32 %v3285, 0.044715
        %v3294 = vmul.f32 %v3287, 0.044715
        %v3295 = vmul.f32 %v3293, %v3285
        %v3296 = vmul.f32 %v3294, %v3287
        %v3297 = vmul.f32 %v3295, %v3285
        %v3298 = vmul.f32 %v3296, %v3287
        %v3299 = vadd.f32 %v3285, %v3297
        %v3300 = vadd.f32 %v3287, %v3298
        %v3301 = vmul.f32 %v3299, 0.7978846
        %v3302 = vmul.f32 %v3300, 0.7978846
        %v3303 = vtanh.pop %v3301
        %v3304 = vtanh.pop %v3302
        %v3305 = vadd.f32 %v3303, 1.0
        %v3306 = vadd.f32 %v3304, 1.0
        %v3307 = vmul.f32 %v3291, %v3305
        %v3308 = vmul.f32 %v3292, %v3306
        %v3309 = vpack.c.bf16 %v3307, %v3307
        %v3310 = vpack.c.bf16 %v3308, %v3308
        %s3311 = scalar_lea.vmem [#allocation14], 128
        %v3312 = vld [vmem:[%s3311] sm:$0xf]
        %v3313 = vld [vmem:[%s3311 + $0x4] sm:$0xf]
        %v3314 = vld [vmem:[%s3311 + $0x8] sm:$0xf]
        %v3315 = vld [vmem:[%s3311 + $0xc] sm:$0xf]
        %v3316 = vld [vmem:[%s3311 + $0x10] sm:$0xf]
        %v3317 = vld [vmem:[%s3311 + $0x14] sm:$0xf]
        %v3318 = vld [vmem:[%s3311 + $0x18] sm:$0xf]
        %v3319 = vld [vmem:[%s3311 + $0x1c] sm:$0xf]
        %v3320 = vld [vmem:[%s3311 + $0x20] sm:$0xf]
        %v3321 = vld [vmem:[%s3311 + $0x24] sm:$0xf]
        %v3322 = vld [vmem:[%s3311 + $0x28] sm:$0xf]
        %v3323 = vld [vmem:[%s3311 + $0x2c] sm:$0xf]
        %v3324 = vld [vmem:[%s3311 + $0x30] sm:$0xf]
        %v3325 = vld [vmem:[%s3311 + $0x34] sm:$0xf]
        %v3326 = vld [vmem:[%s3311 + $0x38] sm:$0xf]
        %v3327 = vld [vmem:[%s3311 + $0x3c] sm:$0xf]
        %v3328 = vld [vmem:[%s3311 + $0x40] sm:$0xf]
        %v3329 = vld [vmem:[%s3311 + $0x44] sm:$0xf]
        %v3330 = vld [vmem:[%s3311 + $0x48] sm:$0xf]
        %v3331 = vld [vmem:[%s3311 + $0x4c] sm:$0xf]
        %v3332 = vld [vmem:[%s3311 + $0x50] sm:$0xf]
        %v3333 = vld [vmem:[%s3311 + $0x54] sm:$0xf]
        %v3334 = vld [vmem:[%s3311 + $0x58] sm:$0xf]
        %v3335 = vld [vmem:[%s3311 + $0x5c] sm:$0xf]
        %v3336 = vld [vmem:[%s3311 + $0x60] sm:$0xf]
        %v3337 = vld [vmem:[%s3311 + $0x64] sm:$0xf]
        %v3338 = vld [vmem:[%s3311 + $0x68] sm:$0xf]
        %v3339 = vld [vmem:[%s3311 + $0x6c] sm:$0xf]
        %v3340 = vld [vmem:[%s3311 + $0x70] sm:$0xf]
        %v3341 = vld [vmem:[%s3311 + $0x74] sm:$0xf]
        %v3342 = vld [vmem:[%s3311 + $0x78] sm:$0xf]
        %v3343 = vld [vmem:[%s3311 + $0x7c] sm:$0xf]
        %v3344 = vlaneseq
        %v3345 = vshrl.u32 %v3344, 7
        %v3346 = vsub.s32 0, %v3345
        %v3347 = vrot.slane %v2048, %v3346
        %v3380 = vunpack.c.l.b16 %v3312
        %v3381 = vunpack.c.l.b16 %v3313
        %v3382 = vunpack.c.l.b16 %v3314
        %v3383 = vunpack.c.l.b16 %v3315
        %v3384 = vunpack.c.l.b16 %v3316
        %v3385 = vunpack.c.l.b16 %v3317
        %v3386 = vunpack.c.l.b16 %v3318
        %v3387 = vunpack.c.l.b16 %v3319
        %v3388 = vunpack.c.l.b16 %v3320
        %v3389 = vunpack.c.l.b16 %v3321
        %v3390 = vunpack.c.l.b16 %v3322
        %v3391 = vunpack.c.l.b16 %v3323
        %v3392 = vunpack.c.l.b16 %v3324
        %v3393 = vunpack.c.l.b16 %v3325
        %v3394 = vunpack.c.l.b16 %v3326
        %v3395 = vunpack.c.l.b16 %v3327
        %v3396 = vunpack.c.l.b16 %v3328
        %v3397 = vunpack.c.l.b16 %v3329
        %v3398 = vunpack.c.l.b16 %v3330
        %v3399 = vunpack.c.l.b16 %v3331
        %v3400 = vunpack.c.l.b16 %v3332
        %v3401 = vunpack.c.l.b16 %v3333
        %v3402 = vunpack.c.l.b16 %v3334
        %v3403 = vunpack.c.l.b16 %v3335
        %v3404 = vunpack.c.l.b16 %v3336
        %v3405 = vunpack.c.l.b16 %v3337
        %v3406 = vunpack.c.l.b16 %v3338
        %v3407 = vunpack.c.l.b16 %v3339
        %v3408 = vunpack.c.l.b16 %v3340
        %v3409 = vunpack.c.l.b16 %v3341
        %v3410 = vunpack.c.l.b16 %v3342
        %v3411 = vunpack.c.l.b16 %v3343
        %v3412 = vpack.c.b16 %v3381, %v3380
        %v3413 = vpack.c.b16 %v3383, %v3382
        %v3414 = vpack.c.b16 %v3385, %v3384
        %v3415 = vpack.c.b16 %v3387, %v3386
        %v3416 = vpack.c.b16 %v3389, %v3388
        %v3417 = vpack.c.b16 %v3391, %v3390
        %v3418 = vpack.c.b16 %v3393, %v3392
        %v3419 = vpack.c.b16 %v3395, %v3394
        %v3420 = vpack.c.b16 %v3397, %v3396
        %v3421 = vpack.c.b16 %v3399, %v3398
        %v3422 = vpack.c.b16 %v3401, %v3400
        %v3423 = vpack.c.b16 %v3403, %v3402
        %v3424 = vpack.c.b16 %v3405, %v3404
        %v3425 = vpack.c.b16 %v3407, %v3406
        %v3426 = vpack.c.b16 %v3409, %v3408
        %v3427 = vpack.c.b16 %v3411, %v3410
        %3444 = vmatprep.subr.bf16.mxu0 0
        %3445 = vmatpush1.bf16.msra.mxu0 %v3419
        %3446 = vmatprep.subr.bf16.mxu0 0
        %3447 = vmatpush1.bf16.msra.mxu0 %v3418
        %3448 = vmatprep.subr.bf16.mxu0 0
        %3449 = vmatpush1.bf16.msra.mxu0 %v3417
        %3450 = vmatprep.subr.bf16.mxu0 0
        %3451 = vmatpush1.bf16.msra.mxu0 %v3416
        %3452 = vmatprep.subr.bf16.mxu0 0
        %3453 = vmatpush1.bf16.msra.mxu0 %v3415
        %3454 = vmatprep.subr.bf16.mxu0 0
        %3455 = vmatpush1.bf16.msra.mxu0 %v3414
        %3456 = vmatprep.subr.bf16.mxu0 0
        %3457 = vmatpush1.bf16.msra.mxu0 %v3413
        %3458 = vmatprep.subr.bf16.mxu0 0
        %3459 = vmatpush1.bf16.msra.mxu0 %v3412
        %3460 = vmatprep.subr.bf16.mxu0 0
        %3461 = vmatpush2.bf16.msra.mxu0 %v3427
        %3462 = vmatprep.subr.bf16.mxu0 0
        %3463 = vmatpush2.bf16.msra.mxu0 %v3426
        %3464 = vmatprep.subr.bf16.mxu0 0
        %3465 = vmatpush2.bf16.msra.mxu0 %v3425
        %3466 = vmatprep.subr.bf16.mxu0 0
        %3467 = vmatpush2.bf16.msra.mxu0 %v3424
        %3468 = vmatprep.subr.bf16.mxu0 0
        %3469 = vmatpush2.bf16.msra.mxu0 %v3423
        %3470 = vmatprep.subr.bf16.mxu0 0
        %3471 = vmatpush2.bf16.msra.mxu0 %v3422
        %3472 = vmatprep.subr.bf16.mxu0 0
        %3473 = vmatpush2.bf16.msra.mxu0 %v3421
        %3474 = vmatprep.subr.bf16.mxu0 0
        %3475 = vmatpush2.bf16.msra.mxu0 %v3420
        %3476 = vmatprep.mubr.bf16.mxu0 %v3310
        %3477 = vmatmul.mubr.bf16.gmra.mxu0 %v3309
        %v3478 = vpop.f32.mrf.mxu0
        %v3479 = vadd.f32 %v3347, %v3478
        %v3480 = vpop.f32.mrf.mxu0
        %v3481 = vpop.f32.mrf.mxu0
        %v3482 = vpop.f32.mrf.mxu0
        %3483 = vdwg.mxu0
        %v3484 = vadd.f32 %v3479, %v3138
        %3485 = vadd.xlane.f32.xlu0 %v3484
        %v3486 = vpop.xlane.xlu0 %3485
        %v3487 = vmul.f32 %v3486, %v560
        %v3488 = vsub.f32 %v3484, %v3487
        %v3489 = vmul.f32 %v3488, %v3488
        %3490 = vadd.xlane.f32.xlu0 %v3489
        %v3491 = vpop.xlane.xlu0 %3490
        %v3492 = vmul.f32 %v3491, %v560
        %v3493 = vadd.f32 %v3492, 1e-12
        %v3494 = vrsqrt.pop %v3493
        %v3495 = vmul.f32 %v3488, %v3494
        %v3496 = vlaneseq
        %v3497 = vshrl.u32 %v3496, 7
        %v3498 = vsub.s32 0, %v3497
        %v3499 = vrot.slane %v2049, %v3498
        %v3500 = vmul.f32 %v3495, %v3499
        %v3501 = vlaneseq
        %v3502 = vshrl.u32 %v3501, 7
        %v3503 = vsub.s32 0, %v3502
        %v3504 = vrot.slane %v2050, %v3503
        %v3505 = vadd.f32 %v3500, %v3504
        %v3506 = vpack.c.bf16 %v3505, %v3505
        %v3507 = vld [vmem:[#allocation16] sm:$0xf]
        %v3508 = vld [vmem:[#allocation16 + $0x4] sm:$0xf]
        %v3509 = vld [vmem:[#allocation16 + $0x8] sm:$0xf]
        %v3510 = vld [vmem:[#allocation16 + $0xc] sm:$0xf]
        %v3511 = vld [vmem:[#allocation16 + $0x10] sm:$0xf]
        %v3512 = vld [vmem:[#allocation16 + $0x14] sm:$0xf]
        %v3513 = vld [vmem:[#allocation16 + $0x18] sm:$0xf]
        %v3514 = vld [vmem:[#allocation16 + $0x1c] sm:$0xf]
        %v3515 = vld [vmem:[#allocation16 + $0x20] sm:$0xf]
        %v3516 = vld [vmem:[#allocation16 + $0x24] sm:$0xf]
        %v3517 = vld [vmem:[#allocation16 + $0x28] sm:$0xf]
        %v3518 = vld [vmem:[#allocation16 + $0x2c] sm:$0xf]
        %v3519 = vld [vmem:[#allocation16 + $0x30] sm:$0xf]
        %v3520 = vld [vmem:[#allocation16 + $0x34] sm:$0xf]
        %v3521 = vld [vmem:[#allocation16 + $0x38] sm:$0xf]
        %v3522 = vld [vmem:[#allocation16 + $0x3c] sm:$0xf]
        %v3539 = vunpack.c.l.b16 %v3507
        %v3540 = vunpack.c.l.b16 %v3508
        %v3541 = vunpack.c.l.b16 %v3509
        %v3542 = vunpack.c.l.b16 %v3510
        %v3543 = vunpack.c.l.b16 %v3511
        %v3544 = vunpack.c.l.b16 %v3512
        %v3545 = vunpack.c.l.b16 %v3513
        %v3546 = vunpack.c.l.b16 %v3514
        %v3547 = vunpack.c.l.b16 %v3515
        %v3548 = vunpack.c.l.b16 %v3516
        %v3549 = vunpack.c.l.b16 %v3517
        %v3550 = vunpack.c.l.b16 %v3518
        %v3551 = vunpack.c.l.b16 %v3519
        %v3552 = vunpack.c.l.b16 %v3520
        %v3553 = vunpack.c.l.b16 %v3521
        %v3554 = vunpack.c.l.b16 %v3522
        %v3555 = vpack.c.b16 %v3540, %v3539
        %v3556 = vpack.c.b16 %v3542, %v3541
        %v3557 = vpack.c.b16 %v3544, %v3543
        %v3558 = vpack.c.b16 %v3546, %v3545
        %v3559 = vpack.c.b16 %v3548, %v3547
        %v3560 = vpack.c.b16 %v3550, %v3549
        %v3561 = vpack.c.b16 %v3552, %v3551
        %v3562 = vpack.c.b16 %v3554, %v3553
        %3571 = vmatprep.subr.bf16.mxu0 0
        %3572 = vmatpush1.bf16.msra.mxu0 %v3562
        %3573 = vmatprep.subr.bf16.mxu0 0
        %3574 = vmatpush1.bf16.msra.mxu0 %v3561
        %3575 = vmatprep.subr.bf16.mxu0 0
        %3576 = vmatpush1.bf16.msra.mxu0 %v3560
        %3577 = vmatprep.subr.bf16.mxu0 0
        %3578 = vmatpush1.bf16.msra.mxu0 %v3559
        %3579 = vmatprep.subr.bf16.mxu0 0
        %3580 = vmatpush1.bf16.msra.mxu0 %v3558
        %3581 = vmatprep.subr.bf16.mxu0 0
        %3582 = vmatpush1.bf16.msra.mxu0 %v3557
        %3583 = vmatprep.subr.bf16.mxu0 0
        %3584 = vmatpush1.bf16.msra.mxu0 %v3556
        %3585 = vmatprep.subr.bf16.mxu0 0
        %3586 = vmatpush1.bf16.msra.mxu0 %v3555
        %3587 = vmatprep.subr.bf16.mxu0 0
        %3588 = vmatpush2.bf16.msra.mxu0 0
        %3589 = vmatprep.subr.bf16.mxu0 0
        %3590 = vmatpush2.bf16.msra.mxu0 0
        %3591 = vmatprep.subr.bf16.mxu0 0
        %3592 = vmatpush2.bf16.msra.mxu0 0
        %3593 = vmatprep.subr.bf16.mxu0 0
        %3594 = vmatpush2.bf16.msra.mxu0 0
        %3595 = vmatprep.subr.bf16.mxu0 0
        %3596 = vmatpush2.bf16.msra.mxu0 0
        %3597 = vmatprep.subr.bf16.mxu0 0
        %3598 = vmatpush2.bf16.msra.mxu0 0
        %3599 = vmatprep.subr.bf16.mxu0 0
        %3600 = vmatpush2.bf16.msra.mxu0 0
        %3601 = vmatprep.subr.bf16.mxu0 0
        %3602 = vmatpush2.bf16.msra.mxu0 0
        %3603 = vmatprep.mubr.bf16.mxu0 0
        %3604 = vmatmul.mubr.bf16.gmra.mxu0 %v3506
        %v3605 = vpop.f32.mrf.mxu0
        %v3606 = vadd.f32 %v556, %v3605
        %v3607 = vpop.f32.mrf.mxu0
        %v3608 = vpop.f32.mrf.mxu0
        %v3609 = vpop.f32.mrf.mxu0
        %3610 = vdwg.mxu0
        %v3611 = vtanh.pop %v3606
        %v3612 = vld [vmem:[%s483] sm:$0x1]
        %v3613 = vmul.f32 %v3611, %v3612
        %3614 = vst [vmem:[%s552] sm:$0x1] %v3613
        %s3615 = sand.u32 %s288, 1
        %s3616 = scalar_lea.sflag [#allocation4], %s3615
        %s3617 = sand.u32 %s288, 1
        %s3618 = scalar_lea.vmem [#allocation17], %s3617
        // Predicated region
        $region101: #{tpu_custom_call.1} parent=63 // pred_check
          %p3619 = pneg %p298
        $region102: #{tpu_custom_call.1} parent=63 // pred_check_branch
          %3621 = sbr.rel (%p3619) target = $region104
        $region103: #{tpu_custom_call.1} parent=63 // pred_region
          %s3623 = ssub.s32 16, 16
          %3624 = vsyncadd %s3616, %s3623
          %s3625 = smul.addr %s34, 16
          %s3626 = scalar_lea.hbm %s11, %s3625
          %s3628 = sshll.u32 %s3618, 4
          %s3629 = int_to_ptr.vmem [resolvable:$true] %s3628
          %3631 = dma.vmem_to_hbm [thread:$0]  %s3629, 16, %s3626, %s3616
        $region104: #{tpu_custom_call.1} parent=63 // pred_fallthru
          _
      $region64: #{tpu_custom_call.1} parent=5 // pred_fallthru
        _
      %p3632 = scmp.le.s32.totalorder 2, %s29
      // Predicated region
      $region105: #{tpu_custom_call.1} parent=5 // pred_check
        %p3633 = pneg %p3632
      $region106: #{tpu_custom_call.1} parent=5 // pred_check_branch
        %3635 = sbr.rel (%p3633) target = $region108
      $region107: #{tpu_custom_call.1} parent=5 // pred_region
        %s3636 = ssub.s32 %s29, 2
        // Predicated region
        $region109: #{tpu_custom_call.1} parent=107 // pred_check
          %p3637 = pneg %p304
        $region110: #{tpu_custom_call.1} parent=107 // pred_check_branch
          %3639 = sbr.rel (%p3637) target = $region112
        $region111: #{tpu_custom_call.1} parent=107 // pred_region
          %s3640 = sand.u32 %s289, 1
          %s3641 = scalar_lea.sflag [#allocation4], %s3640
          %s3642 = sand.u32 %s289, 1
          %s3643 = scalar_lea.vmem [#allocation17], %s3642
          %3644 = dma.done %s3641, 16
        $region112: #{tpu_custom_call.1} parent=107 // pred_fallthru
          _
      $region108: #{tpu_custom_call.1} parent=5 // pred_fallthru
        _
    $region6: #{tpu_custom_call.1} parent=1 // loop_footer
      %s33 = sadd.s32 1, %s29
    $region7: #{tpu_custom_call.1} parent=1 // loop_footer_branch
      %28 = sbr.rel target = $region3
    $region8: #{tpu_custom_call.1} parent=1 // loop_exit
      _
    %3645 = vsyncpa [#allocation3], 1
    %s3646 = scalar_lea.sflag [#allocation3], 1
    %3647 = vsyncpa %s3646, 1
    %3648 = vsyncpa [#allocation6], 1
    %s3649 = scalar_lea.sflag [#allocation6], 1
    %3650 = vsyncpa %s3649, 1
    %3651 = vsyncpa [#allocation9], 1
    %3652 = vsyncpa [#allocation12], 1
    %3653 = vsyncpa [#allocation15], 1
    %3654 = vsyncpa [#allocation4], 1
    %s3655 = scalar_lea.sflag [#allocation4], 1
    %3656 = vsyncpa %s3655, 1

</llo_original>
